<compile_context>
chip_gen: v6e
topology: v6e:2x2x1
jax: 0.10.0
libtpu: 0.0.40
codegen_flags: <defaults>
</compile_context>

<pallas_src>
import functools
import math

import jax
import jax.numpy as jnp
from jax.experimental import pallas as pl
from jax.experimental.pallas import tpu as pltpu


# ----------------------------------------------------------------------------
# In-kernel helpers (f32 math, bf16 MXU inputs)
# ----------------------------------------------------------------------------

def _mm(a, b):
    """a @ b on the MXU: a cast to bf16, b already bf16, f32 accumulation."""
    return jax.lax.dot_general(a.astype(jnp.bfloat16), b,
                               (((1,), (0,)), ((), ())),
                               preferred_element_type=jnp.float32)


def _ln(v, g, b, eps):
    mu = jnp.mean(v, axis=-1, keepdims=True)
    var = jnp.mean(jnp.square(v - mu), axis=-1, keepdims=True)
    return (v - mu) * jax.lax.rsqrt(var + eps) * g + b


def _gelu(v):
    # tanh-approx GELU (transcendental on the EUP slot).
    # NOTE: differs from BERT's exact-erf GELU by ~1e-3 relative.
    return 0.5 * v * (1.0 + jnp.tanh(0.7978845608028654
                                     * (v + 0.044715 * v * v * v)))


# ----------------------------------------------------------------------------
# Kernel 1: BERT encoder.  grid = (batch, num_layers); per-layer weights are
# streamed; x (residual stream) is resident in the output block across layers.
# ----------------------------------------------------------------------------

def _encoder_kernel(
    emb_ref, mask_ref,
    emb_ln_g_ref, emb_ln_b_ref,
    wqkv_ref, bqkv_ref, wo_ref, bo_ref, ln1_g_ref, ln1_b_ref,
    wi_ref, bi_ref, wf_ref, bf_ref, ln2_g_ref, ln2_b_ref,
    x_ref,
    *, num_heads, head_dim, eps):

    hidden = num_heads * head_dim
    layer = pl.program_id(1)

    # layer 0: LayerNorm of the summed embeddings initializes the residual stream
    @pl.when(layer == 0)
    def _():
        x_ref[...] = _ln(emb_ref[...], emb_ln_g_ref[...], emb_ln_b_ref[...], eps)

    x = x_ref[...]                                          # (seq, H) f32

    # ---- self attention: fused QKV, all heads batched ----
    qkv = _mm(x, wqkv_ref[...]) + bqkv_ref[...]             # (seq, 3H) f32
    q = jnp.stack([qkv[:, h * head_dim:(h + 1) * head_dim]
                   for h in range(num_heads)], axis=0)      # (nh, seq, dh)
    k = jnp.stack([qkv[:, hidden + h * head_dim:hidden + (h + 1) * head_dim]
                   for h in range(num_heads)], axis=0)
    v = jnp.stack([qkv[:, 2 * hidden + h * head_dim:2 * hidden + (h + 1) * head_dim]
                   for h in range(num_heads)], axis=0)

    # 1/sqrt(dh) is folded into Wq at init.
    s = jnp.einsum("hqd,hkd->hqk",
                   q.astype(jnp.bfloat16), k.astype(jnp.bfloat16),
                   preferred_element_type=jnp.float32)      # (nh, seq, seq)
    s = s + mask_ref[...]                                   # (1,1,seq) additive bias
    s = s - jnp.max(s, axis=-1, keepdims=True)
    p = jnp.exp(s)
    p = p * pl.reciprocal(jnp.sum(p, axis=-1, keepdims=True), approx=True)
    ctx = jnp.einsum("hqk,hkd->hqd",
                     p.astype(jnp.bfloat16), v.astype(jnp.bfloat16),
                     preferred_element_type=jnp.float32)    # (nh, seq, dh)
    ctx = jnp.concatenate([ctx[h] for h in range(num_heads)], axis=-1)  # (seq, H)

    attn = _mm(ctx, wo_ref[...]) + bo_ref[...]              # single full-H contraction
    x = _ln(x + attn, ln1_g_ref[...], ln1_b_ref[...], eps)

    # ---- feed forward ----
    inter = _gelu(_mm(x, wi_ref[...]) + bi_ref[...])
    ffn = _mm(inter, wf_ref[...]) + bf_ref[...]
    x_ref[...] = _ln(x + ffn, ln2_g_ref[...], ln2_b_ref[...], eps)


# ----------------------------------------------------------------------------
# Kernel 2: MLM head + tied decoder + cross entropy.  grid = (vocab tiles,)
# with online LSE; logits never materialized at full (N, V).
# ----------------------------------------------------------------------------

def _mlm_head_ce_kernel(
    x_ref, labels_ref,
    mlm_w_ref, mlm_b_ref, mlm_ln_g_ref, mlm_ln_b_ref,
    dec_w_ref, dec_b_ref,
    loss_ref,
    hh_ref, m_ref, l_ref, lab_ref,
    *, n_tok, vocab_tile, eps):

    j = pl.program_id(0)

    @pl.when(j == 0)
    def _():
        hh = _gelu(_mm(x_ref[...], mlm_w_ref[...]) + mlm_b_ref[...])
        hh_ref[...] = _ln(hh, mlm_ln_g_ref[...], mlm_ln_b_ref[...], eps)
        m_ref[...] = jnp.full_like(m_ref, -jnp.inf)
        l_ref[...] = jnp.zeros_like(l_ref)
        lab_ref[...] = jnp.zeros_like(lab_ref)

    # logits for this vocab tile only
    logits = _mm(hh_ref[...], dec_w_ref[...]) + dec_b_ref[...]    # (N, TV) f32

    # online LSE update
    m_prev = m_ref[...]
    m_cur = jnp.maximum(m_prev, jnp.max(logits, axis=-1, keepdims=True))
    alpha = jnp.exp(m_prev - m_cur)
    l_ref[...] = alpha * l_ref[...] + jnp.sum(jnp.exp(logits - m_cur),
                                              axis=-1, keepdims=True)
    m_ref[...] = m_cur

    # label logit (label falls inside exactly one tile)
    ids = jax.lax.broadcasted_iota(jnp.int32, logits.shape, 1) + j * vocab_tile
    lab_ref[...] = lab_ref[...] + jnp.sum(
        jnp.where(ids == labels_ref[...], logits, 0.0), axis=-1, keepdims=True)

    @pl.when(j == pl.num_programs(0) - 1)
    def _():
        per_tok = (m_ref[...] + jnp.log(l_ref[...])) - lab_ref[...]   # (N, 1)
        loss_ref[...] = jnp.sum(per_tok, axis=0, keepdims=True) * (1.0 / n_tok)


# ----------------------------------------------------------------------------
# Model (parameter init + wrapper around the two pallas_calls)
# ----------------------------------------------------------------------------

CFG = dict(
    vocab_size=256,
    hidden=32,
    num_heads=4,
    num_layers=2,
    intermediate=64,
    max_pos=16,
    type_vocab=2,
    vocab_tile=128,
)


def init_params(key, cfg):
    H, I = cfg["hidden"], cfg["intermediate"]
    V, L = cfg["vocab_size"], cfg["num_layers"]
    nh = cfg["num_heads"]
    scale = 1.0 / math.sqrt(H // nh)

    def nrm(k, shape):
        return 0.02 * jax.random.normal(k, shape, jnp.float32)

    keys = iter(jax.random.split(key, 64))
    word_emb = nrm(next(keys), (V, H))

    wqkv = nrm(next(keys), (L, H, 3 * H))
    wqkv = wqkv.at[:, :, :H].multiply(scale)     # fold 1/sqrt(dh) into Wq

    bf16 = jnp.bfloat16
    return dict(
        word_emb=word_emb,
        pos_emb=nrm(next(keys), (cfg["max_pos"], H)),
        type_emb=nrm(next(keys), (cfg["type_vocab"], H)),
        emb_ln_g=jnp.ones((1, H), jnp.float32),
        emb_ln_b=jnp.zeros((1, H), jnp.float32),
        # stacked per-layer weights, bf16 for the MXU; biases/LN params f32
        Wqkv=wqkv.astype(bf16),
        bqkv=jnp.zeros((L, 1, 3 * H), jnp.float32),
        Wo=nrm(next(keys), (L, H, H)).astype(bf16),
        bo=jnp.zeros((L, 1, H), jnp.float32),
        ln1_g=jnp.ones((L, 1, H), jnp.float32),
        ln1_b=jnp.zeros((L, 1, H), jnp.float32),
        Wi=nrm(next(keys), (L, H, I)).astype(bf16),
        bi=jnp.zeros((L, 1, I), jnp.float32),
        Wf=nrm(next(keys), (L, I, H)).astype(bf16),
        bf=jnp.zeros((L, 1, H), jnp.float32),
        ln2_g=jnp.ones((L, 1, H), jnp.float32),
        ln2_b=jnp.zeros((L, 1, H), jnp.float32),
        # MLM head (transform + tied decoder stored kernel-ready as (H, V))
        mlm_W=nrm(next(keys), (H, H)).astype(bf16),
        mlm_b=jnp.zeros((1, H), jnp.float32),
        mlm_ln_g=jnp.ones((1, H), jnp.float32),
        mlm_ln_b=jnp.zeros((1, H), jnp.float32),
        dec_W=word_emb.T.astype(bf16),           # weight tying (forward-only copy)
        dec_b=jnp.zeros((1, V), jnp.float32),
    )


def mlm_forward(params, input_ids, attention_mask, token_type_ids, cfg):
    B, S = input_ids.shape
    H, nh = cfg["hidden"], cfg["num_heads"]
    dh = H // nh
    L = cfg["num_layers"]
    I = cfg["intermediate"]
    V = cfg["vocab_size"]
    TV = cfg["vocab_tile"]
    N = B * S
    assert V % TV == 0

    # ---- embedding gathers (XLA glue; summed once, LayerNorm'd in-kernel) ----
    emb = (params["word_emb"][input_ids]
           + params["pos_emb"][jnp.arange(S)][None, :, :]
           + params["type_emb"][token_type_ids]).reshape(N, H).astype(jnp.float32)

    mask_bias = ((1.0 - attention_mask.astype(jnp.float32)) * -10000.0
                 ).reshape(B, 1, S)
    labels = input_ids.reshape(N, 1).astype(jnp.int32)

    # ------------------- encoder: grid (batch, layer) ------------------------
    enc_kernel = functools.partial(
        _encoder_kernel, num_heads=nh, head_dim=dh, eps=1e-12)

    def lw(*tail):  # per-layer stacked weight: stream layer `l`, squeeze lead dim
        return pl.BlockSpec((None,) + tail,
                            lambda b, l: (l,) + (0,) * len(tail))

    x_final = pl.pallas_call(
        enc_kernel,
        out_shape=jax.ShapeDtypeStruct((N, H), jnp.float32),
        grid=(B, L),
        in_specs=[
            pl.BlockSpec((S, H), lambda b, l: (b, 0)),         # emb
            pl.BlockSpec((1, 1, S), lambda b, l: (b, 0, 0)),   # mask bias
            pl.BlockSpec((1, H), lambda b, l: (0, 0)),         # emb_ln_g
            pl.BlockSpec((1, H), lambda b, l: (0, 0)),         # emb_ln_b
            lw(H, 3 * H),   # Wqkv
            lw(1, 3 * H),   # bqkv
            lw(H, H),       # Wo
            lw(1, H),       # bo
            lw(1, H),       # ln1_g
            lw(1, H),       # ln1_b
            lw(H, I),       # Wi
            lw(1, I),       # bi
            lw(I, H),       # Wf
            lw(1, H),       # bf
            lw(1, H),       # ln2_g
            lw(1, H),       # ln2_b
        ],
        out_specs=pl.BlockSpec((S, H), lambda b, l: (b, 0)),
        compiler_params=pltpu.CompilerParams(
            dimension_semantics=("parallel", "arbitrary"),
            vmem_limit_bytes=64 * 1024 * 1024),
    )(emb, mask_bias,
      params["emb_ln_g"], params["emb_ln_b"],
      params["Wqkv"], params["bqkv"], params["Wo"], params["bo"],
      params["ln1_g"], params["ln1_b"],
      params["Wi"], params["bi"], params["Wf"], params["bf"],
      params["ln2_g"], params["ln2_b"])

    # CLS vector: hidden_states[-1][:, 0, :] — plain slice of the kernel output.
    cls = x_final.reshape(B, S, H)[:, 0, :]

    # ------------ MLM head + tied decoder + CE: grid (vocab tiles) -----------
    ce_kernel = functools.partial(
        _mlm_head_ce_kernel, n_tok=N, vocab_tile=TV, eps=1e-12)

    loss = pl.pallas_call(
        ce_kernel,
        out_shape=jax.ShapeDtypeStruct((1, 1), jnp.float32),
        grid=(V // TV,),
        in_specs=[
            pl.BlockSpec((N, H), lambda j: (0, 0)),   # x_final
            pl.BlockSpec((N, 1), lambda j: (0, 0)),   # labels
            pl.BlockSpec((H, H), lambda j: (0, 0)),   # mlm_W
            pl.BlockSpec((1, H), lambda j: (0, 0)),   # mlm_b
            pl.BlockSpec((1, H), lambda j: (0, 0)),   # mlm_ln_g
            pl.BlockSpec((1, H), lambda j: (0, 0)),   # mlm_ln_b
            pl.BlockSpec((H, TV), lambda j: (0, j)),  # dec_W vocab tile
            pl.BlockSpec((1, TV), lambda j: (0, j)),  # dec_b vocab tile
        ],
        out_specs=pl.BlockSpec((1, 1), lambda j: (0, 0)),
        scratch_shapes=[
            pltpu.VMEM((N, H), jnp.float32),   # hh (MLM transform output)
            pltpu.VMEM((N, 1), jnp.float32),   # running max
            pltpu.VMEM((N, 1), jnp.float32),   # running sum-exp
            pltpu.VMEM((N, 1), jnp.float32),   # label logit
        ],
        compiler_params=pltpu.CompilerParams(
            dimension_semantics=("arbitrary",),
            vmem_limit_bytes=64 * 1024 * 1024),
    )(x_final, labels,
      params["mlm_W"], params["mlm_b"], params["mlm_ln_g"], params["mlm_ln_b"],
      params["dec_W"], params["dec_b"])

    return cls, loss[0, 0]


# ----------------------------------------------------------------------------

if __name__ == "__main__":
    key = jax.random.PRNGKey(0)
    pkey, ikey = jax.random.split(key)

    B, S = 2, 8
    params = init_params(pkey, CFG)

    input_ids = jax.random.randint(ikey, (B, S), 0, CFG["vocab_size"], jnp.int32)
    attention_mask = jnp.ones((B, S), jnp.int32).at[1, 6:].set(0)  # some padding
    token_type_ids = jnp.zeros((B, S), jnp.int32)

    fwd = jax.jit(lambda p, i, a, t: mlm_forward(p, i, a, t, CFG))
    cls_vec, loss = fwd(params, input_ids, attention_mask, token_type_ids)
    jax.block_until_ready((cls_vec, loss))

    assert cls_vec.shape == (B, CFG["hidden"])
    assert loss.shape == ()
    assert bool(jnp.isfinite(loss))
    print("KERNEL_OK")
</pallas_src>

<mosaic_0001>
module attributes {stable_mosaic.version = 11 : i64} {
  func.func @_encoder_kernel(%arg0: i32, %arg1: i32, %arg2: memref<8x32xf32, #tpu.memory_space<vmem>>, %arg3: memref<1x1x8xf32, #tpu.memory_space<vmem>>, %arg4: memref<1x32xf32, #tpu.memory_space<vmem>>, %arg5: memref<1x32xf32, #tpu.memory_space<vmem>>, %arg6: memref<1x32x96xbf16, #tpu.memory_space<vmem>>, %arg7: memref<1x1x96xf32, #tpu.memory_space<vmem>>, %arg8: memref<1x32x32xbf16, #tpu.memory_space<vmem>>, %arg9: memref<1x1x32xf32, #tpu.memory_space<vmem>>, %arg10: memref<1x1x32xf32, #tpu.memory_space<vmem>>, %arg11: memref<1x1x32xf32, #tpu.memory_space<vmem>>, %arg12: memref<1x32x64xbf16, #tpu.memory_space<vmem>>, %arg13: memref<1x1x64xf32, #tpu.memory_space<vmem>>, %arg14: memref<1x64x32xbf16, #tpu.memory_space<vmem>>, %arg15: memref<1x1x32xf32, #tpu.memory_space<vmem>>, %arg16: memref<1x1x32xf32, #tpu.memory_space<vmem>>, %arg17: memref<1x1x32xf32, #tpu.memory_space<vmem>>, %arg18: memref<8x32xf32, #tpu.memory_space<vmem>>) attributes {dimension_semantics = [#tpu.dimension_semantics<parallel>, #tpu.dimension_semantics<arbitrary>], iteration_bounds = array<i64: 2, 2>, scalar_prefetch = 0 : i64, scratch_operands = 0 : i64, tpu.core_type = #tpu.core_type<tc>, window_params = [{transform_indices = @transform_0, window_bounds = array<i64: 8, 32>}, {transform_indices = @transform_1, window_bounds = array<i64: 1, 1, 8>}, {pipeline_mode = #tpu.pipeline_mode<synchronous>, transform_indices = @transform_2, window_bounds = array<i64: 1, 32>}, {pipeline_mode = #tpu.pipeline_mode<synchronous>, transform_indices = @transform_3, window_bounds = array<i64: 1, 32>}, {transform_indices = @transform_4, window_bounds = array<i64: 1, 32, 96>}, {transform_indices = @transform_5, window_bounds = array<i64: 1, 1, 96>}, {transform_indices = @transform_6, window_bounds = array<i64: 1, 32, 32>}, {transform_indices = @transform_7, window_bounds = array<i64: 1, 1, 32>}, {transform_indices = @transform_8, window_bounds = array<i64: 1, 1, 32>}, {transform_indices = @transform_9, window_bounds = array<i64: 1, 1, 32>}, {transform_indices = @transform_10, window_bounds = array<i64: 1, 32, 64>}, {transform_indices = @transform_11, window_bounds = array<i64: 1, 1, 64>}, {transform_indices = @transform_12, window_bounds = array<i64: 1, 64, 32>}, {transform_indices = @transform_13, window_bounds = array<i64: 1, 1, 32>}, {transform_indices = @transform_14, window_bounds = array<i64: 1, 1, 32>}, {transform_indices = @transform_15, window_bounds = array<i64: 1, 1, 32>}, {transform_indices = @transform_16, window_bounds = array<i64: 8, 32>}]} {
    %c0_i32 = arith.constant 0 : i32
    %0 = arith.cmpi eq, %arg1, %c0_i32 : i32
    %1 = arith.extui %0 : i1 to i32
    %c0_i32_0 = arith.constant 0 : i32
    %2 = arith.cmpi ne, %1, %c0_i32_0 : i32
    scf.if %2 {
      %c0_64 = arith.constant 0 : index
      %c0_65 = arith.constant 0 : index
      %159 = vector.load %arg2[%c0_64, %c0_65] : memref<8x32xf32, #tpu.memory_space<vmem>>, vector<8x32xf32>
      %c0_66 = arith.constant 0 : index
      %c0_67 = arith.constant 0 : index
      %160 = vector.load %arg4[%c0_66, %c0_67] : memref<1x32xf32, #tpu.memory_space<vmem>>, vector<1x32xf32>
      %c0_68 = arith.constant 0 : index
      %c0_69 = arith.constant 0 : index
      %161 = vector.load %arg5[%c0_68, %c0_69] : memref<1x32xf32, #tpu.memory_space<vmem>>, vector<1x32xf32>
      %cst_70 = arith.constant dense<0.000000e+00> : vector<8xf32>
      %162 = vector.multi_reduction <add>, %159, %cst_70 [1] : vector<8x32xf32> to vector<8xf32>
      %163 = vector.shape_cast %162 : vector<8xf32> to vector<8x1xf32>
      %cst_71 = arith.constant 3.200000e+01 : f32
      %164 = vector.broadcast %cst_71 : f32 to vector<8x1xf32>
      %165 = arith.divf %163, %164 : vector<8x1xf32>
      %166 = vector.broadcast %165 : vector<8x1xf32> to vector<8x32xf32>
      %167 = arith.subf %159, %166 : vector<8x32xf32>
      %168 = arith.mulf %167, %167 : vector<8x32xf32>
      %cst_72 = arith.constant dense<0.000000e+00> : vector<8xf32>
      %169 = vector.multi_reduction <add>, %168, %cst_72 [1] : vector<8x32xf32> to vector<8xf32>
      %170 = vector.shape_cast %169 : vector<8xf32> to vector<8x1xf32>
      %cst_73 = arith.constant 3.200000e+01 : f32
      %171 = vector.broadcast %cst_73 : f32 to vector<8x1xf32>
      %172 = arith.divf %170, %171 : vector<8x1xf32>
      %173 = vector.broadcast %165 : vector<8x1xf32> to vector<8x32xf32>
      %174 = arith.subf %159, %173 : vector<8x32xf32>
      %cst_74 = arith.constant 9.99999996E-13 : f32
      %175 = vector.broadcast %cst_74 : f32 to vector<8x1xf32>
      %176 = arith.addf %172, %175 : vector<8x1xf32>
      %177 = math.rsqrt %176 : vector<8x1xf32>
      %178 = vector.broadcast %177 : vector<8x1xf32> to vector<8x32xf32>
      %179 = arith.mulf %174, %178 : vector<8x32xf32>
      %180 = vector.broadcast %160 : vector<1x32xf32> to vector<8x32xf32>
      %181 = arith.mulf %179, %180 : vector<8x32xf32>
      %182 = vector.broadcast %161 : vector<1x32xf32> to vector<8x32xf32>
      %183 = arith.addf %181, %182 : vector<8x32xf32>
      %c0_75 = arith.constant 0 : index
      %c0_76 = arith.constant 0 : index
      %184 = vector.load %arg18[%c0_75, %c0_76] : memref<8x32xf32, #tpu.memory_space<vmem>>, vector<8x32xf32>
      tpu.vector_store %arg18[%c0_75, %c0_76], %183 {strides = array<i32>} : memref<8x32xf32, #tpu.memory_space<vmem>>, vector<8x32xf32>,
    } else {
    }
    %c0 = arith.constant 0 : index
    %c0_1 = arith.constant 0 : index
    %3 = vector.load %arg18[%c0, %c0_1] : memref<8x32xf32, #tpu.memory_space<vmem>>, vector<8x32xf32>
    %c0_2 = arith.constant 0 : index
    %c0_3 = arith.constant 0 : index
    %c0_4 = arith.constant 0 : index
    %4 = vector.load %arg6[%c0_2, %c0_3, %c0_4] : memref<1x32x96xbf16, #tpu.memory_space<vmem>>, vector<1x32x96xbf16>
    %5 = vector.shape_cast %4 : vector<1x32x96xbf16> to vector<32x96xbf16>
    %6 = arith.truncf %3 : vector<8x32xf32> to vector<8x32xbf16>
    %cst = arith.constant dense<0.000000e+00> : vector<8x96xf32>
    %7 = tpu.matmul %6, %5, %cst {dimension_numbers = #tpu.dot_dimension_numbers<[1], [0], [0], [1], [0, 0, 1, 1], [], []>} : vector<8x32xbf16>, vector<32x96xbf16>, vector<8x96xf32> -> vector<8x96xf32>
    %c0_5 = arith.constant 0 : index
    %c0_6 = arith.constant 0 : index
    %c0_7 = arith.constant 0 : index
    %8 = vector.load %arg7[%c0_5, %c0_6, %c0_7] : memref<1x1x96xf32, #tpu.memory_space<vmem>>, vector<1x1x96xf32>
    %9 = vector.shape_cast %8 : vector<1x1x96xf32> to vector<1x96xf32>
    %10 = vector.broadcast %9 : vector<1x96xf32> to vector<8x96xf32>
    %11 = arith.addf %7, %10 : vector<8x96xf32>
    %12 = vector.extract_strided_slice %11 {offsets = [0, 0], sizes = [8, 8], strides = [1, 1]} : vector<8x96xf32> to vector<8x8xf32>
    %13 = vector.extract_strided_slice %11 {offsets = [0, 8], sizes = [8, 8], strides = [1, 1]} : vector<8x96xf32> to vector<8x8xf32>
    %14 = vector.extract_strided_slice %11 {offsets = [0, 16], sizes = [8, 8], strides = [1, 1]} : vector<8x96xf32> to vector<8x8xf32>
    %15 = vector.extract_strided_slice %11 {offsets = [0, 24], sizes = [8, 8], strides = [1, 1]} : vector<8x96xf32> to vector<8x8xf32>
    %16 = vector.shape_cast %12 : vector<8x8xf32> to vector<1x8x8xf32>
    %17 = vector.shape_cast %13 : vector<8x8xf32> to vector<1x8x8xf32>
    %18 = vector.shape_cast %14 : vector<8x8xf32> to vector<1x8x8xf32>
    %19 = vector.shape_cast %15 : vector<8x8xf32> to vector<1x8x8xf32>
    %20 = tpu.concatenate %16, %17, %18, %19 in 0 : vector<1x8x8xf32>, vector<1x8x8xf32>, vector<1x8x8xf32>, vector<1x8x8xf32> -> vector<4x8x8xf32>
    %21 = vector.extract_strided_slice %11 {offsets = [0, 32], sizes = [8, 8], strides = [1, 1]} : vector<8x96xf32> to vector<8x8xf32>
    %22 = vector.extract_strided_slice %11 {offsets = [0, 40], sizes = [8, 8], strides = [1, 1]} : vector<8x96xf32> to vector<8x8xf32>
    %23 = vector.extract_strided_slice %11 {offsets = [0, 48], sizes = [8, 8], strides = [1, 1]} : vector<8x96xf32> to vector<8x8xf32>
    %24 = vector.extract_strided_slice %11 {offsets = [0, 56], sizes = [8, 8], strides = [1, 1]} : vector<8x96xf32> to vector<8x8xf32>
    %25 = vector.shape_cast %21 : vector<8x8xf32> to vector<1x8x8xf32>
    %26 = vector.shape_cast %22 : vector<8x8xf32> to vector<1x8x8xf32>
    %27 = vector.shape_cast %23 : vector<8x8xf32> to vector<1x8x8xf32>
    %28 = vector.shape_cast %24 : vector<8x8xf32> to vector<1x8x8xf32>
    %29 = tpu.concatenate %25, %26, %27, %28 in 0 : vector<1x8x8xf32>, vector<1x8x8xf32>, vector<1x8x8xf32>, vector<1x8x8xf32> -> vector<4x8x8xf32>
    %30 = vector.extract_strided_slice %11 {offsets = [0, 64], sizes = [8, 8], strides = [1, 1]} : vector<8x96xf32> to vector<8x8xf32>
    %31 = vector.extract_strided_slice %11 {offsets = [0, 72], sizes = [8, 8], strides = [1, 1]} : vector<8x96xf32> to vector<8x8xf32>
    %32 = vector.extract_strided_slice %11 {offsets = [0, 80], sizes = [8, 8], strides = [1, 1]} : vector<8x96xf32> to vector<8x8xf32>
    %33 = vector.extract_strided_slice %11 {offsets = [0, 88], sizes = [8, 8], strides = [1, 1]} : vector<8x96xf32> to vector<8x8xf32>
    %34 = vector.shape_cast %30 : vector<8x8xf32> to vector<1x8x8xf32>
    %35 = vector.shape_cast %31 : vector<8x8xf32> to vector<1x8x8xf32>
    %36 = vector.shape_cast %32 : vector<8x8xf32> to vector<1x8x8xf32>
    %37 = vector.shape_cast %33 : vector<8x8xf32> to vector<1x8x8xf32>
    %38 = tpu.concatenate %34, %35, %36, %37 in 0 : vector<1x8x8xf32>, vector<1x8x8xf32>, vector<1x8x8xf32>, vector<1x8x8xf32> -> vector<4x8x8xf32>
    %39 = arith.truncf %20 : vector<4x8x8xf32> to vector<4x8x8xbf16>
    %40 = arith.truncf %29 : vector<4x8x8xf32> to vector<4x8x8xbf16>
    "tpu.trace_start"() <{level = 10 : i32, message = "hqd,hkd->hqk"}> : () -> ()
    %cst_8 = arith.constant dense<0.000000e+00> : vector<4x8x8xf32>
    %41 = tpu.matmul %39, %40, %cst_8 {dimension_numbers = #tpu.dot_dimension_numbers<[2], [2], [1], [1], [0, 0, 0, 1, 1, 1], [0], [0]>} : vector<4x8x8xbf16>, vector<4x8x8xbf16>, vector<4x8x8xf32> -> vector<4x8x8xf32>
    "tpu.trace_stop"() : () -> ()
    %c0_9 = arith.constant 0 : index
    %c0_10 = arith.constant 0 : index
    %c0_11 = arith.constant 0 : index
    %42 = vector.load %arg3[%c0_9, %c0_10, %c0_11] : memref<1x1x8xf32, #tpu.memory_space<vmem>>, vector<1x1x8xf32>
    %43 = vector.broadcast %42 : vector<1x1x8xf32> to vector<4x8x8xf32>
    %44 = arith.addf %41, %43 : vector<4x8x8xf32>
    %cst_12 = arith.constant dense<0xFF800000> : vector<4x8xf32>
    %45 = vector.multi_reduction <maximumf>, %44, %cst_12 [2] : vector<4x8x8xf32> to vector<4x8xf32>
    %46 = vector.shape_cast %45 : vector<4x8xf32> to vector<4x8x1xf32>
    %47 = vector.broadcast %46 : vector<4x8x1xf32> to vector<4x8x8xf32>
    %48 = arith.subf %44, %47 : vector<4x8x8xf32>
    %49 = math.exp %48 : vector<4x8x8xf32>
    %cst_13 = arith.constant dense<0.000000e+00> : vector<4x8xf32>
    %50 = vector.multi_reduction <add>, %49, %cst_13 [2] : vector<4x8x8xf32> to vector<4x8xf32>
    %51 = vector.shape_cast %50 : vector<4x8xf32> to vector<4x8x1xf32>
    %52 = tpu.reciprocal %51 {approx = true} : vector<4x8x1xf32> -> vector<4x8x1xf32>
    %53 = vector.broadcast %52 : vector<4x8x1xf32> to vector<4x8x8xf32>
    %54 = arith.mulf %49, %53 : vector<4x8x8xf32>
    %55 = arith.truncf %54 : vector<4x8x8xf32> to vector<4x8x8xbf16>
    %56 = arith.truncf %38 : vector<4x8x8xf32> to vector<4x8x8xbf16>
    "tpu.trace_start"() <{level = 10 : i32, message = "hqk,hkd->hqd"}> : () -> ()
    %cst_14 = arith.constant dense<0.000000e+00> : vector<4x8x8xf32>
    %57 = tpu.matmul %55, %56, %cst_14 {dimension_numbers = #tpu.dot_dimension_numbers<[2], [1], [1], [2], [0, 0, 0, 1, 1, 2], [0], [0]>} : vector<4x8x8xbf16>, vector<4x8x8xbf16>, vector<4x8x8xf32> -> vector<4x8x8xf32>
    "tpu.trace_stop"() : () -> ()
    %58 = vector.extract_strided_slice %57 {offsets = [0, 0, 0], sizes = [1, 8, 8], strides = [1, 1, 1]} : vector<4x8x8xf32> to vector<1x8x8xf32>
    %59 = vector.shape_cast %58 : vector<1x8x8xf32> to vector<8x8xf32>
    %60 = vector.extract_strided_slice %57 {offsets = [1, 0, 0], sizes = [1, 8, 8], strides = [1, 1, 1]} : vector<4x8x8xf32> to vector<1x8x8xf32>
    %61 = vector.shape_cast %60 : vector<1x8x8xf32> to vector<8x8xf32>
    %62 = vector.extract_strided_slice %57 {offsets = [2, 0, 0], sizes = [1, 8, 8], strides = [1, 1, 1]} : vector<4x8x8xf32> to vector<1x8x8xf32>
    %63 = vector.shape_cast %62 : vector<1x8x8xf32> to vector<8x8xf32>
    %64 = vector.extract_strided_slice %57 {offsets = [3, 0, 0], sizes = [1, 8, 8], strides = [1, 1, 1]} : vector<4x8x8xf32> to vector<1x8x8xf32>
    %65 = vector.shape_cast %64 : vector<1x8x8xf32> to vector<8x8xf32>
    %66 = tpu.concatenate %59, %61, %63, %65 in 1 : vector<8x8xf32>, vector<8x8xf32>, vector<8x8xf32>, vector<8x8xf32> -> vector<8x32xf32>
    %c0_15 = arith.constant 0 : index
    %c0_16 = arith.constant 0 : index
    %c0_17 = arith.constant 0 : index
    %67 = vector.load %arg8[%c0_15, %c0_16, %c0_17] : memref<1x32x32xbf16, #tpu.memory_space<vmem>>, vector<1x32x32xbf16>
    %68 = vector.shape_cast %67 : vector<1x32x32xbf16> to vector<32x32xbf16>
    %69 = arith.truncf %66 : vector<8x32xf32> to vector<8x32xbf16>
    %cst_18 = arith.constant dense<0.000000e+00> : vector<8x32xf32>
    %70 = tpu.matmul %69, %68, %cst_18 {dimension_numbers = #tpu.dot_dimension_numbers<[1], [0], [0], [1], [0, 0, 1, 1], [], []>} : vector<8x32xbf16>, vector<32x32xbf16>, vector<8x32xf32> -> vector<8x32xf32>
    %c0_19 = arith.constant 0 : index
    %c0_20 = arith.constant 0 : index
    %c0_21 = arith.constant 0 : index
    %71 = vector.load %arg9[%c0_19, %c0_20, %c0_21] : memref<1x1x32xf32, #tpu.memory_space<vmem>>, vector<1x1x32xf32>
    %72 = vector.shape_cast %71 : vector<1x1x32xf32> to vector<1x32xf32>
    %73 = vector.broadcast %72 : vector<1x32xf32> to vector<8x32xf32>
    %74 = arith.addf %70, %73 : vector<8x32xf32>
    %75 = arith.addf %3, %74 : vector<8x32xf32>
    %c0_22 = arith.constant 0 : index
    %c0_23 = arith.constant 0 : index
    %c0_24 = arith.constant 0 : index
    %76 = vector.load %arg10[%c0_22, %c0_23, %c0_24] : memref<1x1x32xf32, #tpu.memory_space<vmem>>, vector<1x1x32xf32>
    %77 = vector.shape_cast %76 : vector<1x1x32xf32> to vector<1x32xf32>
    %c0_25 = arith.constant 0 : index
    %c0_26 = arith.constant 0 : index
    %c0_27 = arith.constant 0 : index
    %78 = vector.load %arg11[%c0_25, %c0_26, %c0_27] : memref<1x1x32xf32, #tpu.memory_space<vmem>>, vector<1x1x32xf32>
    %79 = vector.shape_cast %78 : vector<1x1x32xf32> to vector<1x32xf32>
    %cst_28 = arith.constant dense<0.000000e+00> : vector<8xf32>
    %80 = vector.multi_reduction <add>, %75, %cst_28 [1] : vector<8x32xf32> to vector<8xf32>
    %81 = vector.shape_cast %80 : vector<8xf32> to vector<8x1xf32>
    %cst_29 = arith.constant 3.200000e+01 : f32
    %82 = vector.broadcast %cst_29 : f32 to vector<8x1xf32>
    %83 = arith.divf %81, %82 : vector<8x1xf32>
    %84 = vector.broadcast %83 : vector<8x1xf32> to vector<8x32xf32>
    %85 = arith.subf %75, %84 : vector<8x32xf32>
    %86 = arith.mulf %85, %85 : vector<8x32xf32>
    %cst_30 = arith.constant dense<0.000000e+00> : vector<8xf32>
    %87 = vector.multi_reduction <add>, %86, %cst_30 [1] : vector<8x32xf32> to vector<8xf32>
    %88 = vector.shape_cast %87 : vector<8xf32> to vector<8x1xf32>
    %cst_31 = arith.constant 3.200000e+01 : f32
    %89 = vector.broadcast %cst_31 : f32 to vector<8x1xf32>
    %90 = arith.divf %88, %89 : vector<8x1xf32>
    %91 = vector.broadcast %83 : vector<8x1xf32> to vector<8x32xf32>
    %92 = arith.subf %75, %91 : vector<8x32xf32>
    %cst_32 = arith.constant 9.99999996E-13 : f32
    %93 = vector.broadcast %cst_32 : f32 to vector<8x1xf32>
    %94 = arith.addf %90, %93 : vector<8x1xf32>
    %95 = math.rsqrt %94 : vector<8x1xf32>
    %96 = vector.broadcast %95 : vector<8x1xf32> to vector<8x32xf32>
    %97 = arith.mulf %92, %96 : vector<8x32xf32>
    %98 = vector.broadcast %77 : vector<1x32xf32> to vector<8x32xf32>
    %99 = arith.mulf %97, %98 : vector<8x32xf32>
    %100 = vector.broadcast %79 : vector<1x32xf32> to vector<8x32xf32>
    %101 = arith.addf %99, %100 : vector<8x32xf32>
    %c0_33 = arith.constant 0 : index
    %c0_34 = arith.constant 0 : index
    %c0_35 = arith.constant 0 : index
    %102 = vector.load %arg12[%c0_33, %c0_34, %c0_35] : memref<1x32x64xbf16, #tpu.memory_space<vmem>>, vector<1x32x64xbf16>
    %103 = vector.shape_cast %102 : vector<1x32x64xbf16> to vector<32x64xbf16>
    %104 = arith.truncf %101 : vector<8x32xf32> to vector<8x32xbf16>
    %cst_36 = arith.constant dense<0.000000e+00> : vector<8x64xf32>
    %105 = tpu.matmul %104, %103, %cst_36 {dimension_numbers = #tpu.dot_dimension_numbers<[1], [0], [0], [1], [0, 0, 1, 1], [], []>} : vector<8x32xbf16>, vector<32x64xbf16>, vector<8x64xf32> -> vector<8x64xf32>
    %c0_37 = arith.constant 0 : index
    %c0_38 = arith.constant 0 : index
    %c0_39 = arith.constant 0 : index
    %106 = vector.load %arg13[%c0_37, %c0_38, %c0_39] : memref<1x1x64xf32, #tpu.memory_space<vmem>>, vector<1x1x64xf32>
    %107 = vector.shape_cast %106 : vector<1x1x64xf32> to vector<1x64xf32>
    %108 = vector.broadcast %107 : vector<1x64xf32> to vector<8x64xf32>
    %109 = arith.addf %105, %108 : vector<8x64xf32>
    %cst_40 = arith.constant 5.000000e-01 : f32
    %110 = vector.broadcast %cst_40 : f32 to vector<8x64xf32>
    %111 = arith.mulf %110, %109 : vector<8x64xf32>
    %cst_41 = arith.constant 4.471500e-02 : f32
    %112 = vector.broadcast %cst_41 : f32 to vector<8x64xf32>
    %113 = arith.mulf %112, %109 : vector<8x64xf32>
    %114 = arith.mulf %113, %109 : vector<8x64xf32>
    %115 = arith.mulf %114, %109 : vector<8x64xf32>
    %116 = arith.addf %109, %115 : vector<8x64xf32>
    %cst_42 = arith.constant 0.797884583 : f32
    %117 = vector.broadcast %cst_42 : f32 to vector<8x64xf32>
    %118 = arith.mulf %117, %116 : vector<8x64xf32>
    %119 = math.tanh %118 : vector<8x64xf32>
    %cst_43 = arith.constant 1.000000e+00 : f32
    %120 = vector.broadcast %cst_43 : f32 to vector<8x64xf32>
    %121 = arith.addf %120, %119 : vector<8x64xf32>
    %122 = arith.mulf %111, %121 : vector<8x64xf32>
    %c0_44 = arith.constant 0 : index
    %c0_45 = arith.constant 0 : index
    %c0_46 = arith.constant 0 : index
    %123 = vector.load %arg14[%c0_44, %c0_45, %c0_46] : memref<1x64x32xbf16, #tpu.memory_space<vmem>>, vector<1x64x32xbf16>
    %124 = vector.shape_cast %123 : vector<1x64x32xbf16> to vector<64x32xbf16>
    %125 = arith.truncf %122 : vector<8x64xf32> to vector<8x64xbf16>
    %cst_47 = arith.constant dense<0.000000e+00> : vector<8x32xf32>
    %126 = tpu.matmul %125, %124, %cst_47 {dimension_numbers = #tpu.dot_dimension_numbers<[1], [0], [0], [1], [0, 0, 1, 1], [], []>} : vector<8x64xbf16>, vector<64x32xbf16>, vector<8x32xf32> -> vector<8x32xf32>
    %c0_48 = arith.constant 0 : index
    %c0_49 = arith.constant 0 : index
    %c0_50 = arith.constant 0 : index
    %127 = vector.load %arg15[%c0_48, %c0_49, %c0_50] : memref<1x1x32xf32, #tpu.memory_space<vmem>>, vector<1x1x32xf32>
    %128 = vector.shape_cast %127 : vector<1x1x32xf32> to vector<1x32xf32>
    %129 = vector.broadcast %128 : vector<1x32xf32> to vector<8x32xf32>
    %130 = arith.addf %126, %129 : vector<8x32xf32>
    %131 = arith.addf %101, %130 : vector<8x32xf32>
    %c0_51 = arith.constant 0 : index
    %c0_52 = arith.constant 0 : index
    %c0_53 = arith.constant 0 : index
    %132 = vector.load %arg16[%c0_51, %c0_52, %c0_53] : memref<1x1x32xf32, #tpu.memory_space<vmem>>, vector<1x1x32xf32>
    %133 = vector.shape_cast %132 : vector<1x1x32xf32> to vector<1x32xf32>
    %c0_54 = arith.constant 0 : index
    %c0_55 = arith.constant 0 : index
    %c0_56 = arith.constant 0 : index
    %134 = vector.load %arg17[%c0_54, %c0_55, %c0_56] : memref<1x1x32xf32, #tpu.memory_space<vmem>>, vector<1x1x32xf32>
    %135 = vector.shape_cast %134 : vector<1x1x32xf32> to vector<1x32xf32>
    %cst_57 = arith.constant dense<0.000000e+00> : vector<8xf32>
    %136 = vector.multi_reduction <add>, %131, %cst_57 [1] : vector<8x32xf32> to vector<8xf32>
    %137 = vector.shape_cast %136 : vector<8xf32> to vector<8x1xf32>
    %cst_58 = arith.constant 3.200000e+01 : f32
    %138 = vector.broadcast %cst_58 : f32 to vector<8x1xf32>
    %139 = arith.divf %137, %138 : vector<8x1xf32>
    %140 = vector.broadcast %139 : vector<8x1xf32> to vector<8x32xf32>
    %141 = arith.subf %131, %140 : vector<8x32xf32>
    %142 = arith.mulf %141, %141 : vector<8x32xf32>
    %cst_59 = arith.constant dense<0.000000e+00> : vector<8xf32>
    %143 = vector.multi_reduction <add>, %142, %cst_59 [1] : vector<8x32xf32> to vector<8xf32>
    %144 = vector.shape_cast %143 : vector<8xf32> to vector<8x1xf32>
    %cst_60 = arith.constant 3.200000e+01 : f32
    %145 = vector.broadcast %cst_60 : f32 to vector<8x1xf32>
    %146 = arith.divf %144, %145 : vector<8x1xf32>
    %147 = vector.broadcast %139 : vector<8x1xf32> to vector<8x32xf32>
    %148 = arith.subf %131, %147 : vector<8x32xf32>
    %cst_61 = arith.constant 9.99999996E-13 : f32
    %149 = vector.broadcast %cst_61 : f32 to vector<8x1xf32>
    %150 = arith.addf %146, %149 : vector<8x1xf32>
    %151 = math.rsqrt %150 : vector<8x1xf32>
    %152 = vector.broadcast %151 : vector<8x1xf32> to vector<8x32xf32>
    %153 = arith.mulf %148, %152 : vector<8x32xf32>
    %154 = vector.broadcast %133 : vector<1x32xf32> to vector<8x32xf32>
    %155 = arith.mulf %153, %154 : vector<8x32xf32>
    %156 = vector.broadcast %135 : vector<1x32xf32> to vector<8x32xf32>
    %157 = arith.addf %155, %156 : vector<8x32xf32>
    %c0_62 = arith.constant 0 : index
    %c0_63 = arith.constant 0 : index
    %158 = vector.load %arg18[%c0_62, %c0_63] : memref<8x32xf32, #tpu.memory_space<vmem>>, vector<8x32xf32>
    tpu.vector_store %arg18[%c0_62, %c0_63], %157 {strides = array<i32>} : memref<8x32xf32, #tpu.memory_space<vmem>>, vector<8x32xf32>,
    return
  }
  func.func @transform_0(%arg0: i32, %arg1: i32) -> (i32, i32) {
    %c0_i32 = arith.constant 0 : i32
    %c0_i32_0 = arith.constant 0 : i32
    return %arg0, %c0_i32 : i32, i32
  }
  func.func @transform_1(%arg0: i32, %arg1: i32) -> (i32, i32, i32) {
    %c0_i32 = arith.constant 0 : i32
    %c0_i32_0 = arith.constant 0 : i32
    %c0_i32_1 = arith.constant 0 : i32
    return %arg0, %c0_i32, %c0_i32_0 : i32, i32, i32
  }
  func.func @transform_2(%arg0: i32, %arg1: i32) -> (i32, i32) {
    %c0_i32 = arith.constant 0 : i32
    %c0_i32_0 = arith.constant 0 : i32
    %c0_i32_1 = arith.constant 0 : i32
    return %c0_i32, %c0_i32_0 : i32, i32
  }
  func.func @transform_3(%arg0: i32, %arg1: i32) -> (i32, i32) {
    %c0_i32 = arith.constant 0 : i32
    %c0_i32_0 = arith.constant 0 : i32
    %c0_i32_1 = arith.constant 0 : i32
    return %c0_i32, %c0_i32_0 : i32, i32
  }
  func.func @transform_4(%arg0: i32, %arg1: i32) -> (i32, i32, i32) {
    %c0_i32 = arith.constant 0 : i32
    %c0_i32_0 = arith.constant 0 : i32
    %c0_i32_1 = arith.constant 0 : i32
    return %arg1, %c0_i32, %c0_i32_0 : i32, i32, i32
  }
  func.func @transform_5(%arg0: i32, %arg1: i32) -> (i32, i32, i32) {
    %c0_i32 = arith.constant 0 : i32
    %c0_i32_0 = arith.constant 0 : i32
    %c0_i32_1 = arith.constant 0 : i32
    return %arg1, %c0_i32, %c0_i32_0 : i32, i32, i32
  }
  func.func @transform_6(%arg0: i32, %arg1: i32) -> (i32, i32, i32) {
    %c0_i32 = arith.constant 0 : i32
    %c0_i32_0 = arith.constant 0 : i32
    %c0_i32_1 = arith.constant 0 : i32
    return %arg1, %c0_i32, %c0_i32_0 : i32, i32, i32
  }
  func.func @transform_7(%arg0: i32, %arg1: i32) -> (i32, i32, i32) {
    %c0_i32 = arith.constant 0 : i32
    %c0_i32_0 = arith.constant 0 : i32
    %c0_i32_1 = arith.constant 0 : i32
    return %arg1, %c0_i32, %c0_i32_0 : i32, i32, i32
  }
  func.func @transform_8(%arg0: i32, %arg1: i32) -> (i32, i32, i32) {
    %c0_i32 = arith.constant 0 : i32
    %c0_i32_0 = arith.constant 0 : i32
    %c0_i32_1 = arith.constant 0 : i32
    return %arg1, %c0_i32, %c0_i32_0 : i32, i32, i32
  }
  func.func @transform_9(%arg0: i32, %arg1: i32) -> (i32, i32, i32) {
    %c0_i32 = arith.constant 0 : i32
    %c0_i32_0 = arith.constant 0 : i32
    %c0_i32_1 = arith.constant 0 : i32
    return %arg1, %c0_i32, %c0_i32_0 : i32, i32, i32
  }
  func.func @transform_10(%arg0: i32, %arg1: i32) -> (i32, i32, i32) {
    %c0_i32 = arith.constant 0 : i32
    %c0_i32_0 = arith.constant 0 : i32
    %c0_i32_1 = arith.constant 0 : i32
    return %arg1, %c0_i32, %c0_i32_0 : i32, i32, i32
  }
  func.func @transform_11(%arg0: i32, %arg1: i32) -> (i32, i32, i32) {
    %c0_i32 = arith.constant 0 : i32
    %c0_i32_0 = arith.constant 0 : i32
    %c0_i32_1 = arith.constant 0 : i32
    return %arg1, %c0_i32, %c0_i32_0 : i32, i32, i32
  }
  func.func @transform_12(%arg0: i32, %arg1: i32) -> (i32, i32, i32) {
    %c0_i32 = arith.constant 0 : i32
    %c0_i32_0 = arith.constant 0 : i32
    %c0_i32_1 = arith.constant 0 : i32
    return %arg1, %c0_i32, %c0_i32_0 : i32, i32, i32
  }
  func.func @transform_13(%arg0: i32, %arg1: i32) -> (i32, i32, i32) {
    %c0_i32 = arith.constant 0 : i32
    %c0_i32_0 = arith.constant 0 : i32
    %c0_i32_1 = arith.constant 0 : i32
    return %arg1, %c0_i32, %c0_i32_0 : i32, i32, i32
  }
  func.func @transform_14(%arg0: i32, %arg1: i32) -> (i32, i32, i32) {
    %c0_i32 = arith.constant 0 : i32
    %c0_i32_0 = arith.constant 0 : i32
    %c0_i32_1 = arith.constant 0 : i32
    return %arg1, %c0_i32, %c0_i32_0 : i32, i32, i32
  }
  func.func @transform_15(%arg0: i32, %arg1: i32) -> (i32, i32, i32) {
    %c0_i32 = arith.constant 0 : i32
    %c0_i32_0 = arith.constant 0 : i32
    %c0_i32_1 = arith.constant 0 : i32
    return %arg1, %c0_i32, %c0_i32_0 : i32, i32, i32
  }
  func.func @transform_16(%arg0: i32, %arg1: i32) -> (i32, i32) {
    %c0_i32 = arith.constant 0 : i32
    %c0_i32_0 = arith.constant 0 : i32
    return %arg0, %c0_i32 : i32, i32
  }
}

module attributes {stable_mosaic.version = 11 : i64} {
  func.func @_mlm_head_ce_kernel(%arg0: i32, %arg1: memref<16x32xf32, #tpu.memory_space<vmem>>, %arg2: memref<16x1xi32, #tpu.memory_space<vmem>>, %arg3: memref<32x32xbf16, #tpu.memory_space<vmem>>, %arg4: memref<1x32xf32, #tpu.memory_space<vmem>>, %arg5: memref<1x32xf32, #tpu.memory_space<vmem>>, %arg6: memref<1x32xf32, #tpu.memory_space<vmem>>, %arg7: memref<32x128xbf16, #tpu.memory_space<vmem>>, %arg8: memref<1x128xf32, #tpu.memory_space<vmem>>, %arg9: memref<1x1xf32, #tpu.memory_space<vmem>>, %arg10: memref<16x32xf32, #tpu.memory_space<vmem>>, %arg11: memref<16x1xf32, #tpu.memory_space<vmem>>, %arg12: memref<16x1xf32, #tpu.memory_space<vmem>>, %arg13: memref<16x1xf32, #tpu.memory_space<vmem>>) attributes {dimension_semantics = [#tpu.dimension_semantics<arbitrary>], iteration_bounds = array<i64: 2>, scalar_prefetch = 0 : i64, scratch_operands = 4 : i64, tpu.core_type = #tpu.core_type<tc>, window_params = [{pipeline_mode = #tpu.pipeline_mode<synchronous>, transform_indices = @transform_0, window_bounds = array<i64: 16, 32>}, {pipeline_mode = #tpu.pipeline_mode<synchronous>, transform_indices = @transform_1, window_bounds = array<i64: 16, 1>}, {pipeline_mode = #tpu.pipeline_mode<synchronous>, transform_indices = @transform_2, window_bounds = array<i64: 32, 32>}, {pipeline_mode = #tpu.pipeline_mode<synchronous>, transform_indices = @transform_3, window_bounds = array<i64: 1, 32>}, {pipeline_mode = #tpu.pipeline_mode<synchronous>, transform_indices = @transform_4, window_bounds = array<i64: 1, 32>}, {pipeline_mode = #tpu.pipeline_mode<synchronous>, transform_indices = @transform_5, window_bounds = array<i64: 1, 32>}, {transform_indices = @transform_6, window_bounds = array<i64: 32, 128>}, {transform_indices = @transform_7, window_bounds = array<i64: 1, 128>}, {pipeline_mode = #tpu.pipeline_mode<synchronous>, transform_indices = @transform_8, window_bounds = array<i64: 1, 1>}]} {
    %c0_i32 = arith.constant 0 : i32
    %0 = arith.cmpi eq, %arg0, %c0_i32 : i32
    %1 = arith.extui %0 : i1 to i32
    %c0_i32_0 = arith.constant 0 : i32
    %2 = arith.cmpi ne, %1, %c0_i32_0 : i32
    scf.if %2 {
      %c0_25 = arith.constant 0 : index
      %c0_26 = arith.constant 0 : index
      %43 = vector.load %arg1[%c0_25, %c0_26] : memref<16x32xf32, #tpu.memory_space<vmem>>, vector<16x32xf32>
      %c0_27 = arith.constant 0 : index
      %c0_28 = arith.constant 0 : index
      %44 = vector.load %arg3[%c0_27, %c0_28] : memref<32x32xbf16, #tpu.memory_space<vmem>>, vector<32x32xbf16>
      %45 = arith.truncf %43 : vector<16x32xf32> to vector<16x32xbf16>
      %cst_29 = arith.constant dense<0.000000e+00> : vector<16x32xf32>
      %46 = tpu.matmul %45, %44, %cst_29 {dimension_numbers = #tpu.dot_dimension_numbers<[1], [0], [0], [1], [0, 0, 1, 1], [], []>} : vector<16x32xbf16>, vector<32x32xbf16>, vector<16x32xf32> -> vector<16x32xf32>
      %c0_30 = arith.constant 0 : index
      %c0_31 = arith.constant 0 : index
      %47 = vector.load %arg4[%c0_30, %c0_31] : memref<1x32xf32, #tpu.memory_space<vmem>>, vector<1x32xf32>
      %48 = vector.broadcast %47 : vector<1x32xf32> to vector<16x32xf32>
      %49 = arith.addf %46, %48 : vector<16x32xf32>
      %cst_32 = arith.constant 5.000000e-01 : f32
      %50 = vector.broadcast %cst_32 : f32 to vector<16x32xf32>
      %51 = arith.mulf %50, %49 : vector<16x32xf32>
      %cst_33 = arith.constant 4.471500e-02 : f32
      %52 = vector.broadcast %cst_33 : f32 to vector<16x32xf32>
      %53 = arith.mulf %52, %49 : vector<16x32xf32>
      %54 = arith.mulf %53, %49 : vector<16x32xf32>
      %55 = arith.mulf %54, %49 : vector<16x32xf32>
      %56 = arith.addf %49, %55 : vector<16x32xf32>
      %cst_34 = arith.constant 0.797884583 : f32
      %57 = vector.broadcast %cst_34 : f32 to vector<16x32xf32>
      %58 = arith.mulf %57, %56 : vector<16x32xf32>
      %59 = math.tanh %58 : vector<16x32xf32>
      %cst_35 = arith.constant 1.000000e+00 : f32
      %60 = vector.broadcast %cst_35 : f32 to vector<16x32xf32>
      %61 = arith.addf %60, %59 : vector<16x32xf32>
      %62 = arith.mulf %51, %61 : vector<16x32xf32>
      %c0_36 = arith.constant 0 : index
      %c0_37 = arith.constant 0 : index
      %63 = vector.load %arg5[%c0_36, %c0_37] : memref<1x32xf32, #tpu.memory_space<vmem>>, vector<1x32xf32>
      %c0_38 = arith.constant 0 : index
      %c0_39 = arith.constant 0 : index
      %64 = vector.load %arg6[%c0_38, %c0_39] : memref<1x32xf32, #tpu.memory_space<vmem>>, vector<1x32xf32>
      %cst_40 = arith.constant dense<0.000000e+00> : vector<16xf32>
      %65 = vector.multi_reduction <add>, %62, %cst_40 [1] : vector<16x32xf32> to vector<16xf32>
      %66 = vector.shape_cast %65 : vector<16xf32> to vector<16x1xf32>
      %cst_41 = arith.constant 3.200000e+01 : f32
      %67 = vector.broadcast %cst_41 : f32 to vector<16x1xf32>
      %68 = arith.divf %66, %67 : vector<16x1xf32>
      %69 = vector.broadcast %68 : vector<16x1xf32> to vector<16x32xf32>
      %70 = arith.subf %62, %69 : vector<16x32xf32>
      %71 = arith.mulf %70, %70 : vector<16x32xf32>
      %cst_42 = arith.constant dense<0.000000e+00> : vector<16xf32>
      %72 = vector.multi_reduction <add>, %71, %cst_42 [1] : vector<16x32xf32> to vector<16xf32>
      %73 = vector.shape_cast %72 : vector<16xf32> to vector<16x1xf32>
      %cst_43 = arith.constant 3.200000e+01 : f32
      %74 = vector.broadcast %cst_43 : f32 to vector<16x1xf32>
      %75 = arith.divf %73, %74 : vector<16x1xf32>
      %76 = vector.broadcast %68 : vector<16x1xf32> to vector<16x32xf32>
      %77 = arith.subf %62, %76 : vector<16x32xf32>
      %cst_44 = arith.constant 9.99999996E-13 : f32
      %78 = vector.broadcast %cst_44 : f32 to vector<16x1xf32>
      %79 = arith.addf %75, %78 : vector<16x1xf32>
      %80 = math.rsqrt %79 : vector<16x1xf32>
      %81 = vector.broadcast %80 : vector<16x1xf32> to vector<16x32xf32>
      %82 = arith.mulf %77, %81 : vector<16x32xf32>
      %83 = vector.broadcast %63 : vector<1x32xf32> to vector<16x32xf32>
      %84 = arith.mulf %82, %83 : vector<16x32xf32>
      %85 = vector.broadcast %64 : vector<1x32xf32> to vector<16x32xf32>
      %86 = arith.addf %84, %85 : vector<16x32xf32>
      %c0_45 = arith.constant 0 : index
      %c0_46 = arith.constant 0 : index
      %87 = vector.load %arg10[%c0_45, %c0_46] : memref<16x32xf32, #tpu.memory_space<vmem>>, vector<16x32xf32>
      tpu.vector_store %arg10[%c0_45, %c0_46], %86 {strides = array<i32>} : memref<16x32xf32, #tpu.memory_space<vmem>>, vector<16x32xf32>,
      %cst_47 = arith.constant 0xFF800000 : f32
      %88 = vector.broadcast %cst_47 : f32 to vector<16x1xf32>
      %c0_48 = arith.constant 0 : index
      %c0_49 = arith.constant 0 : index
      %89 = vector.load %arg11[%c0_48, %c0_49] : memref<16x1xf32, #tpu.memory_space<vmem>>, vector<16x1xf32>
      tpu.vector_store %arg11[%c0_48, %c0_49], %88 {strides = array<i32>} : memref<16x1xf32, #tpu.memory_space<vmem>>, vector<16x1xf32>,
      %cst_50 = arith.constant 0.000000e+00 : f32
      %90 = vector.broadcast %cst_50 : f32 to vector<16x1xf32>
      %c0_51 = arith.constant 0 : index
      %c0_52 = arith.constant 0 : index
      %91 = vector.load %arg12[%c0_51, %c0_52] : memref<16x1xf32, #tpu.memory_space<vmem>>, vector<16x1xf32>
      tpu.vector_store %arg12[%c0_51, %c0_52], %90 {strides = array<i32>} : memref<16x1xf32, #tpu.memory_space<vmem>>, vector<16x1xf32>,
      %cst_53 = arith.constant 0.000000e+00 : f32
      %92 = vector.broadcast %cst_53 : f32 to vector<16x1xf32>
      %c0_54 = arith.constant 0 : index
      %c0_55 = arith.constant 0 : index
      %93 = vector.load %arg13[%c0_54, %c0_55] : memref<16x1xf32, #tpu.memory_space<vmem>>, vector<16x1xf32>
      tpu.vector_store %arg13[%c0_54, %c0_55], %92 {strides = array<i32>} : memref<16x1xf32, #tpu.memory_space<vmem>>, vector<16x1xf32>,
    } else {
    }
    %c0 = arith.constant 0 : index
    %c0_1 = arith.constant 0 : index
    %3 = vector.load %arg10[%c0, %c0_1] : memref<16x32xf32, #tpu.memory_space<vmem>>, vector<16x32xf32>
    %c0_2 = arith.constant 0 : index
    %c0_3 = arith.constant 0 : index
    %4 = vector.load %arg7[%c0_2, %c0_3] : memref<32x128xbf16, #tpu.memory_space<vmem>>, vector<32x128xbf16>
    %5 = arith.truncf %3 : vector<16x32xf32> to vector<16x32xbf16>
    %cst = arith.constant dense<0.000000e+00> : vector<16x128xf32>
    %6 = tpu.matmul %5, %4, %cst {dimension_numbers = #tpu.dot_dimension_numbers<[1], [0], [0], [1], [0, 0, 1, 1], [], []>} : vector<16x32xbf16>, vector<32x128xbf16>, vector<16x128xf32> -> vector<16x128xf32>
    %c0_4 = arith.constant 0 : index
    %c0_5 = arith.constant 0 : index
    %7 = vector.load %arg8[%c0_4, %c0_5] : memref<1x128xf32, #tpu.memory_space<vmem>>, vector<1x128xf32>
    %8 = vector.broadcast %7 : vector<1x128xf32> to vector<16x128xf32>
    %9 = arith.addf %6, %8 : vector<16x128xf32>
    %c0_6 = arith.constant 0 : index
    %c0_7 = arith.constant 0 : index
    %10 = vector.load %arg11[%c0_6, %c0_7] : memref<16x1xf32, #tpu.memory_space<vmem>>, vector<16x1xf32>
    %cst_8 = arith.constant dense<0xFF800000> : vector<16xf32>
    %11 = vector.multi_reduction <maximumf>, %9, %cst_8 [1] : vector<16x128xf32> to vector<16xf32>
    %12 = vector.shape_cast %11 : vector<16xf32> to vector<16x1xf32>
    %13 = arith.maximumf %10, %12 : vector<16x1xf32>
    %14 = arith.subf %10, %13 : vector<16x1xf32>
    %15 = math.exp %14 : vector<16x1xf32>
    %c0_9 = arith.constant 0 : index
    %c0_10 = arith.constant 0 : index
    %16 = vector.load %arg12[%c0_9, %c0_10] : memref<16x1xf32, #tpu.memory_space<vmem>>, vector<16x1xf32>
    %17 = arith.mulf %15, %16 : vector<16x1xf32>
    %18 = vector.broadcast %13 : vector<16x1xf32> to vector<16x128xf32>
    %19 = arith.subf %9, %18 : vector<16x128xf32>
    %20 = math.exp %19 : vector<16x128xf32>
    %cst_11 = arith.constant dense<0.000000e+00> : vector<16xf32>
    %21 = vector.multi_reduction <add>, %20, %cst_11 [1] : vector<16x128xf32> to vector<16xf32>
    %22 = vector.shape_cast %21 : vector<16xf32> to vector<16x1xf32>
    %23 = arith.addf %17, %22 : vector<16x1xf32>
    %c0_12 = arith.constant 0 : index
    %c0_13 = arith.constant 0 : index
    %24 = vector.load %arg12[%c0_12, %c0_13] : memref<16x1xf32, #tpu.memory_space<vmem>>, vector<16x1xf32>
    tpu.vector_store %arg12[%c0_12, %c0_13], %23 {strides = array<i32>} : memref<16x1xf32, #tpu.memory_space<vmem>>, vector<16x1xf32>,
    %c0_14 = arith.constant 0 : index
    %c0_15 = arith.constant 0 : index
    %25 = vector.load %arg11[%c0_14, %c0_15] : memref<16x1xf32, #tpu.memory_space<vmem>>, vector<16x1xf32>
    tpu.vector_store %arg11[%c0_14, %c0_15], %13 {strides = array<i32>} : memref<16x1xf32, #tpu.memory_space<vmem>>, vector<16x1xf32>,
    %26 = tpu.iota {dimensions = array<i32: 1>} : vector<16x128xi32>
    %c128_i32 = arith.constant 128 : i32
    %27 = arith.muli %arg0, %c128_i32 : i32
    %28 = vector.broadcast %27 : i32 to vector<16x128xi32>
    %29 = arith.addi %26, %28 : vector<16x128xi32>
    %c0_16 = arith.constant 0 : index
    %c0_17 = arith.constant 0 : index
    %30 = vector.load %arg13[%c0_16, %c0_17] : memref<16x1xf32, #tpu.memory_space<vmem>>, vector<16x1xf32>
    %c0_18 = arith.constant 0 : index
    %c0_19 = arith.constant 0 : index
    %31 = vector.load %arg2[%c0_18, %c0_19] : memref<16x1xi32, #tpu.memory_space<vmem>>, vector<16x1xi32>
    %32 = vector.broadcast %31 : vector<16x1xi32> to vector<16x128xi32>
    %33 = arith.cmpi eq, %29, %32 : vector<16x128xi32>
    %cst_20 = arith.constant 0.000000e+00 : f32
    %34 = vector.broadcast %cst_20 : f32 to vector<16x128xf32>
    %35 = arith.select %33, %9, %34 : vector<16x128xi1>, vector<16x128xf32>
    %cst_21 = arith.constant dense<0.000000e+00> : vector<16xf32>
    %36 = vector.multi_reduction <add>, %35, %cst_21 [1] : vector<16x128xf32> to vector<16xf32>
    %37 = vector.shape_cast %36 : vector<16xf32> to vector<16x1xf32>
    %38 = arith.addf %30, %37 : vector<16x1xf32>
    %c0_22 = arith.constant 0 : index
    %c0_23 = arith.constant 0 : index
    %39 = vector.load %arg13[%c0_22, %c0_23] : memref<16x1xf32, #tpu.memory_space<vmem>>, vector<16x1xf32>
    tpu.vector_store %arg13[%c0_22, %c0_23], %38 {strides = array<i32>} : memref<16x1xf32, #tpu.memory_space<vmem>>, vector<16x1xf32>,
    %c1_i32 = arith.constant 1 : i32
    %40 = arith.cmpi eq, %arg0, %c1_i32 : i32
    %41 = arith.extui %40 : i1 to i32
    %c0_i32_24 = arith.constant 0 : i32
    %42 = arith.cmpi ne, %41, %c0_i32_24 : i32
    scf.if %42 {
      %c0_25 = arith.constant 0 : index
      %c0_26 = arith.constant 0 : index
      %43 = vector.load %arg11[%c0_25, %c0_26] : memref<16x1xf32, #tpu.memory_space<vmem>>, vector<16x1xf32>
      %c0_27 = arith.constant 0 : index
      %c0_28 = arith.constant 0 : index
      %44 = vector.load %arg12[%c0_27, %c0_28] : memref<16x1xf32, #tpu.memory_space<vmem>>, vector<16x1xf32>
      %45 = math.log %44 : vector<16x1xf32>
      %46 = arith.addf %43, %45 : vector<16x1xf32>
      %c0_29 = arith.constant 0 : index
      %c0_30 = arith.constant 0 : index
      %47 = vector.load %arg13[%c0_29, %c0_30] : memref<16x1xf32, #tpu.memory_space<vmem>>, vector<16x1xf32>
      %48 = arith.subf %46, %47 : vector<16x1xf32>
      %cst_31 = arith.constant dense<0.000000e+00> : vector<1xf32>
      %49 = vector.multi_reduction <add>, %48, %cst_31 [0] : vector<16x1xf32> to vector<1xf32>
      %50 = vector.shape_cast %49 : vector<1xf32> to vector<1x1xf32>
      %cst_32 = arith.constant 6.250000e-02 : f32
      %51 = vector.broadcast %cst_32 : f32 to vector<1x1xf32>
      %52 = arith.mulf %50, %51 : vector<1x1xf32>
      %c0_33 = arith.constant 0 : index
      %c0_34 = arith.constant 0 : index
      %53 = vector.load %arg9[%c0_33, %c0_34] : memref<1x1xf32, #tpu.memory_space<vmem>>, vector<1x1xf32>
      tpu.vector_store %arg9[%c0_33, %c0_34], %52 {strides = array<i32>} : memref<1x1xf32, #tpu.memory_space<vmem>>, vector<1x1xf32>,
    } else {
    }
    return
  }
  func.func @transform_0(%arg0: i32) -> (i32, i32) {
    %c0_i32 = arith.constant 0 : i32
    %c0_i32_0 = arith.constant 0 : i32
    %c0_i32_1 = arith.constant 0 : i32
    return %c0_i32, %c0_i32_0 : i32, i32
  }
  func.func @transform_1(%arg0: i32) -> (i32, i32) {
    %c0_i32 = arith.constant 0 : i32
    %c0_i32_0 = arith.constant 0 : i32
    %c0_i32_1 = arith.constant 0 : i32
    return %c0_i32, %c0_i32_0 : i32, i32
  }
  func.func @transform_2(%arg0: i32) -> (i32, i32) {
    %c0_i32 = arith.constant 0 : i32
    %c0_i32_0 = arith.constant 0 : i32
    %c0_i32_1 = arith.constant 0 : i32
    return %c0_i32, %c0_i32_0 : i32, i32
  }
  func.func @transform_3(%arg0: i32) -> (i32, i32) {
    %c0_i32 = arith.constant 0 : i32
    %c0_i32_0 = arith.constant 0 : i32
    %c0_i32_1 = arith.constant 0 : i32
    return %c0_i32, %c0_i32_0 : i32, i32
  }
  func.func @transform_4(%arg0: i32) -> (i32, i32) {
    %c0_i32 = arith.constant 0 : i32
    %c0_i32_0 = arith.constant 0 : i32
    %c0_i32_1 = arith.constant 0 : i32
    return %c0_i32, %c0_i32_0 : i32, i32
  }
  func.func @transform_5(%arg0: i32) -> (i32, i32) {
    %c0_i32 = arith.constant 0 : i32
    %c0_i32_0 = arith.constant 0 : i32
    %c0_i32_1 = arith.constant 0 : i32
    return %c0_i32, %c0_i32_0 : i32, i32
  }
  func.func @transform_6(%arg0: i32) -> (i32, i32) {
    %c0_i32 = arith.constant 0 : i32
    %c0_i32_0 = arith.constant 0 : i32
    return %c0_i32, %arg0 : i32, i32
  }
  func.func @transform_7(%arg0: i32) -> (i32, i32) {
    %c0_i32 = arith.constant 0 : i32
    %c0_i32_0 = arith.constant 0 : i32
    return %c0_i32, %arg0 : i32, i32
  }
  func.func @transform_8(%arg0: i32) -> (i32, i32) {
    %c0_i32 = arith.constant 0 : i32
    %c0_i32_0 = arith.constant 0 : i32
    %c0_i32_1 = arith.constant 0 : i32
    return %c0_i32, %c0_i32_0 : i32, i32
  }
}

</mosaic_0001>

<llo_original>
// kernel: _lambda_.2
$region0: #{_lambda_.2}
  #allocation0 [shape = 'u32[]', space=smem, size = 0x4, offset = 0x4, fixed_abs, tag = 'smem constant byte address 0x4 - core index']
  #allocation1 [shape = 'u32[144,128]{1,0:T(1,128)}', space=vmem, size = 0x12000, scoped, tag = 'internal scratch']
  %s0 = inlined_call_operand.vmem [shape: f32[16,32], index: 0, kind: input, shape index: {}]
  %s1 = inlined_call_operand.vmem [shape: f32[2,1,8], index: 1, kind: input, shape index: {}]
  %s2 = inlined_call_operand.vmem [shape: f32[1,32], index: 2, kind: input, shape index: {}]
  %s3 = inlined_call_operand.vmem [shape: f32[1,32], index: 3, kind: input, shape index: {}]
  %s4 = inlined_call_operand.vmem [shape: bf16[2,32,96], index: 4, kind: input, shape index: {}]
  %s5 = inlined_call_operand.vmem [shape: f32[2,1,96], index: 5, kind: input, shape index: {}]
  %s6 = inlined_call_operand.vmem [shape: bf16[2,32,32], index: 6, kind: input, shape index: {}]
  %s7 = inlined_call_operand.vmem [shape: f32[2,1,32], index: 7, kind: input, shape index: {}]
  %s8 = inlined_call_operand.vmem [shape: f32[2,1,32], index: 8, kind: input, shape index: {}]
  %s9 = inlined_call_operand.vmem [shape: f32[2,1,32], index: 9, kind: input, shape index: {}]
  %s10 = inlined_call_operand.vmem [shape: bf16[2,32,64], index: 10, kind: input, shape index: {}]
  %s11 = inlined_call_operand.vmem [shape: f32[2,1,64], index: 11, kind: input, shape index: {}]
  %s12 = inlined_call_operand.vmem [shape: bf16[2,64,32], index: 12, kind: input, shape index: {}]
  %s13 = inlined_call_operand.vmem [shape: f32[2,1,32], index: 13, kind: input, shape index: {}]
  %s14 = inlined_call_operand.vmem [shape: f32[2,1,32], index: 14, kind: input, shape index: {}]
  %s15 = inlined_call_operand.vmem [shape: f32[2,1,32], index: 15, kind: input, shape index: {}]
  %s16 = inlined_call_operand.vmem [shape: f32[16,32], index: 16, kind: output, shape index: {}]
  %s17 = sld [smem:[#allocation0]]
  $region101: #{_lambda_.2} parent=0
    _
  %s19 = ssub.s32 1, %s17
  %s20 = scalar_select 0, %s19, %s17
  loop: start=0, step=1, limit=6
  $region2: #{_lambda_.2} parent=0 // loop_pre_header
    _
  $region3: #{_lambda_.2} parent=0 // loop_header
    %s22 = sphi 0, %s26
    %p23 = scmp.ge.s32.totalorder %s22, 6
    %s29 = sphi 0, %s41
    %s30 = sphi 0, %s37
    %s31 = sphi 0, %s29
    %s32 = sphi 0, %s30
    %s33 = sphi 0, %s31
    %s34 = sphi 0, %s32
    %s44 = sphi 0, %s46
    %s47 = sphi 0, %s44
    %s48 = sphi 0, %s47
    %s64 = sphi 0, %s48
    %s70 = sphi 0, %s72
    %s73 = sphi 0, %s70
    %s74 = sphi 0, %s73
    %s90 = sphi 0, %s74
    %s94 = sphi 0, %s94
    %s96 = sphi 0, %s94
    %s97 = sphi 0, %s96
    %s111 = sphi 0, %s97
    %s115 = sphi 0, %s115
    %s117 = sphi 0, %s115
    %s118 = sphi 0, %s117
    %s132 = sphi 0, %s118
    %s138 = sphi 0, %s140
    %s141 = sphi 0, %s138
    %s142 = sphi 0, %s141
    %s158 = sphi 0, %s142
    %s164 = sphi 0, %s166
    %s167 = sphi 0, %s164
    %s168 = sphi 0, %s167
    %s184 = sphi 0, %s168
    %s190 = sphi 0, %s192
    %s193 = sphi 0, %s190
    %s194 = sphi 0, %s193
    %s210 = sphi 0, %s194
    %s216 = sphi 0, %s218
    %s219 = sphi 0, %s216
    %s220 = sphi 0, %s219
    %s236 = sphi 0, %s220
    %s242 = sphi 0, %s244
    %s245 = sphi 0, %s242
    %s246 = sphi 0, %s245
    %s262 = sphi 0, %s246
    %s268 = sphi 0, %s270
    %s271 = sphi 0, %s268
    %s272 = sphi 0, %s271
    %s288 = sphi 0, %s272
    %s294 = sphi 0, %s296
    %s297 = sphi 0, %s294
    %s298 = sphi 0, %s297
    %s314 = sphi 0, %s298
    %s320 = sphi 0, %s322
    %s323 = sphi 0, %s320
    %s324 = sphi 0, %s323
    %s340 = sphi 0, %s324
    %s346 = sphi 0, %s348
    %s349 = sphi 0, %s346
    %s350 = sphi 0, %s349
    %s366 = sphi 0, %s350
    %s372 = sphi 0, %s374
    %s375 = sphi 0, %s372
    %s376 = sphi 0, %s375
    %s392 = sphi 0, %s376
    %s398 = sphi 0, %s400
    %s401 = sphi 0, %s398
    %s402 = sphi 0, %s401
    %s418 = sphi 0, %s402
    %s424 = sphi 0, %s426
    %s427 = sphi 0, %s424
    %s428 = sphi 0, %s427
    %s444 = sphi 0, %s428
    %s450 = sphi 0, %s452
    %s453 = sphi 0, %s450
    %s454 = sphi 0, %s453
    %s470 = sphi 0, %s454
  $region4: #{_lambda_.2} parent=0 // loop_header_branch
    %25 = sbr.rel (%p23) target = $region8
  $region5: #{_lambda_.2} parent=0 // loop_body
    %s27 = ssub.s32 %s22, 1
    %s28 = ssub.s32 %s22, 2
    %s35 = sadd.s32 1, %s30
    %p36 = scmp.ge.s32.totalorder %s35, 2
    %s37 = scalar_select %p36, 0, %s35
    %s38 = sadd.s32 1, %s29
    %s39 = scalar_select %p36, %s38, %s29
    %p40 = scmp.ge.s32.totalorder %s39, 2
    %s41 = scalar_select %p40, 0, %s39
    %s42 = ssub.s32 %s29, %s41
    %p43 = scmp.eq.s32.totalorder %s42, 0
    %s45 = sadd.s32 %s44, 1
    %s46 = scalar_select %p43, %s44, %s45
    %p49 = pneg %p43
    %p50 = scmp.eq.s32.totalorder %s22, 3
    %p51 = por %p49, %p50
    %p52 = scmp.ne.s32.totalorder %s44, %s47
    %p53 = scmp.eq.s32.totalorder %s22, 0
    %p54 = por %p52, %p53
    %p55 = scmp.ne.s32.totalorder %s44, %s47
    %p56 = scmp.eq.s32.totalorder %s27, 3
    %p57 = por %p55, %p56
    %p58 = scmp.ne.s32.totalorder %s47, %s48
    %p59 = scmp.eq.s32.totalorder %s27, 0
    %p60 = por %p58, %p59
    %p61 = scmp.ne.s32.totalorder %s47, %s48
    %p62 = scmp.eq.s32.totalorder %s28, 3
    %p63 = por %p61, %p62
    %p65 = scmp.ne.s32.totalorder %s48, %s64
    %p66 = scmp.eq.s32.totalorder %s28, 0
    %p67 = por %p65, %p66
    %s68 = ssub.s32 %s29, %s41
    %p69 = scmp.eq.s32.totalorder %s68, 0
    %s71 = sadd.s32 %s70, 1
    %s72 = scalar_select %p69, %s70, %s71
    %p75 = pneg %p69
    %p76 = scmp.eq.s32.totalorder %s22, 3
    %p77 = por %p75, %p76
    %p78 = scmp.ne.s32.totalorder %s70, %s73
    %p79 = scmp.eq.s32.totalorder %s22, 0
    %p80 = por %p78, %p79
    %p81 = scmp.ne.s32.totalorder %s70, %s73
    %p82 = scmp.eq.s32.totalorder %s27, 3
    %p83 = por %p81, %p82
    %p84 = scmp.ne.s32.totalorder %s73, %s74
    %p85 = scmp.eq.s32.totalorder %s27, 0
    %p86 = por %p84, %p85
    %p87 = scmp.ne.s32.totalorder %s73, %s74
    %p88 = scmp.eq.s32.totalorder %s28, 3
    %p89 = por %p87, %p88
    %p91 = scmp.ne.s32.totalorder %s74, %s90
    %p92 = scmp.eq.s32.totalorder %s28, 0
    %p93 = por %p91, %p92
    %s95 = sadd.s32 %s94, 1
    %p98 = scmp.eq.s32.totalorder %s22, 3
    %p99 = scmp.ne.s32.totalorder %s94, %s96
    %p100 = scmp.eq.s32.totalorder %s22, 0
    %p101 = por %p99, %p100
    %p102 = scmp.ne.s32.totalorder %s94, %s96
    %p103 = scmp.eq.s32.totalorder %s27, 3
    %p104 = por %p102, %p103
    %p105 = scmp.ne.s32.totalorder %s96, %s97
    %p106 = scmp.eq.s32.totalorder %s27, 0
    %p107 = por %p105, %p106
    %p108 = scmp.ne.s32.totalorder %s96, %s97
    %p109 = scmp.eq.s32.totalorder %s28, 3
    %p110 = por %p108, %p109
    %p112 = scmp.ne.s32.totalorder %s97, %s111
    %p113 = scmp.eq.s32.totalorder %s28, 0
    %p114 = por %p112, %p113
    %s116 = sadd.s32 %s115, 1
    %p119 = scmp.eq.s32.totalorder %s22, 3
    %p120 = scmp.ne.s32.totalorder %s115, %s117
    %p121 = scmp.eq.s32.totalorder %s22, 0
    %p122 = por %p120, %p121
    %p123 = scmp.ne.s32.totalorder %s115, %s117
    %p124 = scmp.eq.s32.totalorder %s27, 3
    %p125 = por %p123, %p124
    %p126 = scmp.ne.s32.totalorder %s117, %s118
    %p127 = scmp.eq.s32.totalorder %s27, 0
    %p128 = por %p126, %p127
    %p129 = scmp.ne.s32.totalorder %s117, %s118
    %p130 = scmp.eq.s32.totalorder %s28, 3
    %p131 = por %p129, %p130
    %p133 = scmp.ne.s32.totalorder %s118, %s132
    %p134 = scmp.eq.s32.totalorder %s28, 0
    %p135 = por %p133, %p134
    %s136 = ssub.s32 %s30, %s37
    %p137 = scmp.eq.s32.totalorder %s136, 0
    %s139 = sadd.s32 %s138, 1
    %s140 = scalar_select %p137, %s138, %s139
    %p143 = pneg %p137
    %p144 = scmp.eq.s32.totalorder %s22, 3
    %p145 = por %p143, %p144
    %p146 = scmp.ne.s32.totalorder %s138, %s141
    %p147 = scmp.eq.s32.totalorder %s22, 0
    %p148 = por %p146, %p147
    %p149 = scmp.ne.s32.totalorder %s138, %s141
    %p150 = scmp.eq.s32.totalorder %s27, 3
    %p151 = por %p149, %p150
    %p152 = scmp.ne.s32.totalorder %s141, %s142
    %p153 = scmp.eq.s32.totalorder %s27, 0
    %p154 = por %p152, %p153
    %p155 = scmp.ne.s32.totalorder %s141, %s142
    %p156 = scmp.eq.s32.totalorder %s28, 3
    %p157 = por %p155, %p156
    %p159 = scmp.ne.s32.totalorder %s142, %s158
    %p160 = scmp.eq.s32.totalorder %s28, 0
    %p161 = por %p159, %p160
    %s162 = ssub.s32 %s30, %s37
    %p163 = scmp.eq.s32.totalorder %s162, 0
    %s165 = sadd.s32 %s164, 1
    %s166 = scalar_select %p163, %s164, %s165
    %p169 = pneg %p163
    %p170 = scmp.eq.s32.totalorder %s22, 3
    %p171 = por %p169, %p170
    %p172 = scmp.ne.s32.totalorder %s164, %s167
    %p173 = scmp.eq.s32.totalorder %s22, 0
    %p174 = por %p172, %p173
    %p175 = scmp.ne.s32.totalorder %s164, %s167
    %p176 = scmp.eq.s32.totalorder %s27, 3
    %p177 = por %p175, %p176
    %p178 = scmp.ne.s32.totalorder %s167, %s168
    %p179 = scmp.eq.s32.totalorder %s27, 0
    %p180 = por %p178, %p179
    %p181 = scmp.ne.s32.totalorder %s167, %s168
    %p182 = scmp.eq.s32.totalorder %s28, 3
    %p183 = por %p181, %p182
    %p185 = scmp.ne.s32.totalorder %s168, %s184
    %p186 = scmp.eq.s32.totalorder %s28, 0
    %p187 = por %p185, %p186
    %s188 = ssub.s32 %s30, %s37
    %p189 = scmp.eq.s32.totalorder %s188, 0
    %s191 = sadd.s32 %s190, 1
    %s192 = scalar_select %p189, %s190, %s191
    %p195 = pneg %p189
    %p196 = scmp.eq.s32.totalorder %s22, 3
    %p197 = por %p195, %p196
    %p198 = scmp.ne.s32.totalorder %s190, %s193
    %p199 = scmp.eq.s32.totalorder %s22, 0
    %p200 = por %p198, %p199
    %p201 = scmp.ne.s32.totalorder %s190, %s193
    %p202 = scmp.eq.s32.totalorder %s27, 3
    %p203 = por %p201, %p202
    %p204 = scmp.ne.s32.totalorder %s193, %s194
    %p205 = scmp.eq.s32.totalorder %s27, 0
    %p206 = por %p204, %p205
    %p207 = scmp.ne.s32.totalorder %s193, %s194
    %p208 = scmp.eq.s32.totalorder %s28, 3
    %p209 = por %p207, %p208
    %p211 = scmp.ne.s32.totalorder %s194, %s210
    %p212 = scmp.eq.s32.totalorder %s28, 0
    %p213 = por %p211, %p212
    %s214 = ssub.s32 %s30, %s37
    %p215 = scmp.eq.s32.totalorder %s214, 0
    %s217 = sadd.s32 %s216, 1
    %s218 = scalar_select %p215, %s216, %s217
    %p221 = pneg %p215
    %p222 = scmp.eq.s32.totalorder %s22, 3
    %p223 = por %p221, %p222
    %p224 = scmp.ne.s32.totalorder %s216, %s219
    %p225 = scmp.eq.s32.totalorder %s22, 0
    %p226 = por %p224, %p225
    %p227 = scmp.ne.s32.totalorder %s216, %s219
    %p228 = scmp.eq.s32.totalorder %s27, 3
    %p229 = por %p227, %p228
    %p230 = scmp.ne.s32.totalorder %s219, %s220
    %p231 = scmp.eq.s32.totalorder %s27, 0
    %p232 = por %p230, %p231
    %p233 = scmp.ne.s32.totalorder %s219, %s220
    %p234 = scmp.eq.s32.totalorder %s28, 3
    %p235 = por %p233, %p234
    %p237 = scmp.ne.s32.totalorder %s220, %s236
    %p238 = scmp.eq.s32.totalorder %s28, 0
    %p239 = por %p237, %p238
    %s240 = ssub.s32 %s30, %s37
    %p241 = scmp.eq.s32.totalorder %s240, 0
    %s243 = sadd.s32 %s242, 1
    %s244 = scalar_select %p241, %s242, %s243
    %p247 = pneg %p241
    %p248 = scmp.eq.s32.totalorder %s22, 3
    %p249 = por %p247, %p248
    %p250 = scmp.ne.s32.totalorder %s242, %s245
    %p251 = scmp.eq.s32.totalorder %s22, 0
    %p252 = por %p250, %p251
    %p253 = scmp.ne.s32.totalorder %s242, %s245
    %p254 = scmp.eq.s32.totalorder %s27, 3
    %p255 = por %p253, %p254
    %p256 = scmp.ne.s32.totalorder %s245, %s246
    %p257 = scmp.eq.s32.totalorder %s27, 0
    %p258 = por %p256, %p257
    %p259 = scmp.ne.s32.totalorder %s245, %s246
    %p260 = scmp.eq.s32.totalorder %s28, 3
    %p261 = por %p259, %p260
    %p263 = scmp.ne.s32.totalorder %s246, %s262
    %p264 = scmp.eq.s32.totalorder %s28, 0
    %p265 = por %p263, %p264
    %s266 = ssub.s32 %s30, %s37
    %p267 = scmp.eq.s32.totalorder %s266, 0
    %s269 = sadd.s32 %s268, 1
    %s270 = scalar_select %p267, %s268, %s269
    %p273 = pneg %p267
    %p274 = scmp.eq.s32.totalorder %s22, 3
    %p275 = por %p273, %p274
    %p276 = scmp.ne.s32.totalorder %s268, %s271
    %p277 = scmp.eq.s32.totalorder %s22, 0
    %p278 = por %p276, %p277
    %p279 = scmp.ne.s32.totalorder %s268, %s271
    %p280 = scmp.eq.s32.totalorder %s27, 3
    %p281 = por %p279, %p280
    %p282 = scmp.ne.s32.totalorder %s271, %s272
    %p283 = scmp.eq.s32.totalorder %s27, 0
    %p284 = por %p282, %p283
    %p285 = scmp.ne.s32.totalorder %s271, %s272
    %p286 = scmp.eq.s32.totalorder %s28, 3
    %p287 = por %p285, %p286
    %p289 = scmp.ne.s32.totalorder %s272, %s288
    %p290 = scmp.eq.s32.totalorder %s28, 0
    %p291 = por %p289, %p290
    %s292 = ssub.s32 %s30, %s37
    %p293 = scmp.eq.s32.totalorder %s292, 0
    %s295 = sadd.s32 %s294, 1
    %s296 = scalar_select %p293, %s294, %s295
    %p299 = pneg %p293
    %p300 = scmp.eq.s32.totalorder %s22, 3
    %p301 = por %p299, %p300
    %p302 = scmp.ne.s32.totalorder %s294, %s297
    %p303 = scmp.eq.s32.totalorder %s22, 0
    %p304 = por %p302, %p303
    %p305 = scmp.ne.s32.totalorder %s294, %s297
    %p306 = scmp.eq.s32.totalorder %s27, 3
    %p307 = por %p305, %p306
    %p308 = scmp.ne.s32.totalorder %s297, %s298
    %p309 = scmp.eq.s32.totalorder %s27, 0
    %p310 = por %p308, %p309
    %p311 = scmp.ne.s32.totalorder %s297, %s298
    %p312 = scmp.eq.s32.totalorder %s28, 3
    %p313 = por %p311, %p312
    %p315 = scmp.ne.s32.totalorder %s298, %s314
    %p316 = scmp.eq.s32.totalorder %s28, 0
    %p317 = por %p315, %p316
    %s318 = ssub.s32 %s30, %s37
    %p319 = scmp.eq.s32.totalorder %s318, 0
    %s321 = sadd.s32 %s320, 1
    %s322 = scalar_select %p319, %s320, %s321
    %p325 = pneg %p319
    %p326 = scmp.eq.s32.totalorder %s22, 3
    %p327 = por %p325, %p326
    %p328 = scmp.ne.s32.totalorder %s320, %s323
    %p329 = scmp.eq.s32.totalorder %s22, 0
    %p330 = por %p328, %p329
    %p331 = scmp.ne.s32.totalorder %s320, %s323
    %p332 = scmp.eq.s32.totalorder %s27, 3
    %p333 = por %p331, %p332
    %p334 = scmp.ne.s32.totalorder %s323, %s324
    %p335 = scmp.eq.s32.totalorder %s27, 0
    %p336 = por %p334, %p335
    %p337 = scmp.ne.s32.totalorder %s323, %s324
    %p338 = scmp.eq.s32.totalorder %s28, 3
    %p339 = por %p337, %p338
    %p341 = scmp.ne.s32.totalorder %s324, %s340
    %p342 = scmp.eq.s32.totalorder %s28, 0
    %p343 = por %p341, %p342
    %s344 = ssub.s32 %s30, %s37
    %p345 = scmp.eq.s32.totalorder %s344, 0
    %s347 = sadd.s32 %s346, 1
    %s348 = scalar_select %p345, %s346, %s347
    %p351 = pneg %p345
    %p352 = scmp.eq.s32.totalorder %s22, 3
    %p353 = por %p351, %p352
    %p354 = scmp.ne.s32.totalorder %s346, %s349
    %p355 = scmp.eq.s32.totalorder %s22, 0
    %p356 = por %p354, %p355
    %p357 = scmp.ne.s32.totalorder %s346, %s349
    %p358 = scmp.eq.s32.totalorder %s27, 3
    %p359 = por %p357, %p358
    %p360 = scmp.ne.s32.totalorder %s349, %s350
    %p361 = scmp.eq.s32.totalorder %s27, 0
    %p362 = por %p360, %p361
    %p363 = scmp.ne.s32.totalorder %s349, %s350
    %p364 = scmp.eq.s32.totalorder %s28, 3
    %p365 = por %p363, %p364
    %p367 = scmp.ne.s32.totalorder %s350, %s366
    %p368 = scmp.eq.s32.totalorder %s28, 0
    %p369 = por %p367, %p368
    %s370 = ssub.s32 %s30, %s37
    %p371 = scmp.eq.s32.totalorder %s370, 0
    %s373 = sadd.s32 %s372, 1
    %s374 = scalar_select %p371, %s372, %s373
    %p377 = pneg %p371
    %p378 = scmp.eq.s32.totalorder %s22, 3
    %p379 = por %p377, %p378
    %p380 = scmp.ne.s32.totalorder %s372, %s375
    %p381 = scmp.eq.s32.totalorder %s22, 0
    %p382 = por %p380, %p381
    %p383 = scmp.ne.s32.totalorder %s372, %s375
    %p384 = scmp.eq.s32.totalorder %s27, 3
    %p385 = por %p383, %p384
    %p386 = scmp.ne.s32.totalorder %s375, %s376
    %p387 = scmp.eq.s32.totalorder %s27, 0
    %p388 = por %p386, %p387
    %p389 = scmp.ne.s32.totalorder %s375, %s376
    %p390 = scmp.eq.s32.totalorder %s28, 3
    %p391 = por %p389, %p390
    %p393 = scmp.ne.s32.totalorder %s376, %s392
    %p394 = scmp.eq.s32.totalorder %s28, 0
    %p395 = por %p393, %p394
    %s396 = ssub.s32 %s30, %s37
    %p397 = scmp.eq.s32.totalorder %s396, 0
    %s399 = sadd.s32 %s398, 1
    %s400 = scalar_select %p397, %s398, %s399
    %p403 = pneg %p397
    %p404 = scmp.eq.s32.totalorder %s22, 3
    %p405 = por %p403, %p404
    %p406 = scmp.ne.s32.totalorder %s398, %s401
    %p407 = scmp.eq.s32.totalorder %s22, 0
    %p408 = por %p406, %p407
    %p409 = scmp.ne.s32.totalorder %s398, %s401
    %p410 = scmp.eq.s32.totalorder %s27, 3
    %p411 = por %p409, %p410
    %p412 = scmp.ne.s32.totalorder %s401, %s402
    %p413 = scmp.eq.s32.totalorder %s27, 0
    %p414 = por %p412, %p413
    %p415 = scmp.ne.s32.totalorder %s401, %s402
    %p416 = scmp.eq.s32.totalorder %s28, 3
    %p417 = por %p415, %p416
    %p419 = scmp.ne.s32.totalorder %s402, %s418
    %p420 = scmp.eq.s32.totalorder %s28, 0
    %p421 = por %p419, %p420
    %s422 = ssub.s32 %s30, %s37
    %p423 = scmp.eq.s32.totalorder %s422, 0
    %s425 = sadd.s32 %s424, 1
    %s426 = scalar_select %p423, %s424, %s425
    %p429 = pneg %p423
    %p430 = scmp.eq.s32.totalorder %s22, 3
    %p431 = por %p429, %p430
    %p432 = scmp.ne.s32.totalorder %s424, %s427
    %p433 = scmp.eq.s32.totalorder %s22, 0
    %p434 = por %p432, %p433
    %p435 = scmp.ne.s32.totalorder %s424, %s427
    %p436 = scmp.eq.s32.totalorder %s27, 3
    %p437 = por %p435, %p436
    %p438 = scmp.ne.s32.totalorder %s427, %s428
    %p439 = scmp.eq.s32.totalorder %s27, 0
    %p440 = por %p438, %p439
    %p441 = scmp.ne.s32.totalorder %s427, %s428
    %p442 = scmp.eq.s32.totalorder %s28, 3
    %p443 = por %p441, %p442
    %p445 = scmp.ne.s32.totalorder %s428, %s444
    %p446 = scmp.eq.s32.totalorder %s28, 0
    %p447 = por %p445, %p446
    %s448 = ssub.s32 %s29, %s41
    %p449 = scmp.eq.s32.totalorder %s448, 0
    %s451 = sadd.s32 %s450, 1
    %s452 = scalar_select %p449, %s450, %s451
    %p455 = pneg %p449
    %p456 = scmp.eq.s32.totalorder %s22, 3
    %p457 = por %p455, %p456
    %p458 = scmp.ne.s32.totalorder %s450, %s453
    %p459 = scmp.eq.s32.totalorder %s22, 0
    %p460 = por %p458, %p459
    %p461 = scmp.ne.s32.totalorder %s450, %s453
    %p462 = scmp.eq.s32.totalorder %s27, 3
    %p463 = por %p461, %p462
    %p464 = scmp.ne.s32.totalorder %s453, %s454
    %p465 = scmp.eq.s32.totalorder %s27, 0
    %p466 = por %p464, %p465
    %p467 = scmp.ne.s32.totalorder %s453, %s454
    %p468 = scmp.eq.s32.totalorder %s28, 3
    %p469 = por %p467, %p468
    %p471 = scmp.ne.s32.totalorder %s454, %s470
    %p472 = scmp.eq.s32.totalorder %s28, 0
    %p473 = por %p471, %p472
    %p474 = scmp.le.s32.totalorder 1, %s22
    %p475 = scmp.lt.s32.totalorder %s22, 5
    %p476 = pnand %p474, %p475
    %p477 = pneg %p476
    // Predicated region
    $region9: #{_lambda_.2} parent=5 // pred_check
      _
    $region10: #{_lambda_.2} parent=5 // pred_check_branch
      %479 = sbr.rel (%p476) target = $region12
    $region11: #{_lambda_.2} parent=5 // pred_region
      %s480 = ssub.s32 %s22, 1
      // Predicated region
      $region13: #{_lambda_.2} parent=11 // pred_check
        %p481 = pneg %p107
      $region14: #{_lambda_.2} parent=11 // pred_check_branch
        %483 = sbr.rel (%p481) target = $region16
      $region15: #{_lambda_.2} parent=11 // pred_region
        _
      $region16: #{_lambda_.2} parent=11 // pred_fallthru
        _
      // Predicated region
      $region17: #{_lambda_.2} parent=11 // pred_check
        %p484 = pneg %p128
      $region18: #{_lambda_.2} parent=11 // pred_check_branch
        %486 = sbr.rel (%p484) target = $region20
      $region19: #{_lambda_.2} parent=11 // pred_region
        _
      $region20: #{_lambda_.2} parent=11 // pred_fallthru
        _
    $region12: #{_lambda_.2} parent=5 // pred_fallthru
      _
    %p487 = scmp.lt.s32.totalorder %s22, 4
    // Predicated region
    $region21: #{_lambda_.2} parent=5 // pred_check
      %p488 = pneg %p487
    $region22: #{_lambda_.2} parent=5 // pred_check_branch
      %490 = sbr.rel (%p488) target = $region24
    $region23: #{_lambda_.2} parent=5 // pred_region
      // Predicated region
      $region25: #{_lambda_.2} parent=23 // pred_check
        %p491 = pneg %p54
      $region26: #{_lambda_.2} parent=23 // pred_check_branch
        %493 = sbr.rel (%p491) target = $region28
      $region27: #{_lambda_.2} parent=23 // pred_region
        %p494 = scmp.lt.s32.totalorder %s29, 1
        %s495 = scalar_select %p494, %s29, 1
        %s496 = smul.addr %s495, 8
        %s497 = scalar_lea.vmem %s0, %s496
      $region28: #{_lambda_.2} parent=23 // pred_fallthru
        _
      // Predicated region
      $region29: #{_lambda_.2} parent=23 // pred_check
        %p498 = pneg %p80
      $region30: #{_lambda_.2} parent=23 // pred_check_branch
        %500 = sbr.rel (%p498) target = $region32
      $region31: #{_lambda_.2} parent=23 // pred_region
        %p501 = scmp.lt.s32.totalorder %s29, 1
        %s502 = scalar_select %p501, %s29, 1
        %s503 = scalar_lea.vmem %s1, %s502
      $region32: #{_lambda_.2} parent=23 // pred_fallthru
        _
      // Predicated region
      $region33: #{_lambda_.2} parent=23 // pred_check
        %p504 = pneg %p148
      $region34: #{_lambda_.2} parent=23 // pred_check_branch
        %506 = sbr.rel (%p504) target = $region36
      $region35: #{_lambda_.2} parent=23 // pred_region
        %p507 = scmp.lt.s32.totalorder %s30, 1
        %s508 = scalar_select %p507, %s30, 1
        %s509 = smul.addr %s508, 4
        %s510 = smul.addr %s509, 4
        %s511 = scalar_lea.vmem %s4, %s510
      $region36: #{_lambda_.2} parent=23 // pred_fallthru
        _
      // Predicated region
      $region37: #{_lambda_.2} parent=23 // pred_check
        %p512 = pneg %p174
      $region38: #{_lambda_.2} parent=23 // pred_check_branch
        %514 = sbr.rel (%p512) target = $region40
      $region39: #{_lambda_.2} parent=23 // pred_region
        %p515 = scmp.lt.s32.totalorder %s30, 1
        %s516 = scalar_select %p515, %s30, 1
        %s517 = scalar_lea.vmem %s5, %s516
      $region40: #{_lambda_.2} parent=23 // pred_fallthru
        _
      // Predicated region
      $region41: #{_lambda_.2} parent=23 // pred_check
        %p518 = pneg %p200
      $region42: #{_lambda_.2} parent=23 // pred_check_branch
        %520 = sbr.rel (%p518) target = $region44
      $region43: #{_lambda_.2} parent=23 // pred_region
        %p521 = scmp.lt.s32.totalorder %s30, 1
        %s522 = scalar_select %p521, %s30, 1
        %s523 = smul.addr %s522, 4
        %s524 = smul.addr %s523, 4
        %s525 = scalar_lea.vmem %s6, %s524
      $region44: #{_lambda_.2} parent=23 // pred_fallthru
        _
      // Predicated region
      $region45: #{_lambda_.2} parent=23 // pred_check
        %p526 = pneg %p226
      $region46: #{_lambda_.2} parent=23 // pred_check_branch
        %528 = sbr.rel (%p526) target = $region48
      $region47: #{_lambda_.2} parent=23 // pred_region
        %p529 = scmp.lt.s32.totalorder %s30, 1
        %s530 = scalar_select %p529, %s30, 1
        %s531 = scalar_lea.vmem %s7, %s530
      $region48: #{_lambda_.2} parent=23 // pred_fallthru
        _
      // Predicated region
      $region49: #{_lambda_.2} parent=23 // pred_check
        %p532 = pneg %p252
      $region50: #{_lambda_.2} parent=23 // pred_check_branch
        %534 = sbr.rel (%p532) target = $region52
      $region51: #{_lambda_.2} parent=23 // pred_region
        %p535 = scmp.lt.s32.totalorder %s30, 1
        %s536 = scalar_select %p535, %s30, 1
        %s537 = scalar_lea.vmem %s8, %s536
      $region52: #{_lambda_.2} parent=23 // pred_fallthru
        _
      // Predicated region
      $region53: #{_lambda_.2} parent=23 // pred_check
        %p538 = pneg %p278
      $region54: #{_lambda_.2} parent=23 // pred_check_branch
        %540 = sbr.rel (%p538) target = $region56
      $region55: #{_lambda_.2} parent=23 // pred_region
        %p541 = scmp.lt.s32.totalorder %s30, 1
        %s542 = scalar_select %p541, %s30, 1
        %s543 = scalar_lea.vmem %s9, %s542
      $region56: #{_lambda_.2} parent=23 // pred_fallthru
        _
      // Predicated region
      $region57: #{_lambda_.2} parent=23 // pred_check
        %p544 = pneg %p304
      $region58: #{_lambda_.2} parent=23 // pred_check_branch
        %546 = sbr.rel (%p544) target = $region60
      $region59: #{_lambda_.2} parent=23 // pred_region
        %p547 = scmp.lt.s32.totalorder %s30, 1
        %s548 = scalar_select %p547, %s30, 1
        %s549 = smul.addr %s548, 4
        %s550 = smul.addr %s549, 4
        %s551 = scalar_lea.vmem %s10, %s550
      $region60: #{_lambda_.2} parent=23 // pred_fallthru
        _
      // Predicated region
      $region61: #{_lambda_.2} parent=23 // pred_check
        %p552 = pneg %p330
      $region62: #{_lambda_.2} parent=23 // pred_check_branch
        %554 = sbr.rel (%p552) target = $region64
      $region63: #{_lambda_.2} parent=23 // pred_region
        %p555 = scmp.lt.s32.totalorder %s30, 1
        %s556 = scalar_select %p555, %s30, 1
        %s557 = scalar_lea.vmem %s11, %s556
      $region64: #{_lambda_.2} parent=23 // pred_fallthru
        _
      // Predicated region
      $region65: #{_lambda_.2} parent=23 // pred_check
        %p558 = pneg %p356
      $region66: #{_lambda_.2} parent=23 // pred_check_branch
        %560 = sbr.rel (%p558) target = $region68
      $region67: #{_lambda_.2} parent=23 // pred_region
        %p561 = scmp.lt.s32.totalorder %s30, 1
        %s562 = scalar_select %p561, %s30, 1
        %s563 = smul.addr %s562, 8
        %s564 = smul.addr %s563, 4
        %s565 = scalar_lea.vmem %s12, %s564
      $region68: #{_lambda_.2} parent=23 // pred_fallthru
        _
      // Predicated region
      $region69: #{_lambda_.2} parent=23 // pred_check
        %p566 = pneg %p382
      $region70: #{_lambda_.2} parent=23 // pred_check_branch
        %568 = sbr.rel (%p566) target = $region72
      $region71: #{_lambda_.2} parent=23 // pred_region
        %p569 = scmp.lt.s32.totalorder %s30, 1
        %s570 = scalar_select %p569, %s30, 1
        %s571 = scalar_lea.vmem %s13, %s570
      $region72: #{_lambda_.2} parent=23 // pred_fallthru
        _
      // Predicated region
      $region73: #{_lambda_.2} parent=23 // pred_check
        %p572 = pneg %p408
      $region74: #{_lambda_.2} parent=23 // pred_check_branch
        %574 = sbr.rel (%p572) target = $region76
      $region75: #{_lambda_.2} parent=23 // pred_region
        %p575 = scmp.lt.s32.totalorder %s30, 1
        %s576 = scalar_select %p575, %s30, 1
        %s577 = scalar_lea.vmem %s14, %s576
      $region76: #{_lambda_.2} parent=23 // pred_fallthru
        _
      // Predicated region
      $region77: #{_lambda_.2} parent=23 // pred_check
        %p578 = pneg %p434
      $region78: #{_lambda_.2} parent=23 // pred_check_branch
        %580 = sbr.rel (%p578) target = $region80
      $region79: #{_lambda_.2} parent=23 // pred_region
        %p581 = scmp.lt.s32.totalorder %s30, 1
        %s582 = scalar_select %p581, %s30, 1
        %s583 = scalar_lea.vmem %s15, %s582
      $region80: #{_lambda_.2} parent=23 // pred_fallthru
        _
    $region24: #{_lambda_.2} parent=5 // pred_fallthru
      _
    %p584 = scmp.le.s32.totalorder 1, %s22
    %p585 = scmp.lt.s32.totalorder %s22, 5
    %p586 = pnand %p584, %p585
    %p587 = pneg %p586
    // Predicated region
    $region81: #{_lambda_.2} parent=5 // pred_check
      _
    $region82: #{_lambda_.2} parent=5 // pred_check_branch
      %589 = sbr.rel (%p586) target = $region84
    $region83: #{_lambda_.2} parent=5 // pred_region
      %s590 = ssub.s32 %s22, 1
      %p591 = scmp.lt.s32.totalorder %s31, 1
      %s592 = scalar_select %p591, %s31, 1
      %s593 = smul.addr %s592, 8
      %s594 = scalar_lea.vmem %s0, %s593
      %p595 = pneg %p60
      %p596 = pneg %p57
      %p597 = scmp.lt.s32.totalorder %s31, 1
      %s598 = scalar_select %p597, %s31, 1
      %s599 = scalar_lea.vmem %s1, %s598
      %p600 = pneg %p86
      %p601 = pneg %p83
      %p602 = pneg %p107
      %p603 = pneg %p104
      %p604 = pneg %p128
      %p605 = pneg %p125
      %p606 = scmp.lt.s32.totalorder %s32, 1
      %s607 = scalar_select %p606, %s32, 1
      %s608 = smul.addr %s607, 4
      %s609 = smul.addr %s608, 4
      %s610 = scalar_lea.vmem %s4, %s609
      %p611 = pneg %p154
      %p612 = pneg %p151
      %p613 = scmp.lt.s32.totalorder %s32, 1
      %s614 = scalar_select %p613, %s32, 1
      %s615 = scalar_lea.vmem %s5, %s614
      %p616 = pneg %p180
      %p617 = pneg %p177
      %p618 = scmp.lt.s32.totalorder %s32, 1
      %s619 = scalar_select %p618, %s32, 1
      %s620 = smul.addr %s619, 4
      %s621 = smul.addr %s620, 4
      %s622 = scalar_lea.vmem %s6, %s621
      %p623 = pneg %p206
      %p624 = pneg %p203
      %p625 = scmp.lt.s32.totalorder %s32, 1
      %s626 = scalar_select %p625, %s32, 1
      %s627 = scalar_lea.vmem %s7, %s626
      %p628 = pneg %p232
      %p629 = pneg %p229
      %p630 = scmp.lt.s32.totalorder %s32, 1
      %s631 = scalar_select %p630, %s32, 1
      %s632 = scalar_lea.vmem %s8, %s631
      %p633 = pneg %p258
      %p634 = pneg %p255
      %p635 = scmp.lt.s32.totalorder %s32, 1
      %s636 = scalar_select %p635, %s32, 1
      %s637 = scalar_lea.vmem %s9, %s636
      %p638 = pneg %p284
      %p639 = pneg %p281
      %p640 = scmp.lt.s32.totalorder %s32, 1
      %s641 = scalar_select %p640, %s32, 1
      %s642 = smul.addr %s641, 4
      %s643 = smul.addr %s642, 4
      %s644 = scalar_lea.vmem %s10, %s643
      %p645 = pneg %p310
      %p646 = pneg %p307
      %p647 = scmp.lt.s32.totalorder %s32, 1
      %s648 = scalar_select %p647, %s32, 1
      %s649 = scalar_lea.vmem %s11, %s648
      %p650 = pneg %p336
      %p651 = pneg %p333
      %p652 = scmp.lt.s32.totalorder %s32, 1
      %s653 = scalar_select %p652, %s32, 1
      %s654 = smul.addr %s653, 8
      %s655 = smul.addr %s654, 4
      %s656 = scalar_lea.vmem %s12, %s655
      %p657 = pneg %p362
      %p658 = pneg %p359
      %p659 = scmp.lt.s32.totalorder %s32, 1
      %s660 = scalar_select %p659, %s32, 1
      %s661 = scalar_lea.vmem %s13, %s660
      %p662 = pneg %p388
      %p663 = pneg %p385
      %p664 = scmp.lt.s32.totalorder %s32, 1
      %s665 = scalar_select %p664, %s32, 1
      %s666 = scalar_lea.vmem %s14, %s665
      %p667 = pneg %p414
      %p668 = pneg %p411
      %p669 = scmp.lt.s32.totalorder %s32, 1
      %s670 = scalar_select %p669, %s32, 1
      %s671 = scalar_lea.vmem %s15, %s670
      %p672 = pneg %p440
      %p673 = pneg %p437
      %p674 = pneg %p466
      %p675 = pneg %p463
      %p676 = scmp.lt.s32.totalorder %s31, 1
      %s677 = scalar_select %p676, %s31, 1
      %s678 = smul.addr %s677, 8
      %s679 = scalar_lea.vmem %s16, %s678
      %p680 = scmp.lt.s32.totalorder %s31, 1
      %s681 = scalar_select %p680, %s31, 1
      %s682 = smul.addr %s681, 8
      %s683 = scalar_lea.vmem %s0, %s682
      %p684 = scmp.lt.s32.totalorder %s31, 1
      %s685 = scalar_select %p684, %s31, 1
      %s686 = scalar_lea.vmem %s1, %s685
      %p687 = scmp.lt.s32.totalorder %s32, 1
      %s688 = scalar_select %p687, %s32, 1
      %s689 = smul.addr %s688, 4
      %s690 = smul.addr %s689, 4
      %s691 = scalar_lea.vmem %s4, %s690
      %p692 = scmp.lt.s32.totalorder %s32, 1
      %s693 = scalar_select %p692, %s32, 1
      %s694 = scalar_lea.vmem %s5, %s693
      %p695 = scmp.lt.s32.totalorder %s32, 1
      %s696 = scalar_select %p695, %s32, 1
      %s697 = smul.addr %s696, 4
      %s698 = smul.addr %s697, 4
      %s699 = scalar_lea.vmem %s6, %s698
      %p700 = scmp.lt.s32.totalorder %s32, 1
      %s701 = scalar_select %p700, %s32, 1
      %s702 = scalar_lea.vmem %s7, %s701
      %p703 = scmp.lt.s32.totalorder %s32, 1
      %s704 = scalar_select %p703, %s32, 1
      %s705 = scalar_lea.vmem %s8, %s704
      %p706 = scmp.lt.s32.totalorder %s32, 1
      %s707 = scalar_select %p706, %s32, 1
      %s708 = scalar_lea.vmem %s9, %s707
      %p709 = scmp.lt.s32.totalorder %s32, 1
      %s710 = scalar_select %p709, %s32, 1
      %s711 = smul.addr %s710, 4
      %s712 = smul.addr %s711, 4
      %s713 = scalar_lea.vmem %s10, %s712
      %p714 = scmp.lt.s32.totalorder %s32, 1
      %s715 = scalar_select %p714, %s32, 1
      %s716 = scalar_lea.vmem %s11, %s715
      %p717 = scmp.lt.s32.totalorder %s32, 1
      %s718 = scalar_select %p717, %s32, 1
      %s719 = smul.addr %s718, 8
      %s720 = smul.addr %s719, 4
      %s721 = scalar_lea.vmem %s12, %s720
      %p722 = scmp.lt.s32.totalorder %s32, 1
      %s723 = scalar_select %p722, %s32, 1
      %s724 = scalar_lea.vmem %s13, %s723
      %p725 = scmp.lt.s32.totalorder %s32, 1
      %s726 = scalar_select %p725, %s32, 1
      %s727 = scalar_lea.vmem %s14, %s726
      %p728 = scmp.lt.s32.totalorder %s32, 1
      %s729 = scalar_select %p728, %s32, 1
      %s730 = scalar_lea.vmem %s15, %s729
      %p731 = scmp.lt.s32.totalorder %s31, 1
      %s732 = scalar_select %p731, %s31, 1
      %s733 = smul.addr %s732, 8
      %s734 = scalar_lea.vmem %s16, %s733
      %p736 = scmp.eq.s32.totalorder %s32, 0
      // Predicated region
      $region85: #{_lambda_.2} parent=83 // pred_check
        %p737 = pneg %p736
      $region86: #{_lambda_.2} parent=83 // pred_check_branch
        %739 = sbr.rel (%p737) target = $region88
      $region87: #{_lambda_.2} parent=83 // pred_region
        %v740 = vld [vmem:[%s683] sm:$0xff]
        %v741 = vld [vmem:[%s2] sm:$0x1]
        %v742 = vld [vmem:[%s3] sm:$0x1]
        %vm743 = vcmask 261120
        %v744 = vsel %vm743, %v740, 0.0
        %745 = vadd.xlane.f32.xlu0 %v744
        %v746 = vpop.xlane.xlu0 %745
        %v747 = vrcp.pop 32.0
        %v748 = vmul.f32 %v746, %v747
        %v749 = vsub.f32 %v740, %v748
        %v750 = vmul.f32 %v749, %v749
        %v751 = vsel %vm743, %v750, 0.0
        %752 = vadd.xlane.f32.xlu0 %v751
        %v753 = vpop.xlane.xlu0 %752
        %v754 = vmul.f32 %v753, %v747
        %v755 = vadd.f32 %v754, 1e-12
        %v756 = vrsqrt.pop %v755
        %v757 = vmul.f32 %v749, %v756
        %v759 = vlaneseq
        %v760 = vshrl.u32 %v759, 7
        %v761 = vsub.s32 0, %v760
        %v762 = vrot.slane %v741, %v761
        %v764 = vmul.f32 %v757, %v762
        %v766 = vlaneseq
        %v767 = vshrl.u32 %v766, 7
        %v768 = vsub.s32 0, %v767
        %v769 = vrot.slane %v742, %v768
        %v771 = vadd.f32 %v764, %v769
        %772 = vst.msk [vmem:[%s734] sm:$0xff] %vm743, %v771
      $region88: #{_lambda_.2} parent=83 // pred_fallthru
        _
      %v773 = vld [vmem:[%s734] sm:$0xff]
      %v774 = vld [vmem:[%s691] sm:$0xf]
      %v775 = vld [vmem:[%s691 + $0x4] sm:$0xf]
      %v776 = vld [vmem:[%s691 + $0x8] sm:$0xf]
      %v777 = vld [vmem:[%s691 + $0xc] sm:$0xf]
      %v778 = vpack.c.bf16 %v773, %v773
      %v779 = vld [vmem:[%s694] sm:$0x1]
      %v781 = vlaneseq
      %v782 = vshrl.u32 %v781, 7
      %v783 = vsub.s32 0, %v782
      %v784 = vrot.slane %v779, %v783
      %v790 = vunpack.c.l.b16 %v774
      %v791 = vunpack.c.l.b16 %v775
      %v792 = vunpack.c.l.b16 %v776
      %v793 = vunpack.c.l.b16 %v777
      %v794 = vpack.c.b16 %v791, %v790
      %v795 = vpack.c.b16 %v793, %v792
      %vm798 = vcmask 261120
      %v800 = vsel %vm798, %v778, 0
      %802 = vmatprep.subr.bf16.mxu0 0
      %803 = vmatpush1.bf16.msra.mxu0 0
      %804 = vmatprep.subr.bf16.mxu0 0
      %805 = vmatpush1.bf16.msra.mxu0 0
      %806 = vmatprep.subr.bf16.mxu0 0
      %807 = vmatpush1.bf16.msra.mxu0 0
      %808 = vmatprep.subr.bf16.mxu0 0
      %809 = vmatpush1.bf16.msra.mxu0 0
      %810 = vmatprep.subr.bf16.mxu0 0
      %811 = vmatpush1.bf16.msra.mxu0 0
      %812 = vmatprep.subr.bf16.mxu0 0
      %813 = vmatpush1.bf16.msra.mxu0 0
      %814 = vmatprep.subr.bf16.mxu0 0
      %815 = vmatpush1.bf16.msra.mxu0 %v795
      %816 = vmatprep.subr.bf16.mxu0 0
      %817 = vmatpush1.bf16.msra.mxu0 %v794
      %818 = vmatprep.subr.bf16.mxu0 0
      %819 = vmatpush2.bf16.msra.mxu0 0
      %820 = vmatprep.subr.bf16.mxu0 0
      %821 = vmatpush2.bf16.msra.mxu0 0
      %822 = vmatprep.subr.bf16.mxu0 0
      %823 = vmatpush2.bf16.msra.mxu0 0
      %824 = vmatprep.subr.bf16.mxu0 0
      %825 = vmatpush2.bf16.msra.mxu0 0
      %826 = vmatprep.subr.bf16.mxu0 0
      %827 = vmatpush2.bf16.msra.mxu0 0
      %828 = vmatprep.subr.bf16.mxu0 0
      %829 = vmatpush2.bf16.msra.mxu0 0
      %830 = vmatprep.subr.bf16.mxu0 0
      %831 = vmatpush2.bf16.msra.mxu0 0
      %832 = vmatprep.subr.bf16.mxu0 0
      %833 = vmatpush2.bf16.msra.mxu0 0
      %834 = vmatprep.mubr.bf16.mxu0 0
      %835 = vmatmul.mubr.bf16.gmra.mxu0 %v800
      %v836 = vpop.f32.mrf.mxu0
      %v837 = vadd.f32 %v784, %v836
      %v838 = vpop.f32.mrf.mxu0
      %v839 = vpop.f32.mrf.mxu0
      %v840 = vpop.f32.mrf.mxu0
      %841 = vdwg.mxu0
      %843 = vrot.lane.b32.xlu0 %v837, 120
      %v844 = vpop.permute.xlu0 %843
      %846 = vrot.lane.b32.xlu0 %v837, 112
      %v847 = vpop.permute.xlu0 %846
      %849 = vrot.lane.b32.xlu0 %v837, 104
      %v850 = vpop.permute.xlu0 %849
      %v852 = vpack.c.bf16 %v837, %v837
      %v853 = vpack.c.bf16 %v844, %v844
      %v854 = vpack.c.bf16 %v847, %v847
      %v855 = vpack.c.bf16 %v850, %v850
      %v856 = vld [vmem:[%s686] sm:$0x1]
      %v858 = vlaneseq
      %v859 = vshrl.u32 %v858, 7
      %v860 = vsub.s32 0, %v859
      %v861 = vrot.slane %v856, %v860
      %864 = vrot.lane.b32.xlu0 %v852, 96
      %v865 = vpop.permute.xlu0 %864
      %vm866 = vcmask 64512
      %v868 = vsel %vm866, %v852, 0
      %v871 = vsel %vm866, %v865, 0
      %873 = vmatprep.subr.bf16.mxu0 0
      %874 = vmatpush1.bf16.xpose.msra.mxu0 0
      %875 = vmatprep.subr.bf16.mxu0 0
      %876 = vmatpush1.bf16.xpose.msra.mxu0 0
      %877 = vmatprep.subr.bf16.mxu0 0
      %878 = vmatpush1.bf16.xpose.msra.mxu0 0
      %879 = vmatprep.subr.bf16.mxu0 0
      %880 = vmatpush1.bf16.xpose.msra.mxu0 0
      %881 = vmatprep.subr.bf16.mxu0 0
      %882 = vmatpush1.bf16.xpose.msra.mxu0 0
      %883 = vmatprep.subr.bf16.mxu0 0
      %884 = vmatpush1.bf16.xpose.msra.mxu0 0
      %885 = vmatprep.subr.bf16.mxu0 0
      %886 = vmatpush1.bf16.xpose.msra.mxu0 0
      %887 = vmatprep.subr.bf16.mxu0 0
      %888 = vmatpush1.bf16.xpose.msra.mxu0 %v871
      %889 = vmatprep.subr.bf16.mxu0 0
      %890 = vmatpush2.bf16.xpose.msra.mxu0 0
      %891 = vmatprep.subr.bf16.mxu0 0
      %892 = vmatpush2.bf16.xpose.msra.mxu0 0
      %893 = vmatprep.subr.bf16.mxu0 0
      %894 = vmatpush2.bf16.xpose.msra.mxu0 0
      %895 = vmatprep.subr.bf16.mxu0 0
      %896 = vmatpush2.bf16.xpose.msra.mxu0 0
      %897 = vmatprep.subr.bf16.mxu0 0
      %898 = vmatpush2.bf16.xpose.msra.mxu0 0
      %899 = vmatprep.subr.bf16.mxu0 0
      %900 = vmatpush2.bf16.xpose.msra.mxu0 0
      %901 = vmatprep.subr.bf16.mxu0 0
      %902 = vmatpush2.bf16.xpose.msra.mxu0 0
      %903 = vmatprep.subr.bf16.mxu0 0
      %904 = vmatpush2.bf16.xpose.msra.mxu0 0
      %905 = vmatprep.mubr.bf16.mxu0 0
      %906 = vmatmul.mubr.bf16.gmra.mxu0 %v868
      %v907 = vpop.f32.mrf.mxu0
      %v908 = vadd.f32 %v861, %v907
      %v909 = vpop.f32.mrf.mxu0
      %v910 = vpop.f32.mrf.mxu0
      %v911 = vpop.f32.mrf.mxu0
      %912 = vdwg.mxu0
      %914 = vrot.lane.b32.xlu0 %v853, 96
      %v915 = vpop.permute.xlu0 %914
      %v917 = vsel %vm866, %v853, 0
      %v920 = vsel %vm866, %v915, 0
      %922 = vmatprep.subr.bf16.mxu0 0
      %923 = vmatpush1.bf16.xpose.msra.mxu0 0
      %924 = vmatprep.subr.bf16.mxu0 0
      %925 = vmatpush1.bf16.xpose.msra.mxu0 0
      %926 = vmatprep.subr.bf16.mxu0 0
      %927 = vmatpush1.bf16.xpose.msra.mxu0 0
      %928 = vmatprep.subr.bf16.mxu0 0
      %929 = vmatpush1.bf16.xpose.msra.mxu0 0
      %930 = vmatprep.subr.bf16.mxu0 0
      %931 = vmatpush1.bf16.xpose.msra.mxu0 0
      %932 = vmatprep.subr.bf16.mxu0 0
      %933 = vmatpush1.bf16.xpose.msra.mxu0 0
      %934 = vmatprep.subr.bf16.mxu0 0
      %935 = vmatpush1.bf16.xpose.msra.mxu0 0
      %936 = vmatprep.subr.bf16.mxu0 0
      %937 = vmatpush1.bf16.xpose.msra.mxu0 %v920
      %938 = vmatprep.subr.bf16.mxu0 0
      %939 = vmatpush2.bf16.xpose.msra.mxu0 0
      %940 = vmatprep.subr.bf16.mxu0 0
      %941 = vmatpush2.bf16.xpose.msra.mxu0 0
      %942 = vmatprep.subr.bf16.mxu0 0
      %943 = vmatpush2.bf16.xpose.msra.mxu0 0
      %944 = vmatprep.subr.bf16.mxu0 0
      %945 = vmatpush2.bf16.xpose.msra.mxu0 0
      %946 = vmatprep.subr.bf16.mxu0 0
      %947 = vmatpush2.bf16.xpose.msra.mxu0 0
      %948 = vmatprep.subr.bf16.mxu0 0
      %949 = vmatpush2.bf16.xpose.msra.mxu0 0
      %950 = vmatprep.subr.bf16.mxu0 0
      %951 = vmatpush2.bf16.xpose.msra.mxu0 0
      %952 = vmatprep.subr.bf16.mxu0 0
      %953 = vmatpush2.bf16.xpose.msra.mxu0 0
      %954 = vmatprep.mubr.bf16.mxu0 0
      %955 = vmatmul.mubr.bf16.gmra.mxu0 %v917
      %v956 = vpop.f32.mrf.mxu0
      %v957 = vadd.f32 %v861, %v956
      %v958 = vpop.f32.mrf.mxu0
      %v959 = vpop.f32.mrf.mxu0
      %v960 = vpop.f32.mrf.mxu0
      %961 = vdwg.mxu0
      %963 = vrot.lane.b32.xlu0 %v854, 96
      %v964 = vpop.permute.xlu0 %963
      %v966 = vsel %vm866, %v854, 0
      %v969 = vsel %vm866, %v964, 0
      %971 = vmatprep.subr.bf16.mxu0 0
      %972 = vmatpush1.bf16.xpose.msra.mxu0 0
      %973 = vmatprep.subr.bf16.mxu0 0
      %974 = vmatpush1.bf16.xpose.msra.mxu0 0
      %975 = vmatprep.subr.bf16.mxu0 0
      %976 = vmatpush1.bf16.xpose.msra.mxu0 0
      %977 = vmatprep.subr.bf16.mxu0 0
      %978 = vmatpush1.bf16.xpose.msra.mxu0 0
      %979 = vmatprep.subr.bf16.mxu0 0
      %980 = vmatpush1.bf16.xpose.msra.mxu0 0
      %981 = vmatprep.subr.bf16.mxu0 0
      %982 = vmatpush1.bf16.xpose.msra.mxu0 0
      %983 = vmatprep.subr.bf16.mxu0 0
      %984 = vmatpush1.bf16.xpose.msra.mxu0 0
      %985 = vmatprep.subr.bf16.mxu0 0
      %986 = vmatpush1.bf16.xpose.msra.mxu0 %v969
      %987 = vmatprep.subr.bf16.mxu0 0
      %988 = vmatpush2.bf16.xpose.msra.mxu0 0
      %989 = vmatprep.subr.bf16.mxu0 0
      %990 = vmatpush2.bf16.xpose.msra.mxu0 0
      %991 = vmatprep.subr.bf16.mxu0 0
      %992 = vmatpush2.bf16.xpose.msra.mxu0 0
      %993 = vmatprep.subr.bf16.mxu0 0
      %994 = vmatpush2.bf16.xpose.msra.mxu0 0
      %995 = vmatprep.subr.bf16.mxu0 0
      %996 = vmatpush2.bf16.xpose.msra.mxu0 0
      %997 = vmatprep.subr.bf16.mxu0 0
      %998 = vmatpush2.bf16.xpose.msra.mxu0 0
      %999 = vmatprep.subr.bf16.mxu0 0
      %1000 = vmatpush2.bf16.xpose.msra.mxu0 0
      %1001 = vmatprep.subr.bf16.mxu0 0
      %1002 = vmatpush2.bf16.xpose.msra.mxu0 0
      %1003 = vmatprep.mubr.bf16.mxu0 0
      %1004 = vmatmul.mubr.bf16.gmra.mxu0 %v966
      %v1005 = vpop.f32.mrf.mxu0
      %v1006 = vadd.f32 %v861, %v1005
      %v1007 = vpop.f32.mrf.mxu0
      %v1008 = vpop.f32.mrf.mxu0
      %v1009 = vpop.f32.mrf.mxu0
      %1010 = vdwg.mxu0
      %1012 = vrot.lane.b32.xlu0 %v855, 96
      %v1013 = vpop.permute.xlu0 %1012
      %v1015 = vsel %vm866, %v855, 0
      %v1018 = vsel %vm866, %v1013, 0
      %1020 = vmatprep.subr.bf16.mxu0 0
      %1021 = vmatpush1.bf16.xpose.msra.mxu0 0
      %1022 = vmatprep.subr.bf16.mxu0 0
      %1023 = vmatpush1.bf16.xpose.msra.mxu0 0
      %1024 = vmatprep.subr.bf16.mxu0 0
      %1025 = vmatpush1.bf16.xpose.msra.mxu0 0
      %1026 = vmatprep.subr.bf16.mxu0 0
      %1027 = vmatpush1.bf16.xpose.msra.mxu0 0
      %1028 = vmatprep.subr.bf16.mxu0 0
      %1029 = vmatpush1.bf16.xpose.msra.mxu0 0
      %1030 = vmatprep.subr.bf16.mxu0 0
      %1031 = vmatpush1.bf16.xpose.msra.mxu0 0
      %1032 = vmatprep.subr.bf16.mxu0 0
      %1033 = vmatpush1.bf16.xpose.msra.mxu0 0
      %1034 = vmatprep.subr.bf16.mxu0 0
      %1035 = vmatpush1.bf16.xpose.msra.mxu0 %v1018
      %1036 = vmatprep.subr.bf16.mxu0 0
      %1037 = vmatpush2.bf16.xpose.msra.mxu0 0
      %1038 = vmatprep.subr.bf16.mxu0 0
      %1039 = vmatpush2.bf16.xpose.msra.mxu0 0
      %1040 = vmatprep.subr.bf16.mxu0 0
      %1041 = vmatpush2.bf16.xpose.msra.mxu0 0
      %1042 = vmatprep.subr.bf16.mxu0 0
      %1043 = vmatpush2.bf16.xpose.msra.mxu0 0
      %1044 = vmatprep.subr.bf16.mxu0 0
      %1045 = vmatpush2.bf16.xpose.msra.mxu0 0
      %1046 = vmatprep.subr.bf16.mxu0 0
      %1047 = vmatpush2.bf16.xpose.msra.mxu0 0
      %1048 = vmatprep.subr.bf16.mxu0 0
      %1049 = vmatpush2.bf16.xpose.msra.mxu0 0
      %1050 = vmatprep.subr.bf16.mxu0 0
      %1051 = vmatpush2.bf16.xpose.msra.mxu0 0
      %1052 = vmatprep.mubr.bf16.mxu0 0
      %1053 = vmatmul.mubr.bf16.gmra.mxu0 %v1015
      %v1054 = vpop.f32.mrf.mxu0
      %v1055 = vadd.f32 %v861, %v1054
      %v1056 = vpop.f32.mrf.mxu0
      %v1057 = vpop.f32.mrf.mxu0
      %v1058 = vpop.f32.mrf.mxu0
      %1059 = vdwg.mxu0
      %v1060 = vsel %vm866, %v908, -inf
      %1061 = vmax.xlane.f32.xlu0 %v1060
      %v1062 = vpop.xlane.xlu0 %1061
      %v1063 = vsel %vm866, %v957, -inf
      %1064 = vmax.xlane.f32.xlu0 %v1063
      %v1065 = vpop.xlane.xlu0 %1064
      %v1066 = vsel %vm866, %v1006, -inf
      %1067 = vmax.xlane.f32.xlu0 %v1066
      %v1068 = vpop.xlane.xlu0 %1067
      %v1069 = vsel %vm866, %v1055, -inf
      %1070 = vmax.xlane.f32.xlu0 %v1069
      %v1071 = vpop.xlane.xlu0 %1070
      %v1072 = vsub.f32 %v908, %v1062
      %v1073 = vsub.f32 %v957, %v1065
      %v1074 = vsub.f32 %v1006, %v1068
      %v1075 = vsub.f32 %v1055, %v1071
      %v1076 = vmul.f32 %v1072, 1.442695
      %v1077 = vpow.pop %v1076
      %v1078 = vmul.f32 %v1073, 1.442695
      %v1079 = vpow.pop %v1078
      %v1080 = vmul.f32 %v1074, 1.442695
      %v1081 = vpow.pop %v1080
      %v1082 = vmul.f32 %v1075, 1.442695
      %v1083 = vpow.pop %v1082
      %v1084 = vsel %vm866, %v1077, 0.0
      %1085 = vadd.xlane.f32.xlu0 %v1084
      %v1086 = vpop.xlane.xlu0 %1085
      %v1087 = vsel %vm866, %v1079, 0.0
      %1088 = vadd.xlane.f32.xlu0 %v1087
      %v1089 = vpop.xlane.xlu0 %1088
      %v1090 = vsel %vm866, %v1081, 0.0
      %1091 = vadd.xlane.f32.xlu0 %v1090
      %v1092 = vpop.xlane.xlu0 %1091
      %v1093 = vsel %vm866, %v1083, 0.0
      %1094 = vadd.xlane.f32.xlu0 %v1093
      %v1095 = vpop.xlane.xlu0 %1094
      %v1096 = vrcp.pop %v1086
      %v1097 = vrcp.pop %v1089
      %v1098 = vrcp.pop %v1092
      %v1099 = vrcp.pop %v1095
      %v1100 = vmul.f32 %v1077, %v1096
      %v1101 = vmul.f32 %v1079, %v1097
      %v1102 = vmul.f32 %v1081, %v1098
      %v1103 = vmul.f32 %v1083, %v1099
      %v1104 = vpack.c.bf16 %v1100, %v1100
      %v1105 = vpack.c.bf16 %v1101, %v1101
      %v1106 = vpack.c.bf16 %v1102, %v1102
      %v1107 = vpack.c.bf16 %v1103, %v1103
      %1108 = vrot.lane.b32.xlu0 %v852, 64
      %v1109 = vpop.permute.xlu0 %1108
      %v1111 = vsel %vm866, %v1104, 0
      %vm1113 = vcmask 1043456
      %v1115 = vsel %vm1113, %v1109, 0
      %1117 = vmatprep.subr.bf16.mxu0 0
      %1118 = vmatpush1.bf16.msra.mxu0 0
      %1119 = vmatprep.subr.bf16.mxu0 0
      %1120 = vmatpush1.bf16.msra.mxu0 0
      %1121 = vmatprep.subr.bf16.mxu0 0
      %1122 = vmatpush1.bf16.msra.mxu0 0
      %1123 = vmatprep.subr.bf16.mxu0 0
      %1124 = vmatpush1.bf16.msra.mxu0 0
      %1125 = vmatprep.subr.bf16.mxu0 0
      %1126 = vmatpush1.bf16.msra.mxu0 0
      %1127 = vmatprep.subr.bf16.mxu0 0
      %1128 = vmatpush1.bf16.msra.mxu0 0
      %1129 = vmatprep.subr.bf16.mxu0 0
      %1130 = vmatpush1.bf16.msra.mxu0 0
      %1131 = vmatprep.subr.bf16.mxu0 0
      %1132 = vmatpush1.bf16.msra.mxu0 %v1115
      %1133 = vmatprep.subr.bf16.mxu0 0
      %1134 = vmatpush2.bf16.msra.mxu0 0
      %1135 = vmatprep.subr.bf16.mxu0 0
      %1136 = vmatpush2.bf16.msra.mxu0 0
      %1137 = vmatprep.subr.bf16.mxu0 0
      %1138 = vmatpush2.bf16.msra.mxu0 0
      %1139 = vmatprep.subr.bf16.mxu0 0
      %1140 = vmatpush2.bf16.msra.mxu0 0
      %1141 = vmatprep.subr.bf16.mxu0 0
      %1142 = vmatpush2.bf16.msra.mxu0 0
      %1143 = vmatprep.subr.bf16.mxu0 0
      %1144 = vmatpush2.bf16.msra.mxu0 0
      %1145 = vmatprep.subr.bf16.mxu0 0
      %1146 = vmatpush2.bf16.msra.mxu0 0
      %1147 = vmatprep.subr.bf16.mxu0 0
      %1148 = vmatpush2.bf16.msra.mxu0 0
      %1149 = vmatprep.mubr.bf16.mxu0 0
      %1150 = vmatmul.mubr.bf16.gmra.mxu0 %v1111
      %v1151 = vpop.f32.mrf.mxu0
      %v1152 = vadd.f32 0.0, %v1151
      %v1153 = vpop.f32.mrf.mxu0
      %v1154 = vpop.f32.mrf.mxu0
      %v1155 = vpop.f32.mrf.mxu0
      %1156 = vdwg.mxu0
      %1157 = vrot.lane.b32.xlu0 %v853, 64
      %v1158 = vpop.permute.xlu0 %1157
      %v1160 = vsel %vm866, %v1105, 0
      %v1163 = vsel %vm1113, %v1158, 0
      %1165 = vmatprep.subr.bf16.mxu0 0
      %1166 = vmatpush1.bf16.msra.mxu0 0
      %1167 = vmatprep.subr.bf16.mxu0 0
      %1168 = vmatpush1.bf16.msra.mxu0 0
      %1169 = vmatprep.subr.bf16.mxu0 0
      %1170 = vmatpush1.bf16.msra.mxu0 0
      %1171 = vmatprep.subr.bf16.mxu0 0
      %1172 = vmatpush1.bf16.msra.mxu0 0
      %1173 = vmatprep.subr.bf16.mxu0 0
      %1174 = vmatpush1.bf16.msra.mxu0 0
      %1175 = vmatprep.subr.bf16.mxu0 0
      %1176 = vmatpush1.bf16.msra.mxu0 0
      %1177 = vmatprep.subr.bf16.mxu0 0
      %1178 = vmatpush1.bf16.msra.mxu0 0
      %1179 = vmatprep.subr.bf16.mxu0 0
      %1180 = vmatpush1.bf16.msra.mxu0 %v1163
      %1181 = vmatprep.subr.bf16.mxu0 0
      %1182 = vmatpush2.bf16.msra.mxu0 0
      %1183 = vmatprep.subr.bf16.mxu0 0
      %1184 = vmatpush2.bf16.msra.mxu0 0
      %1185 = vmatprep.subr.bf16.mxu0 0
      %1186 = vmatpush2.bf16.msra.mxu0 0
      %1187 = vmatprep.subr.bf16.mxu0 0
      %1188 = vmatpush2.bf16.msra.mxu0 0
      %1189 = vmatprep.subr.bf16.mxu0 0
      %1190 = vmatpush2.bf16.msra.mxu0 0
      %1191 = vmatprep.subr.bf16.mxu0 0
      %1192 = vmatpush2.bf16.msra.mxu0 0
      %1193 = vmatprep.subr.bf16.mxu0 0
      %1194 = vmatpush2.bf16.msra.mxu0 0
      %1195 = vmatprep.subr.bf16.mxu0 0
      %1196 = vmatpush2.bf16.msra.mxu0 0
      %1197 = vmatprep.mubr.bf16.mxu0 0
      %1198 = vmatmul.mubr.bf16.gmra.mxu0 %v1160
      %v1199 = vpop.f32.mrf.mxu0
      %v1200 = vadd.f32 0.0, %v1199
      %v1201 = vpop.f32.mrf.mxu0
      %v1202 = vpop.f32.mrf.mxu0
      %v1203 = vpop.f32.mrf.mxu0
      %1204 = vdwg.mxu0
      %1205 = vrot.lane.b32.xlu0 %v854, 64
      %v1206 = vpop.permute.xlu0 %1205
      %v1208 = vsel %vm866, %v1106, 0
      %v1211 = vsel %vm1113, %v1206, 0
      %1213 = vmatprep.subr.bf16.mxu0 0
      %1214 = vmatpush1.bf16.msra.mxu0 0
      %1215 = vmatprep.subr.bf16.mxu0 0
      %1216 = vmatpush1.bf16.msra.mxu0 0
      %1217 = vmatprep.subr.bf16.mxu0 0
      %1218 = vmatpush1.bf16.msra.mxu0 0
      %1219 = vmatprep.subr.bf16.mxu0 0
      %1220 = vmatpush1.bf16.msra.mxu0 0
      %1221 = vmatprep.subr.bf16.mxu0 0
      %1222 = vmatpush1.bf16.msra.mxu0 0
      %1223 = vmatprep.subr.bf16.mxu0 0
      %1224 = vmatpush1.bf16.msra.mxu0 0
      %1225 = vmatprep.subr.bf16.mxu0 0
      %1226 = vmatpush1.bf16.msra.mxu0 0
      %1227 = vmatprep.subr.bf16.mxu0 0
      %1228 = vmatpush1.bf16.msra.mxu0 %v1211
      %1229 = vmatprep.subr.bf16.mxu0 0
      %1230 = vmatpush2.bf16.msra.mxu0 0
      %1231 = vmatprep.subr.bf16.mxu0 0
      %1232 = vmatpush2.bf16.msra.mxu0 0
      %1233 = vmatprep.subr.bf16.mxu0 0
      %1234 = vmatpush2.bf16.msra.mxu0 0
      %1235 = vmatprep.subr.bf16.mxu0 0
      %1236 = vmatpush2.bf16.msra.mxu0 0
      %1237 = vmatprep.subr.bf16.mxu0 0
      %1238 = vmatpush2.bf16.msra.mxu0 0
      %1239 = vmatprep.subr.bf16.mxu0 0
      %1240 = vmatpush2.bf16.msra.mxu0 0
      %1241 = vmatprep.subr.bf16.mxu0 0
      %1242 = vmatpush2.bf16.msra.mxu0 0
      %1243 = vmatprep.subr.bf16.mxu0 0
      %1244 = vmatpush2.bf16.msra.mxu0 0
      %1245 = vmatprep.mubr.bf16.mxu0 0
      %1246 = vmatmul.mubr.bf16.gmra.mxu0 %v1208
      %v1247 = vpop.f32.mrf.mxu0
      %v1248 = vadd.f32 0.0, %v1247
      %v1249 = vpop.f32.mrf.mxu0
      %v1250 = vpop.f32.mrf.mxu0
      %v1251 = vpop.f32.mrf.mxu0
      %1252 = vdwg.mxu0
      %1253 = vrot.lane.b32.xlu0 %v855, 64
      %v1254 = vpop.permute.xlu0 %1253
      %v1256 = vsel %vm866, %v1107, 0
      %v1259 = vsel %vm1113, %v1254, 0
      %1261 = vmatprep.subr.bf16.mxu0 0
      %1262 = vmatpush1.bf16.msra.mxu0 0
      %1263 = vmatprep.subr.bf16.mxu0 0
      %1264 = vmatpush1.bf16.msra.mxu0 0
      %1265 = vmatprep.subr.bf16.mxu0 0
      %1266 = vmatpush1.bf16.msra.mxu0 0
      %1267 = vmatprep.subr.bf16.mxu0 0
      %1268 = vmatpush1.bf16.msra.mxu0 0
      %1269 = vmatprep.subr.bf16.mxu0 0
      %1270 = vmatpush1.bf16.msra.mxu0 0
      %1271 = vmatprep.subr.bf16.mxu0 0
      %1272 = vmatpush1.bf16.msra.mxu0 0
      %1273 = vmatprep.subr.bf16.mxu0 0
      %1274 = vmatpush1.bf16.msra.mxu0 0
      %1275 = vmatprep.subr.bf16.mxu0 0
      %1276 = vmatpush1.bf16.msra.mxu0 %v1259
      %1277 = vmatprep.subr.bf16.mxu0 0
      %1278 = vmatpush2.bf16.msra.mxu0 0
      %1279 = vmatprep.subr.bf16.mxu0 0
      %1280 = vmatpush2.bf16.msra.mxu0 0
      %1281 = vmatprep.subr.bf16.mxu0 0
      %1282 = vmatpush2.bf16.msra.mxu0 0
      %1283 = vmatprep.subr.bf16.mxu0 0
      %1284 = vmatpush2.bf16.msra.mxu0 0
      %1285 = vmatprep.subr.bf16.mxu0 0
      %1286 = vmatpush2.bf16.msra.mxu0 0
      %1287 = vmatprep.subr.bf16.mxu0 0
      %1288 = vmatpush2.bf16.msra.mxu0 0
      %1289 = vmatprep.subr.bf16.mxu0 0
      %1290 = vmatpush2.bf16.msra.mxu0 0
      %1291 = vmatprep.subr.bf16.mxu0 0
      %1292 = vmatpush2.bf16.msra.mxu0 0
      %1293 = vmatprep.mubr.bf16.mxu0 0
      %1294 = vmatmul.mubr.bf16.gmra.mxu0 %v1256
      %v1295 = vpop.f32.mrf.mxu0
      %v1296 = vadd.f32 0.0, %v1295
      %v1297 = vpop.f32.mrf.mxu0
      %v1298 = vpop.f32.mrf.mxu0
      %v1299 = vpop.f32.mrf.mxu0
      %1300 = vdwg.mxu0
      %1302 = vrot.lane.b32.xlu0 %v1200, 8
      %v1303 = vpop.permute.xlu0 %1302
      %1306 = vrot.lane.b32.xlu0 %v1248, 16
      %v1307 = vpop.permute.xlu0 %1306
      %1310 = vrot.lane.b32.xlu0 %v1296, 24
      %v1311 = vpop.permute.xlu0 %1310
      %v1313 = vsel %vm866, %v1152, %v1303
      %vm1314 = vcmask 130048
      %v1315 = vsel %vm1314, %v1313, %v1307
      %vm1316 = vcmask 195584
      %v1317 = vsel %vm1316, %v1315, %v1311
      %v1318 = vld [vmem:[%s699] sm:$0xf]
      %v1319 = vld [vmem:[%s699 + $0x4] sm:$0xf]
      %v1320 = vld [vmem:[%s699 + $0x8] sm:$0xf]
      %v1321 = vld [vmem:[%s699 + $0xc] sm:$0xf]
      %v1322 = vpack.c.bf16 %v1317, %v1317
      %v1323 = vld [vmem:[%s702] sm:$0x1]
      %v1325 = vlaneseq
      %v1326 = vshrl.u32 %v1325, 7
      %v1327 = vsub.s32 0, %v1326
      %v1328 = vrot.slane %v1323, %v1327
      %v1334 = vunpack.c.l.b16 %v1318
      %v1335 = vunpack.c.l.b16 %v1319
      %v1336 = vunpack.c.l.b16 %v1320
      %v1337 = vunpack.c.l.b16 %v1321
      %v1338 = vpack.c.b16 %v1335, %v1334
      %v1339 = vpack.c.b16 %v1337, %v1336
      %v1343 = vsel %vm798, %v1322, 0
      %1345 = vmatprep.subr.bf16.mxu0 0
      %1346 = vmatpush1.bf16.msra.mxu0 0
      %1347 = vmatprep.subr.bf16.mxu0 0
      %1348 = vmatpush1.bf16.msra.mxu0 0
      %1349 = vmatprep.subr.bf16.mxu0 0
      %1350 = vmatpush1.bf16.msra.mxu0 0
      %1351 = vmatprep.subr.bf16.mxu0 0
      %1352 = vmatpush1.bf16.msra.mxu0 0
      %1353 = vmatprep.subr.bf16.mxu0 0
      %1354 = vmatpush1.bf16.msra.mxu0 0
      %1355 = vmatprep.subr.bf16.mxu0 0
      %1356 = vmatpush1.bf16.msra.mxu0 0
      %1357 = vmatprep.subr.bf16.mxu0 0
      %1358 = vmatpush1.bf16.msra.mxu0 %v1339
      %1359 = vmatprep.subr.bf16.mxu0 0
      %1360 = vmatpush1.bf16.msra.mxu0 %v1338
      %1361 = vmatprep.subr.bf16.mxu0 0
      %1362 = vmatpush2.bf16.msra.mxu0 0
      %1363 = vmatprep.subr.bf16.mxu0 0
      %1364 = vmatpush2.bf16.msra.mxu0 0
      %1365 = vmatprep.subr.bf16.mxu0 0
      %1366 = vmatpush2.bf16.msra.mxu0 0
      %1367 = vmatprep.subr.bf16.mxu0 0
      %1368 = vmatpush2.bf16.msra.mxu0 0
      %1369 = vmatprep.subr.bf16.mxu0 0
      %1370 = vmatpush2.bf16.msra.mxu0 0
      %1371 = vmatprep.subr.bf16.mxu0 0
      %1372 = vmatpush2.bf16.msra.mxu0 0
      %1373 = vmatprep.subr.bf16.mxu0 0
      %1374 = vmatpush2.bf16.msra.mxu0 0
      %1375 = vmatprep.subr.bf16.mxu0 0
      %1376 = vmatpush2.bf16.msra.mxu0 0
      %1377 = vmatprep.mubr.bf16.mxu0 0
      %1378 = vmatmul.mubr.bf16.gmra.mxu0 %v1343
      %v1379 = vpop.f32.mrf.mxu0
      %v1380 = vadd.f32 %v1328, %v1379
      %v1381 = vpop.f32.mrf.mxu0
      %v1382 = vpop.f32.mrf.mxu0
      %v1383 = vpop.f32.mrf.mxu0
      %1384 = vdwg.mxu0
      %v1385 = vadd.f32 %v773, %v1380
      %v1386 = vld [vmem:[%s705] sm:$0x1]
      %v1387 = vld [vmem:[%s708] sm:$0x1]
      %v1388 = vsel %vm798, %v1385, 0.0
      %1389 = vadd.xlane.f32.xlu0 %v1388
      %v1390 = vpop.xlane.xlu0 %1389
      %v1391 = vrcp.pop 32.0
      %v1392 = vmul.f32 %v1390, %v1391
      %v1393 = vsub.f32 %v1385, %v1392
      %v1394 = vmul.f32 %v1393, %v1393
      %v1395 = vsel %vm798, %v1394, 0.0
      %1396 = vadd.xlane.f32.xlu0 %v1395
      %v1397 = vpop.xlane.xlu0 %1396
      %v1398 = vmul.f32 %v1397, %v1391
      %v1399 = vadd.f32 %v1398, 1e-12
      %v1400 = vrsqrt.pop %v1399
      %v1401 = vmul.f32 %v1393, %v1400
      %v1403 = vlaneseq
      %v1404 = vshrl.u32 %v1403, 7
      %v1405 = vsub.s32 0, %v1404
      %v1406 = vrot.slane %v1386, %v1405
      %v1408 = vmul.f32 %v1401, %v1406
      %v1410 = vlaneseq
      %v1411 = vshrl.u32 %v1410, 7
      %v1412 = vsub.s32 0, %v1411
      %v1413 = vrot.slane %v1387, %v1412
      %v1415 = vadd.f32 %v1408, %v1413
      %v1416 = vld [vmem:[%s713] sm:$0xf]
      %v1417 = vld [vmem:[%s713 + $0x4] sm:$0xf]
      %v1418 = vld [vmem:[%s713 + $0x8] sm:$0xf]
      %v1419 = vld [vmem:[%s713 + $0xc] sm:$0xf]
      %v1420 = vpack.c.bf16 %v1415, %v1415
      %v1421 = vld [vmem:[%s716] sm:$0x1]
      %v1423 = vlaneseq
      %v1424 = vshrl.u32 %v1423, 7
      %v1425 = vsub.s32 0, %v1424
      %v1426 = vrot.slane %v1421, %v1425
      %v1432 = vunpack.c.l.b16 %v1416
      %v1433 = vunpack.c.l.b16 %v1417
      %v1434 = vunpack.c.l.b16 %v1418
      %v1435 = vunpack.c.l.b16 %v1419
      %v1436 = vpack.c.b16 %v1433, %v1432
      %v1437 = vpack.c.b16 %v1435, %v1434
      %v1441 = vsel %vm798, %v1420, 0
      %1443 = vmatprep.subr.bf16.mxu0 0
      %1444 = vmatpush1.bf16.msra.mxu0 0
      %1445 = vmatprep.subr.bf16.mxu0 0
      %1446 = vmatpush1.bf16.msra.mxu0 0
      %1447 = vmatprep.subr.bf16.mxu0 0
      %1448 = vmatpush1.bf16.msra.mxu0 0
      %1449 = vmatprep.subr.bf16.mxu0 0
      %1450 = vmatpush1.bf16.msra.mxu0 0
      %1451 = vmatprep.subr.bf16.mxu0 0
      %1452 = vmatpush1.bf16.msra.mxu0 0
      %1453 = vmatprep.subr.bf16.mxu0 0
      %1454 = vmatpush1.bf16.msra.mxu0 0
      %1455 = vmatprep.subr.bf16.mxu0 0
      %1456 = vmatpush1.bf16.msra.mxu0 %v1437
      %1457 = vmatprep.subr.bf16.mxu0 0
      %1458 = vmatpush1.bf16.msra.mxu0 %v1436
      %1459 = vmatprep.subr.bf16.mxu0 0
      %1460 = vmatpush2.bf16.msra.mxu0 0
      %1461 = vmatprep.subr.bf16.mxu0 0
      %1462 = vmatpush2.bf16.msra.mxu0 0
      %1463 = vmatprep.subr.bf16.mxu0 0
      %1464 = vmatpush2.bf16.msra.mxu0 0
      %1465 = vmatprep.subr.bf16.mxu0 0
      %1466 = vmatpush2.bf16.msra.mxu0 0
      %1467 = vmatprep.subr.bf16.mxu0 0
      %1468 = vmatpush2.bf16.msra.mxu0 0
      %1469 = vmatprep.subr.bf16.mxu0 0
      %1470 = vmatpush2.bf16.msra.mxu0 0
      %1471 = vmatprep.subr.bf16.mxu0 0
      %1472 = vmatpush2.bf16.msra.mxu0 0
      %1473 = vmatprep.subr.bf16.mxu0 0
      %1474 = vmatpush2.bf16.msra.mxu0 0
      %1475 = vmatprep.mubr.bf16.mxu0 0
      %1476 = vmatmul.mubr.bf16.gmra.mxu0 %v1441
      %v1477 = vpop.f32.mrf.mxu0
      %v1478 = vadd.f32 %v1426, %v1477
      %v1479 = vpop.f32.mrf.mxu0
      %v1480 = vpop.f32.mrf.mxu0
      %v1481 = vpop.f32.mrf.mxu0
      %1482 = vdwg.mxu0
      %v1483 = vmul.f32 %v1478, 0.5
      %v1484 = vmul.f32 %v1478, 0.044715
      %v1485 = vmul.f32 %v1484, %v1478
      %v1486 = vmul.f32 %v1485, %v1478
      %v1487 = vadd.f32 %v1478, %v1486
      %v1488 = vmul.f32 %v1487, 0.7978846
      %v1489 = vtanh.pop %v1488
      %v1490 = vadd.f32 %v1489, 1.0
      %v1491 = vmul.f32 %v1483, %v1490
      %v1492 = vld [vmem:[%s721] sm:$0xf]
      %v1493 = vld [vmem:[%s721 + $0x4] sm:$0xf]
      %v1494 = vld [vmem:[%s721 + $0x8] sm:$0xf]
      %v1495 = vld [vmem:[%s721 + $0xc] sm:$0xf]
      %v1496 = vld [vmem:[%s721 + $0x10] sm:$0xf]
      %v1497 = vld [vmem:[%s721 + $0x14] sm:$0xf]
      %v1498 = vld [vmem:[%s721 + $0x18] sm:$0xf]
      %v1499 = vld [vmem:[%s721 + $0x1c] sm:$0xf]
      %v1500 = vpack.c.bf16 %v1491, %v1491
      %v1501 = vld [vmem:[%s724] sm:$0x1]
      %v1503 = vlaneseq
      %v1504 = vshrl.u32 %v1503, 7
      %v1505 = vsub.s32 0, %v1504
      %v1506 = vrot.slane %v1501, %v1505
      %v1516 = vunpack.c.l.b16 %v1492
      %v1517 = vunpack.c.l.b16 %v1493
      %v1518 = vunpack.c.l.b16 %v1494
      %v1519 = vunpack.c.l.b16 %v1495
      %v1520 = vunpack.c.l.b16 %v1496
      %v1521 = vunpack.c.l.b16 %v1497
      %v1522 = vunpack.c.l.b16 %v1498
      %v1523 = vunpack.c.l.b16 %v1499
      %v1524 = vpack.c.b16 %v1517, %v1516
      %v1525 = vpack.c.b16 %v1519, %v1518
      %v1526 = vpack.c.b16 %v1521, %v1520
      %v1527 = vpack.c.b16 %v1523, %v1522
      %vm1532 = vcmask 523264
      %v1534 = vsel %vm1532, %v1500, 0
      %1536 = vmatprep.subr.bf16.mxu0 0
      %1537 = vmatpush1.bf16.msra.mxu0 0
      %1538 = vmatprep.subr.bf16.mxu0 0
      %1539 = vmatpush1.bf16.msra.mxu0 0
      %1540 = vmatprep.subr.bf16.mxu0 0
      %1541 = vmatpush1.bf16.msra.mxu0 0
      %1542 = vmatprep.subr.bf16.mxu0 0
      %1543 = vmatpush1.bf16.msra.mxu0 0
      %1544 = vmatprep.subr.bf16.mxu0 0
      %1545 = vmatpush1.bf16.msra.mxu0 %v1527
      %1546 = vmatprep.subr.bf16.mxu0 0
      %1547 = vmatpush1.bf16.msra.mxu0 %v1526
      %1548 = vmatprep.subr.bf16.mxu0 0
      %1549 = vmatpush1.bf16.msra.mxu0 %v1525
      %1550 = vmatprep.subr.bf16.mxu0 0
      %1551 = vmatpush1.bf16.msra.mxu0 %v1524
      %1552 = vmatprep.subr.bf16.mxu0 0
      %1553 = vmatpush2.bf16.msra.mxu0 0
      %1554 = vmatprep.subr.bf16.mxu0 0
      %1555 = vmatpush2.bf16.msra.mxu0 0
      %1556 = vmatprep.subr.bf16.mxu0 0
      %1557 = vmatpush2.bf16.msra.mxu0 0
      %1558 = vmatprep.subr.bf16.mxu0 0
      %1559 = vmatpush2.bf16.msra.mxu0 0
      %1560 = vmatprep.subr.bf16.mxu0 0
      %1561 = vmatpush2.bf16.msra.mxu0 0
      %1562 = vmatprep.subr.bf16.mxu0 0
      %1563 = vmatpush2.bf16.msra.mxu0 0
      %1564 = vmatprep.subr.bf16.mxu0 0
      %1565 = vmatpush2.bf16.msra.mxu0 0
      %1566 = vmatprep.subr.bf16.mxu0 0
      %1567 = vmatpush2.bf16.msra.mxu0 0
      %1568 = vmatprep.mubr.bf16.mxu0 0
      %1569 = vmatmul.mubr.bf16.gmra.mxu0 %v1534
      %v1570 = vpop.f32.mrf.mxu0
      %v1571 = vadd.f32 %v1506, %v1570
      %v1572 = vpop.f32.mrf.mxu0
      %v1573 = vpop.f32.mrf.mxu0
      %v1574 = vpop.f32.mrf.mxu0
      %1575 = vdwg.mxu0
      %v1576 = vadd.f32 %v1415, %v1571
      %v1577 = vld [vmem:[%s727] sm:$0x1]
      %v1578 = vld [vmem:[%s730] sm:$0x1]
      %v1579 = vsel %vm798, %v1576, 0.0
      %1580 = vadd.xlane.f32.xlu0 %v1579
      %v1581 = vpop.xlane.xlu0 %1580
      %v1582 = vmul.f32 %v1581, %v1391
      %v1583 = vsub.f32 %v1576, %v1582
      %v1584 = vmul.f32 %v1583, %v1583
      %v1585 = vsel %vm798, %v1584, 0.0
      %1586 = vadd.xlane.f32.xlu0 %v1585
      %v1587 = vpop.xlane.xlu0 %1586
      %v1588 = vmul.f32 %v1587, %v1391
      %v1589 = vadd.f32 %v1588, 1e-12
      %v1590 = vrsqrt.pop %v1589
      %v1591 = vmul.f32 %v1583, %v1590
      %v1593 = vlaneseq
      %v1594 = vshrl.u32 %v1593, 7
      %v1595 = vsub.s32 0, %v1594
      %v1596 = vrot.slane %v1577, %v1595
      %v1598 = vmul.f32 %v1591, %v1596
      %v1600 = vlaneseq
      %v1601 = vshrl.u32 %v1600, 7
      %v1602 = vsub.s32 0, %v1601
      %v1603 = vrot.slane %v1578, %v1602
      %v1605 = vadd.f32 %v1598, %v1603
      %1606 = vst.msk [vmem:[%s734] sm:$0xff] %vm798, %v1605
      %p1607 = scmp.lt.s32.totalorder %s31, 1
      %s1608 = scalar_select %p1607, %s31, 1
      %s1609 = smul.addr %s1608, 8
      %s1610 = scalar_lea.vmem %s16, %s1609
      // Predicated region
      $region89: #{_lambda_.2} parent=83 // pred_check
        %p1611 = pneg %p463
      $region90: #{_lambda_.2} parent=83 // pred_check_branch
        %1613 = sbr.rel (%p1611) target = $region92
      $region91: #{_lambda_.2} parent=83 // pred_region
        _
      $region92: #{_lambda_.2} parent=83 // pred_fallthru
        _
    $region84: #{_lambda_.2} parent=5 // pred_fallthru
      _
    %p1614 = scmp.le.s32.totalorder 2, %s22
    // Predicated region
    $region93: #{_lambda_.2} parent=5 // pred_check
      %p1615 = pneg %p1614
    $region94: #{_lambda_.2} parent=5 // pred_check_branch
      %1617 = sbr.rel (%p1615) target = $region96
    $region95: #{_lambda_.2} parent=5 // pred_region
      %s1618 = ssub.s32 %s22, 2
      // Predicated region
      $region97: #{_lambda_.2} parent=95 // pred_check
        %p1619 = pneg %p469
      $region98: #{_lambda_.2} parent=95 // pred_check_branch
        %1621 = sbr.rel (%p1619) target = $region100
      $region99: #{_lambda_.2} parent=95 // pred_region
        %p1622 = scmp.lt.s32.totalorder %s33, 1
        %s1623 = scalar_select %p1622, %s33, 1
        %s1624 = smul.addr %s1623, 8
        %s1625 = scalar_lea.vmem %s16, %s1624
      $region100: #{_lambda_.2} parent=95 // pred_fallthru
        _
    $region96: #{_lambda_.2} parent=5 // pred_fallthru
      _
  $region6: #{_lambda_.2} parent=0 // loop_footer
    %s26 = sadd.s32 1, %s22
  $region7: #{_lambda_.2} parent=0 // loop_footer_branch
    %21 = sbr.rel target = $region3
  $region8: #{_lambda_.2} parent=0 // loop_exit
    _

// kernel: _lambda_.3
$region0: #{_lambda_.3}
  #allocation0 [shape = 'u32[]', space=smem, size = 0x4, offset = 0x4, fixed_abs, tag = 'smem constant byte address 0x4 - core index']
  #allocation1 [shape = 'u32[144,128]{1,0:T(1,128)}', space=vmem, size = 0x12000, scoped, tag = 'internal scratch']
  #allocation2 [shape = 'f32[16,32]{1,0:T(8,128)}', space=vmem, size = 0x2000, scoped, tag = 'scratch operand']
  #allocation3 [shape = 'f32[16,1]{1,0:T(8,128)}', space=vmem, size = 0x2000, scoped, tag = 'scratch operand']
  #allocation4 [shape = 'f32[16,1]{1,0:T(8,128)}', space=vmem, size = 0x2000, scoped, tag = 'scratch operand']
  #allocation5 [shape = 'f32[16,1]{1,0:T(8,128)}', space=vmem, size = 0x2000, scoped, tag = 'scratch operand']
  %s0 = inlined_call_operand.vmem [shape: f32[16,32], index: 0, kind: input, shape index: {}]
  %s1 = inlined_call_operand.vmem [shape: s32[16,1], index: 1, kind: input, shape index: {}]
  %s2 = inlined_call_operand.vmem [shape: bf16[32,32], index: 2, kind: input, shape index: {}]
  %s3 = inlined_call_operand.vmem [shape: f32[1,32], index: 3, kind: input, shape index: {}]
  %s4 = inlined_call_operand.vmem [shape: f32[1,32], index: 4, kind: input, shape index: {}]
  %s5 = inlined_call_operand.vmem [shape: f32[1,32], index: 5, kind: input, shape index: {}]
  %s6 = inlined_call_operand.vmem [shape: bf16[32,256], index: 6, kind: input, shape index: {}]
  %s7 = inlined_call_operand.vmem [shape: f32[1,256], index: 7, kind: input, shape index: {}]
  %s8 = inlined_call_operand.hbm [shape: f32[1,1], index: 8, kind: output, shape index: {}]
  %s9 = sld [smem:[#allocation0]]
  $region114: #{_lambda_.3} parent=0
    _
  %s11 = ssub.s32 1, %s9
  %s12 = scalar_select 0, %s11, %s9
  $region1: #{_lambda_.3} parent=0
    #allocation6 [shape = 'u8[16384]{0}', space=vmem, size = 0x4000, scoped, tag = 'input window, operand 6']
    #allocation7 [shape = 'u8[512]{0}', space=vmem, size = 0x400, scoped, tag = 'output window, operand 0, single buffered']
    #allocation8 [shape = 's32[2]{0}', space=sflag, size = 0x8, scoped, tag = 'scoped memory for _lambda_.3']
    %13 = vsyncpa [#allocation8], 0
    loop: start=0, step=1, limit=4
    $region2: #{_lambda_.3} parent=1 // loop_pre_header
      _
    $region3: #{_lambda_.3} parent=1 // loop_header
      %s15 = sphi 0, %s19
      %p16 = scmp.ge.s32.totalorder %s15, 4
      %s23 = sphi 0, %s23
      %s25 = sphi 0, %s23
      %s26 = sphi 0, %s25
      %s40 = sphi 0, %s26
      %s44 = sphi 0, %s44
      %s46 = sphi 0, %s44
      %s47 = sphi 0, %s46
      %s61 = sphi 0, %s47
      %s65 = sphi 0, %s65
      %s67 = sphi 0, %s65
      %s68 = sphi 0, %s67
      %s82 = sphi 0, %s68
      %s86 = sphi 0, %s86
      %s88 = sphi 0, %s86
      %s89 = sphi 0, %s88
      %s103 = sphi 0, %s89
      %s107 = sphi 0, %s107
      %s109 = sphi 0, %s107
      %s110 = sphi 0, %s109
      %s124 = sphi 0, %s110
      %s128 = sphi 0, %s128
      %s130 = sphi 0, %s128
      %s131 = sphi 0, %s130
      %s145 = sphi 0, %s131
      %s151 = sphi 0, %s153
      %s154 = sphi 0, %s151
      %s155 = sphi 0, %s154
      %s171 = sphi 0, %s155
      %s177 = sphi 0, %s179
      %s180 = sphi 0, %s177
      %s181 = sphi 0, %s180
      %s197 = sphi 0, %s181
      %s201 = sphi 0, %s201
      %s203 = sphi 0, %s201
      %s204 = sphi 0, %s203
      %s218 = sphi 0, %s204
    $region4: #{_lambda_.3} parent=1 // loop_header_branch
      %18 = sbr.rel (%p16) target = $region8
    $region5: #{_lambda_.3} parent=1 // loop_body
      %s20 = ssub.s32 %s15, 1
      %s21 = ssub.s32 %s15, 2
      %s22 = sadd.s32 %s15, 1
      %s24 = sadd.s32 %s23, 1
      %p27 = scmp.eq.s32.totalorder %s15, 1
      %p28 = scmp.ne.s32.totalorder %s23, %s25
      %p29 = scmp.eq.s32.totalorder %s15, 0
      %p30 = por %p28, %p29
      %p31 = scmp.ne.s32.totalorder %s23, %s25
      %p32 = scmp.eq.s32.totalorder %s20, 1
      %p33 = por %p31, %p32
      %p34 = scmp.ne.s32.totalorder %s25, %s26
      %p35 = scmp.eq.s32.totalorder %s20, 0
      %p36 = por %p34, %p35
      %p37 = scmp.ne.s32.totalorder %s25, %s26
      %p38 = scmp.eq.s32.totalorder %s21, 1
      %p39 = por %p37, %p38
      %p41 = scmp.ne.s32.totalorder %s26, %s40
      %p42 = scmp.eq.s32.totalorder %s21, 0
      %p43 = por %p41, %p42
      %s45 = sadd.s32 %s44, 1
      %p48 = scmp.eq.s32.totalorder %s15, 1
      %p49 = scmp.ne.s32.totalorder %s44, %s46
      %p50 = scmp.eq.s32.totalorder %s15, 0
      %p51 = por %p49, %p50
      %p52 = scmp.ne.s32.totalorder %s44, %s46
      %p53 = scmp.eq.s32.totalorder %s20, 1
      %p54 = por %p52, %p53
      %p55 = scmp.ne.s32.totalorder %s46, %s47
      %p56 = scmp.eq.s32.totalorder %s20, 0
      %p57 = por %p55, %p56
      %p58 = scmp.ne.s32.totalorder %s46, %s47
      %p59 = scmp.eq.s32.totalorder %s21, 1
      %p60 = por %p58, %p59
      %p62 = scmp.ne.s32.totalorder %s47, %s61
      %p63 = scmp.eq.s32.totalorder %s21, 0
      %p64 = por %p62, %p63
      %s66 = sadd.s32 %s65, 1
      %p69 = scmp.eq.s32.totalorder %s15, 1
      %p70 = scmp.ne.s32.totalorder %s65, %s67
      %p71 = scmp.eq.s32.totalorder %s15, 0
      %p72 = por %p70, %p71
      %p73 = scmp.ne.s32.totalorder %s65, %s67
      %p74 = scmp.eq.s32.totalorder %s20, 1
      %p75 = por %p73, %p74
      %p76 = scmp.ne.s32.totalorder %s67, %s68
      %p77 = scmp.eq.s32.totalorder %s20, 0
      %p78 = por %p76, %p77
      %p79 = scmp.ne.s32.totalorder %s67, %s68
      %p80 = scmp.eq.s32.totalorder %s21, 1
      %p81 = por %p79, %p80
      %p83 = scmp.ne.s32.totalorder %s68, %s82
      %p84 = scmp.eq.s32.totalorder %s21, 0
      %p85 = por %p83, %p84
      %s87 = sadd.s32 %s86, 1
      %p90 = scmp.eq.s32.totalorder %s15, 1
      %p91 = scmp.ne.s32.totalorder %s86, %s88
      %p92 = scmp.eq.s32.totalorder %s15, 0
      %p93 = por %p91, %p92
      %p94 = scmp.ne.s32.totalorder %s86, %s88
      %p95 = scmp.eq.s32.totalorder %s20, 1
      %p96 = por %p94, %p95
      %p97 = scmp.ne.s32.totalorder %s88, %s89
      %p98 = scmp.eq.s32.totalorder %s20, 0
      %p99 = por %p97, %p98
      %p100 = scmp.ne.s32.totalorder %s88, %s89
      %p101 = scmp.eq.s32.totalorder %s21, 1
      %p102 = por %p100, %p101
      %p104 = scmp.ne.s32.totalorder %s89, %s103
      %p105 = scmp.eq.s32.totalorder %s21, 0
      %p106 = por %p104, %p105
      %s108 = sadd.s32 %s107, 1
      %p111 = scmp.eq.s32.totalorder %s15, 1
      %p112 = scmp.ne.s32.totalorder %s107, %s109
      %p113 = scmp.eq.s32.totalorder %s15, 0
      %p114 = por %p112, %p113
      %p115 = scmp.ne.s32.totalorder %s107, %s109
      %p116 = scmp.eq.s32.totalorder %s20, 1
      %p117 = por %p115, %p116
      %p118 = scmp.ne.s32.totalorder %s109, %s110
      %p119 = scmp.eq.s32.totalorder %s20, 0
      %p120 = por %p118, %p119
      %p121 = scmp.ne.s32.totalorder %s109, %s110
      %p122 = scmp.eq.s32.totalorder %s21, 1
      %p123 = por %p121, %p122
      %p125 = scmp.ne.s32.totalorder %s110, %s124
      %p126 = scmp.eq.s32.totalorder %s21, 0
      %p127 = por %p125, %p126
      %s129 = sadd.s32 %s128, 1
      %p132 = scmp.eq.s32.totalorder %s15, 1
      %p133 = scmp.ne.s32.totalorder %s128, %s130
      %p134 = scmp.eq.s32.totalorder %s15, 0
      %p135 = por %p133, %p134
      %p136 = scmp.ne.s32.totalorder %s128, %s130
      %p137 = scmp.eq.s32.totalorder %s20, 1
      %p138 = por %p136, %p137
      %p139 = scmp.ne.s32.totalorder %s130, %s131
      %p140 = scmp.eq.s32.totalorder %s20, 0
      %p141 = por %p139, %p140
      %p142 = scmp.ne.s32.totalorder %s130, %s131
      %p143 = scmp.eq.s32.totalorder %s21, 1
      %p144 = por %p142, %p143
      %p146 = scmp.ne.s32.totalorder %s131, %s145
      %p147 = scmp.eq.s32.totalorder %s21, 0
      %p148 = por %p146, %p147
      %s149 = ssub.s32 %s15, %s22
      %p150 = scmp.eq.s32.totalorder %s149, 0
      %s152 = sadd.s32 %s151, 1
      %s153 = scalar_select %p150, %s151, %s152
      %p156 = pneg %p150
      %p157 = scmp.eq.s32.totalorder %s15, 1
      %p158 = por %p156, %p157
      %p159 = scmp.ne.s32.totalorder %s151, %s154
      %p160 = scmp.eq.s32.totalorder %s15, 0
      %p161 = por %p159, %p160
      %p162 = scmp.ne.s32.totalorder %s151, %s154
      %p163 = scmp.eq.s32.totalorder %s20, 1
      %p164 = por %p162, %p163
      %p165 = scmp.ne.s32.totalorder %s154, %s155
      %p166 = scmp.eq.s32.totalorder %s20, 0
      %p167 = por %p165, %p166
      %p168 = scmp.ne.s32.totalorder %s154, %s155
      %p169 = scmp.eq.s32.totalorder %s21, 1
      %p170 = por %p168, %p169
      %p172 = scmp.ne.s32.totalorder %s155, %s171
      %p173 = scmp.eq.s32.totalorder %s21, 0
      %p174 = por %p172, %p173
      %s175 = ssub.s32 %s15, %s22
      %p176 = scmp.eq.s32.totalorder %s175, 0
      %s178 = sadd.s32 %s177, 1
      %s179 = scalar_select %p176, %s177, %s178
      %p182 = pneg %p176
      %p183 = scmp.eq.s32.totalorder %s15, 1
      %p184 = por %p182, %p183
      %p185 = scmp.ne.s32.totalorder %s177, %s180
      %p186 = scmp.eq.s32.totalorder %s15, 0
      %p187 = por %p185, %p186
      %p188 = scmp.ne.s32.totalorder %s177, %s180
      %p189 = scmp.eq.s32.totalorder %s20, 1
      %p190 = por %p188, %p189
      %p191 = scmp.ne.s32.totalorder %s180, %s181
      %p192 = scmp.eq.s32.totalorder %s20, 0
      %p193 = por %p191, %p192
      %p194 = scmp.ne.s32.totalorder %s180, %s181
      %p195 = scmp.eq.s32.totalorder %s21, 1
      %p196 = por %p194, %p195
      %p198 = scmp.ne.s32.totalorder %s181, %s197
      %p199 = scmp.eq.s32.totalorder %s21, 0
      %p200 = por %p198, %p199
      %s202 = sadd.s32 %s201, 1
      %p205 = scmp.eq.s32.totalorder %s15, 1
      %p206 = scmp.ne.s32.totalorder %s201, %s203
      %p207 = scmp.eq.s32.totalorder %s15, 0
      %p208 = por %p206, %p207
      %p209 = scmp.ne.s32.totalorder %s201, %s203
      %p210 = scmp.eq.s32.totalorder %s20, 1
      %p211 = por %p209, %p210
      %p212 = scmp.ne.s32.totalorder %s203, %s204
      %p213 = scmp.eq.s32.totalorder %s20, 0
      %p214 = por %p212, %p213
      %p215 = scmp.ne.s32.totalorder %s203, %s204
      %p216 = scmp.eq.s32.totalorder %s21, 1
      %p217 = por %p215, %p216
      %p219 = scmp.ne.s32.totalorder %s204, %s218
      %p220 = scmp.eq.s32.totalorder %s21, 0
      %p221 = por %p219, %p220
      %p222 = scmp.le.s32.totalorder 1, %s15
      %p223 = scmp.lt.s32.totalorder %s15, 3
      %p224 = pnand %p222, %p223
      %p225 = pneg %p224
      // Predicated region
      $region9: #{_lambda_.3} parent=5 // pred_check
        _
      $region10: #{_lambda_.3} parent=5 // pred_check_branch
        %227 = sbr.rel (%p224) target = $region12
      $region11: #{_lambda_.3} parent=5 // pred_region
        %s228 = ssub.s32 %s15, 1
        // Predicated region
        $region13: #{_lambda_.3} parent=11 // pred_check
          %p229 = pneg %p36
        $region14: #{_lambda_.3} parent=11 // pred_check_branch
          %231 = sbr.rel (%p229) target = $region16
        $region15: #{_lambda_.3} parent=11 // pred_region
          _
        $region16: #{_lambda_.3} parent=11 // pred_fallthru
          _
        // Predicated region
        $region17: #{_lambda_.3} parent=11 // pred_check
          %p232 = pneg %p57
        $region18: #{_lambda_.3} parent=11 // pred_check_branch
          %234 = sbr.rel (%p232) target = $region20
        $region19: #{_lambda_.3} parent=11 // pred_region
          _
        $region20: #{_lambda_.3} parent=11 // pred_fallthru
          _
        // Predicated region
        $region21: #{_lambda_.3} parent=11 // pred_check
          %p235 = pneg %p78
        $region22: #{_lambda_.3} parent=11 // pred_check_branch
          %237 = sbr.rel (%p235) target = $region24
        $region23: #{_lambda_.3} parent=11 // pred_region
          _
        $region24: #{_lambda_.3} parent=11 // pred_fallthru
          _
        // Predicated region
        $region25: #{_lambda_.3} parent=11 // pred_check
          %p238 = pneg %p99
        $region26: #{_lambda_.3} parent=11 // pred_check_branch
          %240 = sbr.rel (%p238) target = $region28
        $region27: #{_lambda_.3} parent=11 // pred_region
          _
        $region28: #{_lambda_.3} parent=11 // pred_fallthru
          _
        // Predicated region
        $region29: #{_lambda_.3} parent=11 // pred_check
          %p241 = pneg %p120
        $region30: #{_lambda_.3} parent=11 // pred_check_branch
          %243 = sbr.rel (%p241) target = $region32
        $region31: #{_lambda_.3} parent=11 // pred_region
          _
        $region32: #{_lambda_.3} parent=11 // pred_fallthru
          _
        // Predicated region
        $region33: #{_lambda_.3} parent=11 // pred_check
          %p244 = pneg %p141
        $region34: #{_lambda_.3} parent=11 // pred_check_branch
          %246 = sbr.rel (%p244) target = $region36
        $region35: #{_lambda_.3} parent=11 // pred_region
          _
        $region36: #{_lambda_.3} parent=11 // pred_fallthru
          _
      $region12: #{_lambda_.3} parent=5 // pred_fallthru
        _
      %p247 = scmp.lt.s32.totalorder %s15, 2
      // Predicated region
      $region37: #{_lambda_.3} parent=5 // pred_check
        %p248 = pneg %p247
      $region38: #{_lambda_.3} parent=5 // pred_check_branch
        %250 = sbr.rel (%p248) target = $region40
      $region39: #{_lambda_.3} parent=5 // pred_region
        // Predicated region
        $region41: #{_lambda_.3} parent=39 // pred_check
          %p251 = pneg %p161
        $region42: #{_lambda_.3} parent=39 // pred_check_branch
          %253 = sbr.rel (%p251) target = $region44
        $region43: #{_lambda_.3} parent=39 // pred_region
          %s254 = sand.u32 %s151, 1
          %s255 = sand.u32 %s151, 1
          %s256 = smul.addr %s255, 16
          %s257 = scalar_lea.vmem [#allocation6], %s256
          %s258 = smul.addr %s15, 4
          %s259 = scalar_lea.vmem %s6, %s258
          // Predicated region
          $region45: #{_lambda_.3} parent=43 // pred_check
            _
          $region46: #{_lambda_.3} parent=43 // pred_check_branch
            %261 = sbr.rel (0) target = $region48
          $region47: #{_lambda_.3} parent=43 // pred_region
            // Predicated region
            $region49: #{_lambda_.3} parent=47 // pred_check
              _
            $region50: #{_lambda_.3} parent=47 // pred_check_branch
              %263 = sbr.rel target = $region52
            $region51: #{_lambda_.3} parent=47 // pred_region
              // Predicated region
              $region64: #{_lambda_.3} parent=51 // pred_check
                _
              $region65: #{_lambda_.3} parent=51 // pred_check_branch
                %285 = sbr.rel (0) target = $region67
              $region66: #{_lambda_.3} parent=51 // pred_region
                loop: start=0, step=1, limit=1
                $region68: #{_lambda_.3} parent=66 // loop_pre_header
                  _
                $region69: #{_lambda_.3} parent=66 // loop_header
                  %s287 = sphi 0, %s291
                  %p288 = scmp.ge.s32.totalorder %s287, 1
                  %s292 = sphi %s259, %s259
                  %s293 = sphi %s257, %s257
                $region70: #{_lambda_.3} parent=66 // loop_header_branch
                  %290 = sbr.rel (%p288) target = $region74
                $region71: #{_lambda_.3} parent=66 // loop_body
                  _
                $region72: #{_lambda_.3} parent=66 // loop_footer
                  %s291 = sadd.s32 1, %s287
                $region73: #{_lambda_.3} parent=66 // loop_footer_branch
                  %286 = sbr.rel target = $region69
                $region74: #{_lambda_.3} parent=66 // loop_exit
                  _
                %s295 = ssub.s32 16, 1
                loop: start=0, step=1, limit=1
                $region75: #{_lambda_.3} parent=66 // loop_pre_header
                  _
                $region76: #{_lambda_.3} parent=66 // loop_header
                  %s297 = sphi 0, %s301
                  %p298 = scmp.ge.s32.totalorder %s297, 1
                  %s302 = sphi %s259, %s259
                  %s303 = sphi %s257, %s257
                $region77: #{_lambda_.3} parent=66 // loop_header_branch
                  %300 = sbr.rel (%p298) target = $region81
                $region78: #{_lambda_.3} parent=66 // loop_body
                  %v304 = vld [vmem:[%s302] sm:%s295]
                  %305 = vst [vmem:[%s303] sm:%s295] %v304
                  %v306 = vld [vmem:[%s302 + $0x8] sm:%s295]
                  %307 = vst [vmem:[%s303 + $0x4] sm:%s295] %v306
                  %v308 = vld [vmem:[%s302 + $0x10] sm:%s295]
                  %309 = vst [vmem:[%s303 + $0x8] sm:%s295] %v308
                  %v310 = vld [vmem:[%s302 + $0x18] sm:%s295]
                  %311 = vst [vmem:[%s303 + $0xc] sm:%s295] %v310
                $region79: #{_lambda_.3} parent=66 // loop_footer
                  %s301 = sadd.s32 1, %s297
                $region80: #{_lambda_.3} parent=66 // loop_footer_branch
                  %296 = sbr.rel target = $region76
                $region81: #{_lambda_.3} parent=66 // loop_exit
                  _
              $region67: #{_lambda_.3} parent=51 // pred_fallthru
                _
            $region52: #{_lambda_.3} parent=47 // pred_fallthru
              _
            // Predicated region
            $region53: #{_lambda_.3} parent=47 // pred_check
              _
            $region54: #{_lambda_.3} parent=47 // pred_check_branch
              %265 = sbr.rel (0) target = $region56
            $region55: #{_lambda_.3} parent=47 // pred_region
              %s267 = ssub.s32 16, 1
              loop: start=0, step=1, limit=1
              $region57: #{_lambda_.3} parent=55 // loop_pre_header
                _
              $region58: #{_lambda_.3} parent=55 // loop_header
                %s269 = sphi 0, %s273
                %p270 = scmp.ge.s32.totalorder %s269, 1
                %s274 = sphi %s259, %s259
                %s275 = sphi %s257, %s257
              $region59: #{_lambda_.3} parent=55 // loop_header_branch
                %272 = sbr.rel (%p270) target = $region63
              $region60: #{_lambda_.3} parent=55 // loop_body
                %v276 = vld [vmem:[%s274] sm:%s267]
                %277 = vst [vmem:[%s275] sm:%s267] %v276
                %v278 = vld [vmem:[%s274 + $0x8] sm:%s267]
                %279 = vst [vmem:[%s275 + $0x4] sm:%s267] %v278
                %v280 = vld [vmem:[%s274 + $0x10] sm:%s267]
                %281 = vst [vmem:[%s275 + $0x8] sm:%s267] %v280
                %v282 = vld [vmem:[%s274 + $0x18] sm:%s267]
                %283 = vst [vmem:[%s275 + $0xc] sm:%s267] %v282
              $region61: #{_lambda_.3} parent=55 // loop_footer
                %s273 = sadd.s32 1, %s269
              $region62: #{_lambda_.3} parent=55 // loop_footer_branch
                %268 = sbr.rel target = $region58
              $region63: #{_lambda_.3} parent=55 // loop_exit
                _
            $region56: #{_lambda_.3} parent=47 // pred_fallthru
              _
          $region48: #{_lambda_.3} parent=43 // pred_fallthru
            _
          %312 = vnop
        $region44: #{_lambda_.3} parent=39 // pred_fallthru
          _
        // Predicated region
        $region82: #{_lambda_.3} parent=39 // pred_check
          %p313 = pneg %p187
        $region83: #{_lambda_.3} parent=39 // pred_check_branch
          %315 = sbr.rel (%p313) target = $region85
        $region84: #{_lambda_.3} parent=39 // pred_region
          %p316 = scmp.lt.s32.totalorder %s15, 1
          %s317 = scalar_select %p316, %s15, 1
          %s318 = scalar_lea.vmem %s7, %s317
        $region85: #{_lambda_.3} parent=39 // pred_fallthru
          _
      $region40: #{_lambda_.3} parent=5 // pred_fallthru
        _
      %p319 = scmp.le.s32.totalorder 1, %s15
      %p320 = scmp.lt.s32.totalorder %s15, 3
      %p321 = pnand %p319, %p320
      %p322 = pneg %p321
      // Predicated region
      $region86: #{_lambda_.3} parent=5 // pred_check
        _
      $region87: #{_lambda_.3} parent=5 // pred_check_branch
        %324 = sbr.rel (%p321) target = $region89
      $region88: #{_lambda_.3} parent=5 // pred_region
        %s325 = ssub.s32 %s15, 1
        %s326 = sand.u32 %s154, 1
        %s327 = sand.u32 %s154, 1
        %s328 = smul.addr %s327, 16
        %s329 = scalar_lea.vmem [#allocation6], %s328
        // Predicated region
        $region90: #{_lambda_.3} parent=88 // pred_check
          %p330 = pneg %p167
        $region91: #{_lambda_.3} parent=88 // pred_check_branch
          %332 = sbr.rel (%p330) target = $region93
        $region92: #{_lambda_.3} parent=88 // pred_region
          _
        $region93: #{_lambda_.3} parent=88 // pred_fallthru
          _
        %p333 = pneg %p36
        %p334 = pneg %p33
        %p335 = pneg %p57
        %p336 = pneg %p54
        %p337 = pneg %p78
        %p338 = pneg %p75
        %p339 = pneg %p99
        %p340 = pneg %p96
        %p341 = pneg %p120
        %p342 = pneg %p117
        %p343 = pneg %p141
        %p344 = pneg %p138
        %s345 = sand.u32 %s154, 1
        %s346 = sand.u32 %s154, 1
        %s347 = smul.addr %s346, 16
        %s348 = scalar_lea.vmem [#allocation6], %s347
        %p349 = pneg %p167
        %p350 = pneg %p164
        %p351 = scmp.lt.s32.totalorder %s20, 1
        %s352 = scalar_select %p351, %s20, 1
        %s353 = scalar_lea.vmem %s7, %s352
        %p354 = pneg %p193
        %p355 = pneg %p190
        %p356 = pneg %p214
        %p357 = pneg %p211
        %p358 = scmp.lt.s32.totalorder %s20, 1
        %s359 = scalar_select %p358, %s20, 1
        %s360 = scalar_lea.vmem %s7, %s359
        %p362 = scmp.eq.s32.totalorder %s20, 0
        // Predicated region
        $region94: #{_lambda_.3} parent=88 // pred_check
          %p363 = pneg %p362
        $region95: #{_lambda_.3} parent=88 // pred_check_branch
          %365 = sbr.rel (%p363) target = $region97
        $region96: #{_lambda_.3} parent=88 // pred_region
          %v366 = vld [vmem:[%s0] sm:$0xff]
          %v367 = vld [vmem:[%s0 + $0x8] sm:$0xff]
          %v368 = vld [vmem:[%s2] sm:$0xf]
          %v369 = vld [vmem:[%s2 + $0x4] sm:$0xf]
          %v370 = vld [vmem:[%s2 + $0x8] sm:$0xf]
          %v371 = vld [vmem:[%s2 + $0xc] sm:$0xf]
          %v372 = vpack.c.bf16 %v367, %v366
          %v373 = vld [vmem:[%s3] sm:$0x1]
          %v375 = vlaneseq
          %v376 = vshrl.u32 %v375, 7
          %v377 = vsub.s32 0, %v376
          %v378 = vrot.slane %v373, %v377
          %v384 = vunpack.c.l.b16 %v368
          %v385 = vunpack.c.l.b16 %v369
          %v386 = vunpack.c.l.b16 %v370
          %v387 = vunpack.c.l.b16 %v371
          %v388 = vpack.c.b16 %v385, %v384
          %v389 = vpack.c.b16 %v387, %v386
          %vm392 = vcmask 261120
          %v394 = vsel %vm392, %v372, 0
          %396 = vmatprep.subr.bf16.mxu0 0
          %397 = vmatpush1.bf16.msra.mxu0 0
          %398 = vmatprep.subr.bf16.mxu0 0
          %399 = vmatpush1.bf16.msra.mxu0 0
          %400 = vmatprep.subr.bf16.mxu0 0
          %401 = vmatpush1.bf16.msra.mxu0 0
          %402 = vmatprep.subr.bf16.mxu0 0
          %403 = vmatpush1.bf16.msra.mxu0 0
          %404 = vmatprep.subr.bf16.mxu0 0
          %405 = vmatpush1.bf16.msra.mxu0 0
          %406 = vmatprep.subr.bf16.mxu0 0
          %407 = vmatpush1.bf16.msra.mxu0 0
          %408 = vmatprep.subr.bf16.mxu0 0
          %409 = vmatpush1.bf16.msra.mxu0 %v389
          %410 = vmatprep.subr.bf16.mxu0 0
          %411 = vmatpush1.bf16.msra.mxu0 %v388
          %412 = vmatprep.subr.bf16.mxu0 0
          %413 = vmatpush2.bf16.msra.mxu0 0
          %414 = vmatprep.subr.bf16.mxu0 0
          %415 = vmatpush2.bf16.msra.mxu0 0
          %416 = vmatprep.subr.bf16.mxu0 0
          %417 = vmatpush2.bf16.msra.mxu0 0
          %418 = vmatprep.subr.bf16.mxu0 0
          %419 = vmatpush2.bf16.msra.mxu0 0
          %420 = vmatprep.subr.bf16.mxu0 0
          %421 = vmatpush2.bf16.msra.mxu0 0
          %422 = vmatprep.subr.bf16.mxu0 0
          %423 = vmatpush2.bf16.msra.mxu0 0
          %424 = vmatprep.subr.bf16.mxu0 0
          %425 = vmatpush2.bf16.msra.mxu0 0
          %426 = vmatprep.subr.bf16.mxu0 0
          %427 = vmatpush2.bf16.msra.mxu0 0
          %428 = vmatprep.mubr.bf16.mxu0 0
          %429 = vmatmul.mubr.bf16.gmra.mxu0 %v394
          %v430 = vpop.f32.mrf.mxu0
          %v431 = vadd.f32 %v378, %v430
          %v432 = vpop.f32.mrf.mxu0
          %v433 = vpop.f32.mrf.mxu0
          %v434 = vadd.f32 %v378, %v433
          %v435 = vpop.f32.mrf.mxu0
          %436 = vdwg.mxu0
          %v437 = vmul.f32 %v431, 0.5
          %v438 = vmul.f32 %v434, 0.5
          %v439 = vmul.f32 %v431, 0.044715
          %v440 = vmul.f32 %v434, 0.044715
          %v441 = vmul.f32 %v439, %v431
          %v442 = vmul.f32 %v440, %v434
          %v443 = vmul.f32 %v441, %v431
          %v444 = vmul.f32 %v442, %v434
          %v445 = vadd.f32 %v431, %v443
          %v446 = vadd.f32 %v434, %v444
          %v447 = vmul.f32 %v445, 0.7978846
          %v448 = vmul.f32 %v446, 0.7978846
          %v449 = vtanh.pop %v447
          %v450 = vtanh.pop %v448
          %v451 = vadd.f32 %v449, 1.0
          %v452 = vadd.f32 %v450, 1.0
          %v453 = vmul.f32 %v437, %v451
          %v454 = vmul.f32 %v438, %v452
          %v455 = vld [vmem:[%s4] sm:$0x1]
          %v456 = vld [vmem:[%s5] sm:$0x1]
          %v457 = vsel %vm392, %v453, 0.0
          %458 = vadd.xlane.f32.xlu0 %v457
          %v459 = vpop.xlane.xlu0 %458
          %v460 = vsel %vm392, %v454, 0.0
          %461 = vadd.xlane.f32.xlu0 %v460
          %v462 = vpop.xlane.xlu0 %461
          %v463 = vrcp.pop 32.0
          %v464 = vmul.f32 %v459, %v463
          %v465 = vmul.f32 %v462, %v463
          %v466 = vsub.f32 %v453, %v464
          %v467 = vsub.f32 %v454, %v465
          %v468 = vmul.f32 %v466, %v466
          %v469 = vmul.f32 %v467, %v467
          %v470 = vsel %vm392, %v468, 0.0
          %471 = vadd.xlane.f32.xlu0 %v470
          %v472 = vpop.xlane.xlu0 %471
          %v473 = vsel %vm392, %v469, 0.0
          %474 = vadd.xlane.f32.xlu0 %v473
          %v475 = vpop.xlane.xlu0 %474
          %v476 = vmul.f32 %v472, %v463
          %v477 = vmul.f32 %v475, %v463
          %v478 = vadd.f32 %v476, 1e-12
          %v479 = vadd.f32 %v477, 1e-12
          %v480 = vrsqrt.pop %v478
          %v481 = vrsqrt.pop %v479
          %v482 = vmul.f32 %v466, %v480
          %v483 = vmul.f32 %v467, %v481
          %v485 = vlaneseq
          %v486 = vshrl.u32 %v485, 7
          %v487 = vsub.s32 0, %v486
          %v488 = vrot.slane %v455, %v487
          %v490 = vmul.f32 %v482, %v488
          %v491 = vmul.f32 %v483, %v488
          %v493 = vlaneseq
          %v494 = vshrl.u32 %v493, 7
          %v495 = vsub.s32 0, %v494
          %v496 = vrot.slane %v456, %v495
          %v498 = vadd.f32 %v490, %v496
          %v499 = vadd.f32 %v491, %v496
          %500 = vst.msk [vmem:[#allocation2] sm:$0xff] %vm392, %v498
          %501 = vst.msk [vmem:[#allocation2 + $0x8] sm:$0xff] %vm392, %v499
          %vm502 = vcmask 7168
          %503 = vst.msk [vmem:[#allocation3] sm:$0xff] %vm502, -inf
          %504 = vst.msk [vmem:[#allocation3 + $0x8] sm:$0xff] %vm502, -inf
          %505 = vst.msk [vmem:[#allocation4] sm:$0xff] %vm502, 0.0
          %506 = vst.msk [vmem:[#allocation4 + $0x8] sm:$0xff] %vm502, 0.0
          %507 = vst.msk [vmem:[#allocation5] sm:$0xff] %vm502, 0.0
          %508 = vst.msk [vmem:[#allocation5 + $0x8] sm:$0xff] %vm502, 0.0
        $region97: #{_lambda_.3} parent=88 // pred_fallthru
          _
        %v509 = vld [vmem:[#allocation2] sm:$0xff]
        %v510 = vld [vmem:[#allocation2 + $0x8] sm:$0xff]
        %v511 = vld [vmem:[%s329] sm:$0xf]
        %v512 = vld [vmem:[%s329 + $0x4] sm:$0xf]
        %v513 = vld [vmem:[%s329 + $0x8] sm:$0xf]
        %v514 = vld [vmem:[%s329 + $0xc] sm:$0xf]
        %v515 = vpack.c.bf16 %v510, %v509
        %v516 = vld [vmem:[%s360] sm:$0x1]
        %v518 = vlaneseq
        %v519 = vshrl.u32 %v518, 7
        %v520 = vsub.s32 0, %v519
        %v521 = vrot.slane %v516, %v520
        %v527 = vunpack.c.l.b16 %v511
        %v528 = vunpack.c.l.b16 %v512
        %v529 = vunpack.c.l.b16 %v513
        %v530 = vunpack.c.l.b16 %v514
        %v531 = vpack.c.b16 %v528, %v527
        %v532 = vpack.c.b16 %v530, %v529
        %vm535 = vcmask 261120
        %v537 = vsel %vm535, %v515, 0
        %539 = vmatprep.subr.bf16.mxu0 0
        %540 = vmatpush1.bf16.msra.mxu0 0
        %541 = vmatprep.subr.bf16.mxu0 0
        %542 = vmatpush1.bf16.msra.mxu0 0
        %543 = vmatprep.subr.bf16.mxu0 0
        %544 = vmatpush1.bf16.msra.mxu0 0
        %545 = vmatprep.subr.bf16.mxu0 0
        %546 = vmatpush1.bf16.msra.mxu0 0
        %547 = vmatprep.subr.bf16.mxu0 0
        %548 = vmatpush1.bf16.msra.mxu0 0
        %549 = vmatprep.subr.bf16.mxu0 0
        %550 = vmatpush1.bf16.msra.mxu0 0
        %551 = vmatprep.subr.bf16.mxu0 0
        %552 = vmatpush1.bf16.msra.mxu0 %v532
        %553 = vmatprep.subr.bf16.mxu0 0
        %554 = vmatpush1.bf16.msra.mxu0 %v531
        %555 = vmatprep.subr.bf16.mxu0 0
        %556 = vmatpush2.bf16.msra.mxu0 0
        %557 = vmatprep.subr.bf16.mxu0 0
        %558 = vmatpush2.bf16.msra.mxu0 0
        %559 = vmatprep.subr.bf16.mxu0 0
        %560 = vmatpush2.bf16.msra.mxu0 0
        %561 = vmatprep.subr.bf16.mxu0 0
        %562 = vmatpush2.bf16.msra.mxu0 0
        %563 = vmatprep.subr.bf16.mxu0 0
        %564 = vmatpush2.bf16.msra.mxu0 0
        %565 = vmatprep.subr.bf16.mxu0 0
        %566 = vmatpush2.bf16.msra.mxu0 0
        %567 = vmatprep.subr.bf16.mxu0 0
        %568 = vmatpush2.bf16.msra.mxu0 0
        %569 = vmatprep.subr.bf16.mxu0 0
        %570 = vmatpush2.bf16.msra.mxu0 0
        %571 = vmatprep.mubr.bf16.mxu0 0
        %572 = vmatmul.mubr.bf16.gmra.mxu0 %v537
        %v573 = vpop.f32.mrf.mxu0
        %v574 = vadd.f32 %v521, %v573
        %v575 = vpop.f32.mrf.mxu0
        %v576 = vpop.f32.mrf.mxu0
        %v577 = vadd.f32 %v521, %v576
        %v578 = vpop.f32.mrf.mxu0
        %579 = vdwg.mxu0
        %v580 = vld [vmem:[#allocation3] sm:$0xff]
        %v581 = vld [vmem:[#allocation3 + $0x8] sm:$0xff]
        %582 = vmax.xlane.f32.xlu0 %v574
        %v583 = vpop.xlane.xlu0 %582
        %584 = vmax.xlane.f32.xlu0 %v577
        %v585 = vpop.xlane.xlu0 %584
        %v586 = vmax.f32 %v580, %v583
        %v587 = vmax.f32 %v581, %v585
        %v588 = vsub.f32 %v580, %v586
        %v589 = vsub.f32 %v581, %v587
        %v590 = vmul.f32 %v588, 1.442695
        %v591 = vpow.pop %v590
        %v592 = vmul.f32 %v589, 1.442695
        %v593 = vpow.pop %v592
        %v594 = vld [vmem:[#allocation4] sm:$0xff]
        %v595 = vld [vmem:[#allocation4 + $0x8] sm:$0xff]
        %v596 = vmul.f32 %v591, %v594
        %v597 = vmul.f32 %v593, %v595
        %599 = vset.pattern.permute.xlu0 0
        %600 = vperm.xlu0 %599, %v586
        %v601 = vpop.permute.xlu0 %600
        %604 = vset.pattern.permute.xlu0 0
        %605 = vperm.xlu0 %604, %v587
        %v606 = vpop.permute.xlu0 %605
        %v608 = vsub.f32 %v574, %v601
        %v609 = vsub.f32 %v577, %v606
        %v610 = vmul.f32 %v608, 1.442695
        %v611 = vpow.pop %v610
        %v612 = vmul.f32 %v609, 1.442695
        %v613 = vpow.pop %v612
        %614 = vadd.xlane.f32.xlu0 %v611
        %v615 = vpop.xlane.xlu0 %614
        %616 = vadd.xlane.f32.xlu0 %v613
        %v617 = vpop.xlane.xlu0 %616
        %v618 = vadd.f32 %v596, %v615
        %v619 = vadd.f32 %v597, %v617
        %vm620 = vcmask 7168
        %621 = vst.msk [vmem:[#allocation4] sm:$0xff] %vm620, %v618
        %622 = vst.msk [vmem:[#allocation4 + $0x8] sm:$0xff] %vm620, %v619
        %623 = vst.msk [vmem:[#allocation3] sm:$0xff] %vm620, %v586
        %624 = vst.msk [vmem:[#allocation3 + $0x8] sm:$0xff] %vm620, %v587
        %v625 = vlaneseq
        %v626 = vand.u32 %v625, 127
        %s627 = smul.u32 %s20, 128
        %v628 = vstv %s627
        %v629 = vadd.s32 %v626, %v628
        %v630 = vld [vmem:[#allocation5] sm:$0xff]
        %v631 = vld [vmem:[#allocation5 + $0x8] sm:$0xff]
        %v632 = vld [vmem:[%s1] sm:$0xff]
        %v633 = vld [vmem:[%s1 + $0x8] sm:$0xff]
        %634 = vset.pattern.permute.xlu0 0
        %635 = vperm.xlu0 %634, %v632
        %v636 = vpop.permute.xlu0 %635
        %637 = vset.pattern.permute.xlu0 0
        %638 = vperm.xlu0 %637, %v633
        %v639 = vpop.permute.xlu0 %638
        %vm640 = vcmp.eq.s32.totalorder %v629, %v636
        %vm641 = vcmp.eq.s32.totalorder %v629, %v639
        %v642 = vsel %vm640, %v574, 0.0
        %v643 = vsel %vm641, %v577, 0.0
        %644 = vadd.xlane.f32.xlu0 %v642
        %v645 = vpop.xlane.xlu0 %644
        %646 = vadd.xlane.f32.xlu0 %v643
        %v647 = vpop.xlane.xlu0 %646
        %v648 = vadd.f32 %v630, %v645
        %v649 = vadd.f32 %v631, %v647
        %650 = vst.msk [vmem:[#allocation5] sm:$0xff] %vm620, %v648
        %651 = vst.msk [vmem:[#allocation5 + $0x8] sm:$0xff] %vm620, %v649
        %p652 = scmp.eq.s32.totalorder %s20, 1
        // Predicated region
        $region98: #{_lambda_.3} parent=88 // pred_check
          %p653 = pneg %p652
        $region99: #{_lambda_.3} parent=88 // pred_check_branch
          %655 = sbr.rel (%p653) target = $region101
        $region100: #{_lambda_.3} parent=88 // pred_region
          %v656 = vld [vmem:[#allocation3] sm:$0xff]
          %v657 = vld [vmem:[#allocation3 + $0x8] sm:$0xff]
          %v658 = vld [vmem:[#allocation4] sm:$0xff]
          %v659 = vld [vmem:[#allocation4 + $0x8] sm:$0xff]
          %v660 = vlog2.pop %v658
          %v661 = vmul.f32 %v660, 0.6931472
          %v662 = vlog2.pop %v659
          %v663 = vmul.f32 %v662, 0.6931472
          %v664 = vadd.f32 %v656, %v661
          %v665 = vadd.f32 %v657, %v663
          %v666 = vld [vmem:[#allocation5] sm:$0xff]
          %v667 = vld [vmem:[#allocation5 + $0x8] sm:$0xff]
          %v668 = vsub.f32 %v664, %v666
          %v669 = vsub.f32 %v665, %v667
          %v670 = vsel %vm620, %v668, 0.0
          %v671 = vsel %vm620, %v669, 0.0
          %v672 = vadd.f32 %v670, %v671
          %v673 = vrot.slane %v672, 4
          %v674 = vadd.f32 %v672, %v673
          %v675 = vrot.slane %v674, 2
          %v676 = vadd.f32 %v674, %v675
          %v677 = vrot.slane %v676, 1
          %v678 = vadd.f32 %v676, %v677
          %v679 = vmul.f32 %v678, 0.0625
          %vm680 = vcmask 0
          %681 = vst.msk [vmem:[#allocation7] sm:$0x1] %vm680, %v679
        $region101: #{_lambda_.3} parent=88 // pred_fallthru
          _
        // Predicated region
        $region102: #{_lambda_.3} parent=88 // pred_check
          %p682 = pneg %p211
        $region103: #{_lambda_.3} parent=88 // pred_check_branch
          %684 = sbr.rel (%p682) target = $region105
        $region104: #{_lambda_.3} parent=88 // pred_region
          %s686 = ssub.s32 16, 16
          %687 = vsyncadd [#allocation8], %s686
          %s689 = sshll.u32 [#allocation7], 4
          %s690 = int_to_ptr.vmem [resolvable:$true] %s689
          %692 = dma.vmem_to_hbm [thread:$0]  %s690, 16, %s8, [#allocation8]
        $region105: #{_lambda_.3} parent=88 // pred_fallthru
          _
        // Predicated region
        $region106: #{_lambda_.3} parent=88 // pred_check
          %p693 = pneg %p211
        $region107: #{_lambda_.3} parent=88 // pred_check_branch
          %695 = sbr.rel (%p693) target = $region109
        $region108: #{_lambda_.3} parent=88 // pred_region
          %696 = dma.done [#allocation8], 16
        $region109: #{_lambda_.3} parent=88 // pred_fallthru
          _
      $region89: #{_lambda_.3} parent=5 // pred_fallthru
        _
      %p697 = scmp.le.s32.totalorder 2, %s15
      // Predicated region
      $region110: #{_lambda_.3} parent=5 // pred_check
        %p698 = pneg %p697
      $region111: #{_lambda_.3} parent=5 // pred_check_branch
        %700 = sbr.rel (%p698) target = $region113
      $region112: #{_lambda_.3} parent=5 // pred_region
        %s701 = ssub.s32 %s15, 2
      $region113: #{_lambda_.3} parent=5 // pred_fallthru
        _
    $region6: #{_lambda_.3} parent=1 // loop_footer
      %s19 = sadd.s32 1, %s15
    $region7: #{_lambda_.3} parent=1 // loop_footer_branch
      %14 = sbr.rel target = $region3
    $region8: #{_lambda_.3} parent=1 // loop_exit
      _
    %702 = vsyncpa [#allocation8], 1
    %s703 = scalar_lea.sflag [#allocation8], 1
    %704 = vsyncpa %s703, 1

</llo_original>
